<compile_context>
chip_gen: v6e
topology: v6e:2x2x1
jax: 0.10.0
libtpu: 0.0.40
codegen_flags: <defaults>
</compile_context>

<pallas_src>
from typing import NamedTuple

import numpy as np

import jax
import jax.numpy as jnp
from jax import lax
from jax.experimental import pallas as pl
from jax.experimental.pallas import tpu as pltpu

EPS = 1e-5


class ConvCfg(NamedTuple):
    cin: int
    cout: int
    k: int
    stride: int


# ---------------------------------------------------------------------------
# Small helpers
# ---------------------------------------------------------------------------
def _full_spec(shape):
    # Whole-array block (legal regardless of (8,128) because it equals the full
    # array dims); grid=(1,) so the index map is constant.
    return pl.BlockSpec(shape, lambda *_: (0,) * len(shape))


def _conv_out(h, k, stride):
    return (h - k) // stride + 1


def _fold_groups(row, groups, width):
    # row: (1, groups*width) with column index g*width + c  ->  (1, width) sum over g.
    acc = row[:, 0:width]
    for g in range(1, groups):
        acc = acc + row[:, g * width:(g + 1) * width]
    return acc


# ---------------------------------------------------------------------------
# One fused Pallas kernel for the whole network
# ---------------------------------------------------------------------------
def _make_fused_kernel(cfgs, spatials, batch, hidden, num_classes):
    n_conv = len(cfgs)

    def kernel(*refs):
        # refs = [x_img, (R, CW) per conv layer, w1_blocks, w2, slab, out]
        x_ref = refs[0]
        conv_refs = refs[1:1 + 2 * n_conv]
        w1_ref, w2_ref, slab_ref, o_ref = refs[1 + 2 * n_conv:]

        slab = slab_ref[...]                      # (8, 288) packed gammas/betas/bias
        # Image-matrix layout: rows = (h, n), cols = (w, c)  -> self-composing
        # across conv layers, all ops stay 2-D.
        y = x_ref[...]

        for li, cfg in enumerate(cfgs):
            r_ref = conv_refs[2 * li]             # (k, Ho*N, Hi*N)  0/1 row gather
            cw_ref = conv_refs[2 * li + 1]        # (k, Wi*Cin, Wo*Cout) weight+col gather
            wo = spatials[li + 1]
            cout = cfg.cout

            # Conv2d (valid padding, stride s, no bias) as 2k MXU matmuls.
            acc = None
            for i in range(cfg.k):
                g = jnp.dot(r_ref[i], y, preferred_element_type=jnp.float32)
                t = jnp.dot(g, cw_ref[i], preferred_element_type=jnp.float32)
                acc = t if acc is None else acc + t

            # BatchNorm2d (training-mode biased batch stats over N,H,W) + ReLU.
            # Columns are (wo, cout): fold over the wo groups to get per-channel
            # stats, broadcast back with jnp.tile (lane-dim tiling).
            count = acc.shape[0] * wo             # (N*Ho) * Wo elements per channel
            mean_c = _fold_groups(jnp.sum(acc, axis=0, keepdims=True), wo, cout) / count
            d = acc - jnp.tile(mean_c, (1, wo))
            var_c = _fold_groups(jnp.sum(d * d, axis=0, keepdims=True), wo, cout) / count
            scale_c = slab[2 * li:2 * li + 1, :cout] * lax.rsqrt(var_c + EPS)   # gamma/std
            shift_c = slab[2 * li + 1:2 * li + 2, :cout]                        # beta
            y = jnp.maximum(d * jnp.tile(scale_c, (1, wo)) + jnp.tile(shift_c, (1, wo)),
                            0.0)

        # ----- flatten + Linear-1 (bias folded away by BatchNorm1d) -----------
        # y rows are (ho, n): contract each contiguous per-ho row block with the
        # matching pre-permuted weight block, accumulating in vregs.  This folds
        # the NCHW flatten permutation into w1's row order (done once at init).
        h_last = spatials[-1]
        h = None
        for ho in range(h_last):
            blk = y[ho * batch:(ho + 1) * batch, :]               # (N, Wo*Cout)
            t = jnp.dot(blk, w1_ref[ho], preferred_element_type=jnp.float32)
            h = t if h is None else h + t                          # (N, hidden)

        # BatchNorm1d (training-mode batch stats) + ReLU.
        mean = jnp.mean(h, axis=0, keepdims=True)
        var = jnp.mean(jnp.square(h - mean), axis=0, keepdims=True)
        h = (h - mean) * lax.rsqrt(var + EPS)
        h = h * slab[2 * n_conv:2 * n_conv + 1, :hidden] \
              + slab[2 * n_conv + 1:2 * n_conv + 2, :hidden]
        h = jnp.maximum(h, 0.0)

        # Linear-2 + exact softmax(dim=1).
        logits = jnp.dot(h, w2_ref[...], preferred_element_type=jnp.float32)
        logits = logits + slab[2 * n_conv + 2:2 * n_conv + 3, :num_classes]
        m = jnp.max(logits, axis=1, keepdims=True)
        e = jnp.exp(logits - m)
        # Exact divide (fixes the row-sum check; approx reciprocal was too loose).
        o_ref[...] = e / jnp.sum(e, axis=1, keepdims=True)

    return kernel


# ---------------------------------------------------------------------------
# Parameter construction
# ---------------------------------------------------------------------------
def init_torch_params(key, cfgs, num_classes=10, in_hw=28):
    """Random parameters in PyTorch layout (Conv2d OIHW, Linear weight.T, BN vectors)."""
    tp = {"convs": []}
    h = in_hw
    for cfg in cfgs:
        key, kw, kb, kg, kbt = jax.random.split(key, 5)
        tp["convs"].append({
            "w": 0.1 * jax.random.normal(kw, (cfg.cout, cfg.cin, cfg.k, cfg.k), jnp.float32),
            "b": 0.1 * jax.random.normal(kb, (cfg.cout,), jnp.float32),
            "gamma": 1.0 + 0.1 * jax.random.normal(kg, (cfg.cout,), jnp.float32),
            "beta": 0.1 * jax.random.normal(kbt, (cfg.cout,), jnp.float32),
        })
        h = _conv_out(h, cfg.k, cfg.stride)
    linshape = cfgs[-1].cout * h * h
    hidden = linshape // 2

    key, k1, kb1, kg1, kbt1, k2, kb2 = jax.random.split(key, 7)
    tp["w1t"] = 0.05 * jax.random.normal(k1, (linshape, hidden), jnp.float32)   # Linear1.weight.T
    tp["b1"] = 0.05 * jax.random.normal(kb1, (hidden,), jnp.float32)
    tp["g_fc"] = 1.0 + 0.1 * jax.random.normal(kg1, (hidden,), jnp.float32)
    tp["b_fc"] = 0.1 * jax.random.normal(kbt1, (hidden,), jnp.float32)
    tp["w2t"] = 0.05 * jax.random.normal(k2, (hidden, num_classes), jnp.float32)  # Linear2.weight.T
    tp["b2"] = 0.05 * jax.random.normal(kb2, (num_classes,), jnp.float32)
    return tp


def _conv_weight_to_colmats(w_oihw, stride, wi, wo):
    # CW_i[(w*Cin + c), (wo*Cout + co)] = W[co, c, i, w - s*wo] (0 elsewhere)
    w_np = np.asarray(w_oihw)
    co_, ci_, k, _ = w_np.shape
    cw = np.zeros((k, wi * ci_, wo * co_), np.float32)
    for i in range(k):
        for j in range(k):
            for o in range(wo):
                w_in = stride * o + j
                cw[i, w_in * ci_:(w_in + 1) * ci_, o * co_:(o + 1) * co_] = w_np[:, :, i, j].T
    return jnp.asarray(cw)


def _build_row_gather(k, stride, hi, ho, n):
    # R_i[(ho*N + n), (h*N + n)] = 1 iff h == stride*ho + i   (constant 0/1 matrix)
    r = np.zeros((k, ho * n, hi * n), np.float32)
    for i in range(k):
        for o in range(ho):
            src = stride * o + i
            for b in range(n):
                r[i, o * n + b, src * n + b] = 1.0
    return r


def _pack_param_slab(tp, cfgs, hidden, num_classes):
    # One (8, max_width>=128) f32 slab holding every gamma/beta + lin2 bias
    # -> a single small DMA instead of several padded (1,N)/(2,N) blocks.
    width = max([c.cout for c in cfgs] + [hidden, num_classes])
    rows = 2 * len(cfgs) + 3
    rows_padded = ((rows + 7) // 8) * 8
    slab = np.zeros((rows_padded, width), np.float32)
    for li, cfg in enumerate(cfgs):
        slab[2 * li, :cfg.cout] = np.asarray(tp["convs"][li]["gamma"])
        slab[2 * li + 1, :cfg.cout] = np.asarray(tp["convs"][li]["beta"])
    slab[2 * len(cfgs), :hidden] = np.asarray(tp["g_fc"])
    slab[2 * len(cfgs) + 1, :hidden] = np.asarray(tp["b_fc"])
    slab[2 * len(cfgs) + 2, :num_classes] = np.asarray(tp["b2"])
    return jnp.asarray(slab)


def prepare_kernel_params(tp, cfgs, in_hw=28, num_classes=10):
    """One-time repack of PyTorch-layout params into MXU/VMEM-friendly constants."""
    spatials = [in_hw]
    for cfg in cfgs:
        spatials.append(_conv_out(spatials[-1], cfg.k, cfg.stride))
    h_last = spatials[-1]
    c_last = cfgs[-1].cout
    linshape = c_last * h_last * h_last
    hidden = linshape // 2

    kp = {"conv_cw": []}
    for li, cfg in enumerate(cfgs):
        # Conv bias dropped: exactly cancelled by the BatchNorm2d mean subtraction.
        kp["conv_cw"].append(
            _conv_weight_to_colmats(tp["convs"][li]["w"], cfg.stride,
                                    spatials[li], spatials[li + 1]))

    # Linear-1 weight: rows re-ordered ONCE from torch's NCHW-flatten order
    # (c, h, w) into per-ho blocks with (wo, cout) row order, so the in-kernel
    # flatten is just contiguous row-block matmuls (no runtime transpose).
    # Linear-1 bias dropped: cancelled by BatchNorm1d mean subtraction.
    w1b = tp["w1t"].reshape(c_last, h_last, h_last, hidden)        # (c, ho, wo, hid)
    w1b = jnp.transpose(w1b, (1, 2, 0, 3)).reshape(h_last, h_last * c_last, hidden)
    kp["w1_blocks"] = w1b                                           # (Ho, Wo*Cout, hidden)
    kp["w2"] = tp["w2t"]                                            # (hidden, classes)
    kp["slab"] = _pack_param_slab(tp, cfgs, hidden, num_classes)
    return kp


# ---------------------------------------------------------------------------
# Forward (single pallas_call)
# ---------------------------------------------------------------------------
def make_cnet_forward(cfgs, in_hw=28, num_classes=10):
    cfgs = tuple(cfgs)                      # static Python config (not in the pytree)
    spatials = [in_hw]
    for cfg in cfgs:
        spatials.append(_conv_out(spatials[-1], cfg.k, cfg.stride))
    h_last = spatials[-1]
    linshape = cfgs[-1].cout * h_last * h_last
    hidden = linshape // 2

    @jax.jit
    def forward(kp, x_nchw):
        n, cin, hh, ww = x_nchw.shape       # static at trace time
        assert hh == in_hw and ww == in_hw and cin == cfgs[0].cin
        x32 = x_nchw.astype(jnp.float32)
        # Image-matrix layout: rows (h, n), cols (w, c).  Wrapper-side layout
        # plumbing only (6 KB); everything else happens inside the kernel.
        x_img = jnp.transpose(x32, (2, 0, 3, 1)).reshape(in_hw * n, in_hw * cin)

        # Constant 0/1 row-gather matrices (geometry + batch only; trace-time consts).
        r_mats = [jnp.asarray(_build_row_gather(cfg.k, cfg.stride,
                                                spatials[li], spatials[li + 1], n))
                  for li, cfg in enumerate(cfgs)]

        kernel = _make_fused_kernel(cfgs, spatials, n, hidden, num_classes)

        inputs = [x_img]
        for li in range(len(cfgs)):
            inputs += [r_mats[li], kp["conv_cw"][li]]
        inputs += [kp["w1_blocks"], kp["w2"], kp["slab"]]
        in_specs = [_full_spec(a.shape) for a in inputs]

        # Advisory cost estimate so XLA schedules the surrounding layout ops
        # around (not serialized against) the custom call.
        flops = 0
        rows_in, cols_in = in_hw * n, in_hw * cfgs[0].cin
        for li, cfg in enumerate(cfgs):
            ho = spatials[li + 1]
            rows_out, cols_out = ho * n, ho * cfg.cout
            flops += 2 * cfg.k * (rows_out * rows_in * cols_in
                                  + rows_out * cols_in * cols_out)
            rows_in, cols_in = rows_out, cols_out
        flops += 2 * n * linshape * hidden + 2 * n * hidden * num_classes
        bytes_accessed = sum(int(np.prod(a.shape)) * 4 for a in inputs) \
            + n * num_classes * 4
        transcendentals = n * num_classes + sum(c.cout for c in cfgs) + hidden

        return pl.pallas_call(
            kernel,
            out_shape=jax.ShapeDtypeStruct((n, num_classes), jnp.float32),
            grid=(1,),
            in_specs=in_specs,
            # Final (N, classes) output is inherently lane-sparse; it is the only
            # HBM store the kernel makes (all intermediates stay in VMEM).
            out_specs=_full_spec((n, num_classes)),
            compiler_params=pltpu.CompilerParams(
                dimension_semantics=("arbitrary",),
                vmem_limit_bytes=32 * 1024 * 1024),
            cost_estimate=pl.CostEstimate(flops=int(flops),
                                          transcendentals=int(transcendentals),
                                          bytes_accessed=int(bytes_accessed)),
        )(*inputs)

    return forward


# ---------------------------------------------------------------------------
# Pure-JAX reference of the PyTorch forward (training-mode BN), for parity check
# ---------------------------------------------------------------------------
def reference_forward(tp, cfgs, x_nchw):
    y = x_nchw.astype(jnp.float32)
    for cfg, lp in zip(cfgs, tp["convs"]):
        y = lax.conv_general_dilated(y, lp["w"],
                                     window_strides=(cfg.stride, cfg.stride),
                                     padding="VALID",
                                     dimension_numbers=("NCHW", "OIHW", "NCHW"))
        y = y + lp["b"].reshape(1, -1, 1, 1)
        mean = jnp.mean(y, axis=(0, 2, 3), keepdims=True)
        var = jnp.mean((y - mean) ** 2, axis=(0, 2, 3), keepdims=True)
        y = (y - mean) * lax.rsqrt(var + EPS)
        y = y * lp["gamma"].reshape(1, -1, 1, 1) + lp["beta"].reshape(1, -1, 1, 1)
        y = jnp.maximum(y, 0.0)
    y = y.reshape(y.shape[0], -1)                       # torch.flatten(start_dim=1) on NCHW
    h = y @ tp["w1t"] + tp["b1"][None, :]
    mean = jnp.mean(h, axis=0, keepdims=True)
    var = jnp.mean((h - mean) ** 2, axis=0, keepdims=True)
    h = (h - mean) * lax.rsqrt(var + EPS) * tp["g_fc"][None, :] + tp["b_fc"][None, :]
    h = jnp.maximum(h, 0.0)
    logits = h @ tp["w2t"] + tp["b2"][None, :]
    return jax.nn.softmax(logits, axis=1)


# ---------------------------------------------------------------------------
if __name__ == "__main__":
    key = jax.random.PRNGKey(0)
    # c_layers = [[in_ch, out_ch, kernel, stride], ...]; the module is built
    # around a 1x28x28 input (it probes shapes with torch.rand(1, 1, 28, 28)).
    c_layers = [ConvCfg(1, 8, 3, 2), ConvCfg(8, 16, 3, 2)]
    num_classes = 10
    batch = 2

    kp_key, kx = jax.random.split(key)
    tparams = init_torch_params(kp_key, c_layers, num_classes=num_classes, in_hw=28)
    kparams = prepare_kernel_params(tparams, c_layers, in_hw=28, num_classes=num_classes)
    x = jax.random.normal(kx, (batch, 1, 28, 28), jnp.float32)      # NCHW (PyTorch layout)

    forward = make_cnet_forward(c_layers, in_hw=28, num_classes=num_classes)
    out = jax.block_until_ready(forward(kparams, x))

    assert out.shape == (batch, num_classes)
    row_sums = jnp.sum(out, axis=1)
    assert bool(jnp.all(jnp.abs(row_sums - 1.0) < 1e-4))            # exact softmax rows
    assert bool(jnp.all(out >= 0.0))

    # Parity with a pure-JAX implementation of the PyTorch forward (including the
    # conv / linear-1 biases that the kernel folds into the BatchNorm layers).
    ref = jax.block_until_ready(reference_forward(tparams, c_layers, x))
    assert bool(jnp.allclose(out, ref, atol=5e-3, rtol=1e-2))

    print("KERNEL_OK")
</pallas_src>

<mosaic_0001>
module attributes {stable_mosaic.version = 11 : i64} {
  func.func @kernel(%arg0: i32, %arg1: memref<56x28xf32, #tpu.memory_space<vmem>>, %arg2: memref<3x26x56xf32, #tpu.memory_space<vmem>>, %arg3: memref<3x28x104xf32, #tpu.memory_space<vmem>>, %arg4: memref<3x12x26xf32, #tpu.memory_space<vmem>>, %arg5: memref<3x104x96xf32, #tpu.memory_space<vmem>>, %arg6: memref<6x96x288xf32, #tpu.memory_space<vmem>>, %arg7: memref<288x10xf32, #tpu.memory_space<vmem>>, %arg8: memref<8x288xf32, #tpu.memory_space<vmem>>, %arg9: memref<2x10xf32, #tpu.memory_space<vmem>>) attributes {dimension_semantics = [#tpu.dimension_semantics<arbitrary>], iteration_bounds = array<i64: 1>, scalar_prefetch = 0 : i64, scratch_operands = 0 : i64, tpu.core_type = #tpu.core_type<tc>, window_params = [{pipeline_mode = #tpu.pipeline_mode<synchronous>, transform_indices = @transform_0, window_bounds = array<i64: 56, 28>}, {pipeline_mode = #tpu.pipeline_mode<synchronous>, transform_indices = @transform_1, window_bounds = array<i64: 3, 26, 56>}, {pipeline_mode = #tpu.pipeline_mode<synchronous>, transform_indices = @transform_2, window_bounds = array<i64: 3, 28, 104>}, {pipeline_mode = #tpu.pipeline_mode<synchronous>, transform_indices = @transform_3, window_bounds = array<i64: 3, 12, 26>}, {pipeline_mode = #tpu.pipeline_mode<synchronous>, transform_indices = @transform_4, window_bounds = array<i64: 3, 104, 96>}, {pipeline_mode = #tpu.pipeline_mode<synchronous>, transform_indices = @transform_5, window_bounds = array<i64: 6, 96, 288>}, {pipeline_mode = #tpu.pipeline_mode<synchronous>, transform_indices = @transform_6, window_bounds = array<i64: 288, 10>}, {pipeline_mode = #tpu.pipeline_mode<synchronous>, transform_indices = @transform_7, window_bounds = array<i64: 8, 288>}, {pipeline_mode = #tpu.pipeline_mode<synchronous>, transform_indices = @transform_8, window_bounds = array<i64: 2, 10>}]} {
    %c0 = arith.constant 0 : index
    %c0_0 = arith.constant 0 : index
    %0 = vector.load %arg8[%c0, %c0_0] : memref<8x288xf32, #tpu.memory_space<vmem>>, vector<8x288xf32>
    %c0_1 = arith.constant 0 : index
    %c0_2 = arith.constant 0 : index
    %1 = vector.load %arg1[%c0_1, %c0_2] : memref<56x28xf32, #tpu.memory_space<vmem>>, vector<56x28xf32>
    %c0_3 = arith.constant 0 : index
    %c0_4 = arith.constant 0 : index
    %c0_5 = arith.constant 0 : index
    %2 = vector.load %arg2[%c0_3, %c0_4, %c0_5] : memref<3x26x56xf32, #tpu.memory_space<vmem>>, vector<1x26x56xf32>
    %3 = vector.shape_cast %2 : vector<1x26x56xf32> to vector<26x56xf32>
    %cst = arith.constant dense<0.000000e+00> : vector<26x28xf32>
    %4 = tpu.matmul %3, %1, %cst {dimension_numbers = #tpu.dot_dimension_numbers<[1], [0], [0], [1], [0, 0, 1, 1], [], []>} : vector<26x56xf32>, vector<56x28xf32>, vector<26x28xf32> -> vector<26x28xf32>
    %c0_6 = arith.constant 0 : index
    %c0_7 = arith.constant 0 : index
    %c0_8 = arith.constant 0 : index
    %5 = vector.load %arg3[%c0_6, %c0_7, %c0_8] : memref<3x28x104xf32, #tpu.memory_space<vmem>>, vector<1x28x104xf32>
    %6 = vector.shape_cast %5 : vector<1x28x104xf32> to vector<28x104xf32>
    %cst_9 = arith.constant dense<0.000000e+00> : vector<26x104xf32>
    %7 = tpu.matmul %4, %6, %cst_9 {dimension_numbers = #tpu.dot_dimension_numbers<[1], [0], [0], [1], [0, 0, 1, 1], [], []>} : vector<26x28xf32>, vector<28x104xf32>, vector<26x104xf32> -> vector<26x104xf32>
    %c1 = arith.constant 1 : index
    %c0_10 = arith.constant 0 : index
    %c0_11 = arith.constant 0 : index
    %8 = vector.load %arg2[%c1, %c0_10, %c0_11] : memref<3x26x56xf32, #tpu.memory_space<vmem>>, vector<1x26x56xf32>
    %9 = vector.shape_cast %8 : vector<1x26x56xf32> to vector<26x56xf32>
    %cst_12 = arith.constant dense<0.000000e+00> : vector<26x28xf32>
    %10 = tpu.matmul %9, %1, %cst_12 {dimension_numbers = #tpu.dot_dimension_numbers<[1], [0], [0], [1], [0, 0, 1, 1], [], []>} : vector<26x56xf32>, vector<56x28xf32>, vector<26x28xf32> -> vector<26x28xf32>
    %c1_13 = arith.constant 1 : index
    %c0_14 = arith.constant 0 : index
    %c0_15 = arith.constant 0 : index
    %11 = vector.load %arg3[%c1_13, %c0_14, %c0_15] : memref<3x28x104xf32, #tpu.memory_space<vmem>>, vector<1x28x104xf32>
    %12 = vector.shape_cast %11 : vector<1x28x104xf32> to vector<28x104xf32>
    %cst_16 = arith.constant dense<0.000000e+00> : vector<26x104xf32>
    %13 = tpu.matmul %10, %12, %cst_16 {dimension_numbers = #tpu.dot_dimension_numbers<[1], [0], [0], [1], [0, 0, 1, 1], [], []>} : vector<26x28xf32>, vector<28x104xf32>, vector<26x104xf32> -> vector<26x104xf32>
    %14 = arith.addf %7, %13 : vector<26x104xf32>
    %c2 = arith.constant 2 : index
    %c0_17 = arith.constant 0 : index
    %c0_18 = arith.constant 0 : index
    %15 = vector.load %arg2[%c2, %c0_17, %c0_18] : memref<3x26x56xf32, #tpu.memory_space<vmem>>, vector<1x26x56xf32>
    %16 = vector.shape_cast %15 : vector<1x26x56xf32> to vector<26x56xf32>
    %cst_19 = arith.constant dense<0.000000e+00> : vector<26x28xf32>
    %17 = tpu.matmul %16, %1, %cst_19 {dimension_numbers = #tpu.dot_dimension_numbers<[1], [0], [0], [1], [0, 0, 1, 1], [], []>} : vector<26x56xf32>, vector<56x28xf32>, vector<26x28xf32> -> vector<26x28xf32>
    %c2_20 = arith.constant 2 : index
    %c0_21 = arith.constant 0 : index
    %c0_22 = arith.constant 0 : index
    %18 = vector.load %arg3[%c2_20, %c0_21, %c0_22] : memref<3x28x104xf32, #tpu.memory_space<vmem>>, vector<1x28x104xf32>
    %19 = vector.shape_cast %18 : vector<1x28x104xf32> to vector<28x104xf32>
    %cst_23 = arith.constant dense<0.000000e+00> : vector<26x104xf32>
    %20 = tpu.matmul %17, %19, %cst_23 {dimension_numbers = #tpu.dot_dimension_numbers<[1], [0], [0], [1], [0, 0, 1, 1], [], []>} : vector<26x28xf32>, vector<28x104xf32>, vector<26x104xf32> -> vector<26x104xf32>
    %21 = arith.addf %14, %20 : vector<26x104xf32>
    %cst_24 = arith.constant dense<0.000000e+00> : vector<104xf32>
    %22 = vector.multi_reduction <add>, %21, %cst_24 [0] : vector<26x104xf32> to vector<104xf32>
    %23 = vector.shape_cast %22 : vector<104xf32> to vector<1x104xf32>
    %24 = vector.extract_strided_slice %23 {offsets = [0, 0], sizes = [1, 8], strides = [1, 1]} : vector<1x104xf32> to vector<1x8xf32>
    %25 = vector.extract_strided_slice %23 {offsets = [0, 8], sizes = [1, 8], strides = [1, 1]} : vector<1x104xf32> to vector<1x8xf32>
    %26 = arith.addf %24, %25 : vector<1x8xf32>
    %27 = vector.extract_strided_slice %23 {offsets = [0, 16], sizes = [1, 8], strides = [1, 1]} : vector<1x104xf32> to vector<1x8xf32>
    %28 = arith.addf %26, %27 : vector<1x8xf32>
    %29 = vector.extract_strided_slice %23 {offsets = [0, 24], sizes = [1, 8], strides = [1, 1]} : vector<1x104xf32> to vector<1x8xf32>
    %30 = arith.addf %28, %29 : vector<1x8xf32>
    %31 = vector.extract_strided_slice %23 {offsets = [0, 32], sizes = [1, 8], strides = [1, 1]} : vector<1x104xf32> to vector<1x8xf32>
    %32 = arith.addf %30, %31 : vector<1x8xf32>
    %33 = vector.extract_strided_slice %23 {offsets = [0, 40], sizes = [1, 8], strides = [1, 1]} : vector<1x104xf32> to vector<1x8xf32>
    %34 = arith.addf %32, %33 : vector<1x8xf32>
    %35 = vector.extract_strided_slice %23 {offsets = [0, 48], sizes = [1, 8], strides = [1, 1]} : vector<1x104xf32> to vector<1x8xf32>
    %36 = arith.addf %34, %35 : vector<1x8xf32>
    %37 = vector.extract_strided_slice %23 {offsets = [0, 56], sizes = [1, 8], strides = [1, 1]} : vector<1x104xf32> to vector<1x8xf32>
    %38 = arith.addf %36, %37 : vector<1x8xf32>
    %39 = vector.extract_strided_slice %23 {offsets = [0, 64], sizes = [1, 8], strides = [1, 1]} : vector<1x104xf32> to vector<1x8xf32>
    %40 = arith.addf %38, %39 : vector<1x8xf32>
    %41 = vector.extract_strided_slice %23 {offsets = [0, 72], sizes = [1, 8], strides = [1, 1]} : vector<1x104xf32> to vector<1x8xf32>
    %42 = arith.addf %40, %41 : vector<1x8xf32>
    %43 = vector.extract_strided_slice %23 {offsets = [0, 80], sizes = [1, 8], strides = [1, 1]} : vector<1x104xf32> to vector<1x8xf32>
    %44 = arith.addf %42, %43 : vector<1x8xf32>
    %45 = vector.extract_strided_slice %23 {offsets = [0, 88], sizes = [1, 8], strides = [1, 1]} : vector<1x104xf32> to vector<1x8xf32>
    %46 = arith.addf %44, %45 : vector<1x8xf32>
    %47 = vector.extract_strided_slice %23 {offsets = [0, 96], sizes = [1, 8], strides = [1, 1]} : vector<1x104xf32> to vector<1x8xf32>
    %48 = arith.addf %46, %47 : vector<1x8xf32>
    %cst_25 = arith.constant 3.380000e+02 : f32
    %49 = vector.broadcast %cst_25 : f32 to vector<1x8xf32>
    %50 = arith.divf %48, %49 : vector<1x8xf32>
    %51 = tpu.concatenate %50, %50, %50, %50, %50, %50, %50, %50, %50, %50, %50, %50, %50 in 1 : vector<1x8xf32>, vector<1x8xf32>, vector<1x8xf32>, vector<1x8xf32>, vector<1x8xf32>, vector<1x8xf32>, vector<1x8xf32>, vector<1x8xf32>, vector<1x8xf32>, vector<1x8xf32>, vector<1x8xf32>, vector<1x8xf32>, vector<1x8xf32> -> vector<1x104xf32>
    %52 = vector.broadcast %51 : vector<1x104xf32> to vector<26x104xf32>
    %53 = arith.subf %21, %52 : vector<26x104xf32>
    %54 = arith.mulf %53, %53 : vector<26x104xf32>
    %cst_26 = arith.constant dense<0.000000e+00> : vector<104xf32>
    %55 = vector.multi_reduction <add>, %54, %cst_26 [0] : vector<26x104xf32> to vector<104xf32>
    %56 = vector.shape_cast %55 : vector<104xf32> to vector<1x104xf32>
    %57 = vector.extract_strided_slice %56 {offsets = [0, 0], sizes = [1, 8], strides = [1, 1]} : vector<1x104xf32> to vector<1x8xf32>
    %58 = vector.extract_strided_slice %56 {offsets = [0, 8], sizes = [1, 8], strides = [1, 1]} : vector<1x104xf32> to vector<1x8xf32>
    %59 = arith.addf %57, %58 : vector<1x8xf32>
    %60 = vector.extract_strided_slice %56 {offsets = [0, 16], sizes = [1, 8], strides = [1, 1]} : vector<1x104xf32> to vector<1x8xf32>
    %61 = arith.addf %59, %60 : vector<1x8xf32>
    %62 = vector.extract_strided_slice %56 {offsets = [0, 24], sizes = [1, 8], strides = [1, 1]} : vector<1x104xf32> to vector<1x8xf32>
    %63 = arith.addf %61, %62 : vector<1x8xf32>
    %64 = vector.extract_strided_slice %56 {offsets = [0, 32], sizes = [1, 8], strides = [1, 1]} : vector<1x104xf32> to vector<1x8xf32>
    %65 = arith.addf %63, %64 : vector<1x8xf32>
    %66 = vector.extract_strided_slice %56 {offsets = [0, 40], sizes = [1, 8], strides = [1, 1]} : vector<1x104xf32> to vector<1x8xf32>
    %67 = arith.addf %65, %66 : vector<1x8xf32>
    %68 = vector.extract_strided_slice %56 {offsets = [0, 48], sizes = [1, 8], strides = [1, 1]} : vector<1x104xf32> to vector<1x8xf32>
    %69 = arith.addf %67, %68 : vector<1x8xf32>
    %70 = vector.extract_strided_slice %56 {offsets = [0, 56], sizes = [1, 8], strides = [1, 1]} : vector<1x104xf32> to vector<1x8xf32>
    %71 = arith.addf %69, %70 : vector<1x8xf32>
    %72 = vector.extract_strided_slice %56 {offsets = [0, 64], sizes = [1, 8], strides = [1, 1]} : vector<1x104xf32> to vector<1x8xf32>
    %73 = arith.addf %71, %72 : vector<1x8xf32>
    %74 = vector.extract_strided_slice %56 {offsets = [0, 72], sizes = [1, 8], strides = [1, 1]} : vector<1x104xf32> to vector<1x8xf32>
    %75 = arith.addf %73, %74 : vector<1x8xf32>
    %76 = vector.extract_strided_slice %56 {offsets = [0, 80], sizes = [1, 8], strides = [1, 1]} : vector<1x104xf32> to vector<1x8xf32>
    %77 = arith.addf %75, %76 : vector<1x8xf32>
    %78 = vector.extract_strided_slice %56 {offsets = [0, 88], sizes = [1, 8], strides = [1, 1]} : vector<1x104xf32> to vector<1x8xf32>
    %79 = arith.addf %77, %78 : vector<1x8xf32>
    %80 = vector.extract_strided_slice %56 {offsets = [0, 96], sizes = [1, 8], strides = [1, 1]} : vector<1x104xf32> to vector<1x8xf32>
    %81 = arith.addf %79, %80 : vector<1x8xf32>
    %cst_27 = arith.constant 3.380000e+02 : f32
    %82 = vector.broadcast %cst_27 : f32 to vector<1x8xf32>
    %83 = arith.divf %81, %82 : vector<1x8xf32>
    %84 = vector.extract_strided_slice %0 {offsets = [0, 0], sizes = [1, 8], strides = [1, 1]} : vector<8x288xf32> to vector<1x8xf32>
    %cst_28 = arith.constant 9.99999974E-6 : f32
    %85 = vector.broadcast %cst_28 : f32 to vector<1x8xf32>
    %86 = arith.addf %83, %85 : vector<1x8xf32>
    %87 = math.rsqrt %86 : vector<1x8xf32>
    %88 = arith.mulf %84, %87 : vector<1x8xf32>
    %89 = vector.extract_strided_slice %0 {offsets = [1, 0], sizes = [1, 8], strides = [1, 1]} : vector<8x288xf32> to vector<1x8xf32>
    %90 = tpu.concatenate %88, %88, %88, %88, %88, %88, %88, %88, %88, %88, %88, %88, %88 in 1 : vector<1x8xf32>, vector<1x8xf32>, vector<1x8xf32>, vector<1x8xf32>, vector<1x8xf32>, vector<1x8xf32>, vector<1x8xf32>, vector<1x8xf32>, vector<1x8xf32>, vector<1x8xf32>, vector<1x8xf32>, vector<1x8xf32>, vector<1x8xf32> -> vector<1x104xf32>
    %91 = vector.broadcast %90 : vector<1x104xf32> to vector<26x104xf32>
    %92 = arith.mulf %53, %91 : vector<26x104xf32>
    %93 = tpu.concatenate %89, %89, %89, %89, %89, %89, %89, %89, %89, %89, %89, %89, %89 in 1 : vector<1x8xf32>, vector<1x8xf32>, vector<1x8xf32>, vector<1x8xf32>, vector<1x8xf32>, vector<1x8xf32>, vector<1x8xf32>, vector<1x8xf32>, vector<1x8xf32>, vector<1x8xf32>, vector<1x8xf32>, vector<1x8xf32>, vector<1x8xf32> -> vector<1x104xf32>
    %94 = vector.broadcast %93 : vector<1x104xf32> to vector<26x104xf32>
    %95 = arith.addf %92, %94 : vector<26x104xf32>
    %cst_29 = arith.constant 0.000000e+00 : f32
    %96 = vector.broadcast %cst_29 : f32 to vector<26x104xf32>
    %97 = arith.maximumf %95, %96 : vector<26x104xf32>
    %c0_30 = arith.constant 0 : index
    %c0_31 = arith.constant 0 : index
    %c0_32 = arith.constant 0 : index
    %98 = vector.load %arg4[%c0_30, %c0_31, %c0_32] : memref<3x12x26xf32, #tpu.memory_space<vmem>>, vector<1x12x26xf32>
    %99 = vector.shape_cast %98 : vector<1x12x26xf32> to vector<12x26xf32>
    %cst_33 = arith.constant dense<0.000000e+00> : vector<12x104xf32>
    %100 = tpu.matmul %99, %97, %cst_33 {dimension_numbers = #tpu.dot_dimension_numbers<[1], [0], [0], [1], [0, 0, 1, 1], [], []>} : vector<12x26xf32>, vector<26x104xf32>, vector<12x104xf32> -> vector<12x104xf32>
    %c0_34 = arith.constant 0 : index
    %c0_35 = arith.constant 0 : index
    %c0_36 = arith.constant 0 : index
    %101 = vector.load %arg5[%c0_34, %c0_35, %c0_36] : memref<3x104x96xf32, #tpu.memory_space<vmem>>, vector<1x104x96xf32>
    %102 = vector.shape_cast %101 : vector<1x104x96xf32> to vector<104x96xf32>
    %cst_37 = arith.constant dense<0.000000e+00> : vector<12x96xf32>
    %103 = tpu.matmul %100, %102, %cst_37 {dimension_numbers = #tpu.dot_dimension_numbers<[1], [0], [0], [1], [0, 0, 1, 1], [], []>} : vector<12x104xf32>, vector<104x96xf32>, vector<12x96xf32> -> vector<12x96xf32>
    %c1_38 = arith.constant 1 : index
    %c0_39 = arith.constant 0 : index
    %c0_40 = arith.constant 0 : index
    %104 = vector.load %arg4[%c1_38, %c0_39, %c0_40] : memref<3x12x26xf32, #tpu.memory_space<vmem>>, vector<1x12x26xf32>
    %105 = vector.shape_cast %104 : vector<1x12x26xf32> to vector<12x26xf32>
    %cst_41 = arith.constant dense<0.000000e+00> : vector<12x104xf32>
    %106 = tpu.matmul %105, %97, %cst_41 {dimension_numbers = #tpu.dot_dimension_numbers<[1], [0], [0], [1], [0, 0, 1, 1], [], []>} : vector<12x26xf32>, vector<26x104xf32>, vector<12x104xf32> -> vector<12x104xf32>
    %c1_42 = arith.constant 1 : index
    %c0_43 = arith.constant 0 : index
    %c0_44 = arith.constant 0 : index
    %107 = vector.load %arg5[%c1_42, %c0_43, %c0_44] : memref<3x104x96xf32, #tpu.memory_space<vmem>>, vector<1x104x96xf32>
    %108 = vector.shape_cast %107 : vector<1x104x96xf32> to vector<104x96xf32>
    %cst_45 = arith.constant dense<0.000000e+00> : vector<12x96xf32>
    %109 = tpu.matmul %106, %108, %cst_45 {dimension_numbers = #tpu.dot_dimension_numbers<[1], [0], [0], [1], [0, 0, 1, 1], [], []>} : vector<12x104xf32>, vector<104x96xf32>, vector<12x96xf32> -> vector<12x96xf32>
    %110 = arith.addf %103, %109 : vector<12x96xf32>
    %c2_46 = arith.constant 2 : index
    %c0_47 = arith.constant 0 : index
    %c0_48 = arith.constant 0 : index
    %111 = vector.load %arg4[%c2_46, %c0_47, %c0_48] : memref<3x12x26xf32, #tpu.memory_space<vmem>>, vector<1x12x26xf32>
    %112 = vector.shape_cast %111 : vector<1x12x26xf32> to vector<12x26xf32>
    %cst_49 = arith.constant dense<0.000000e+00> : vector<12x104xf32>
    %113 = tpu.matmul %112, %97, %cst_49 {dimension_numbers = #tpu.dot_dimension_numbers<[1], [0], [0], [1], [0, 0, 1, 1], [], []>} : vector<12x26xf32>, vector<26x104xf32>, vector<12x104xf32> -> vector<12x104xf32>
    %c2_50 = arith.constant 2 : index
    %c0_51 = arith.constant 0 : index
    %c0_52 = arith.constant 0 : index
    %114 = vector.load %arg5[%c2_50, %c0_51, %c0_52] : memref<3x104x96xf32, #tpu.memory_space<vmem>>, vector<1x104x96xf32>
    %115 = vector.shape_cast %114 : vector<1x104x96xf32> to vector<104x96xf32>
    %cst_53 = arith.constant dense<0.000000e+00> : vector<12x96xf32>
    %116 = tpu.matmul %113, %115, %cst_53 {dimension_numbers = #tpu.dot_dimension_numbers<[1], [0], [0], [1], [0, 0, 1, 1], [], []>} : vector<12x104xf32>, vector<104x96xf32>, vector<12x96xf32> -> vector<12x96xf32>
    %117 = arith.addf %110, %116 : vector<12x96xf32>
    %cst_54 = arith.constant dense<0.000000e+00> : vector<96xf32>
    %118 = vector.multi_reduction <add>, %117, %cst_54 [0] : vector<12x96xf32> to vector<96xf32>
    %119 = vector.shape_cast %118 : vector<96xf32> to vector<1x96xf32>
    %120 = vector.extract_strided_slice %119 {offsets = [0, 0], sizes = [1, 16], strides = [1, 1]} : vector<1x96xf32> to vector<1x16xf32>
    %121 = vector.extract_strided_slice %119 {offsets = [0, 16], sizes = [1, 16], strides = [1, 1]} : vector<1x96xf32> to vector<1x16xf32>
    %122 = arith.addf %120, %121 : vector<1x16xf32>
    %123 = vector.extract_strided_slice %119 {offsets = [0, 32], sizes = [1, 16], strides = [1, 1]} : vector<1x96xf32> to vector<1x16xf32>
    %124 = arith.addf %122, %123 : vector<1x16xf32>
    %125 = vector.extract_strided_slice %119 {offsets = [0, 48], sizes = [1, 16], strides = [1, 1]} : vector<1x96xf32> to vector<1x16xf32>
    %126 = arith.addf %124, %125 : vector<1x16xf32>
    %127 = vector.extract_strided_slice %119 {offsets = [0, 64], sizes = [1, 16], strides = [1, 1]} : vector<1x96xf32> to vector<1x16xf32>
    %128 = arith.addf %126, %127 : vector<1x16xf32>
    %129 = vector.extract_strided_slice %119 {offsets = [0, 80], sizes = [1, 16], strides = [1, 1]} : vector<1x96xf32> to vector<1x16xf32>
    %130 = arith.addf %128, %129 : vector<1x16xf32>
    %cst_55 = arith.constant 7.200000e+01 : f32
    %131 = vector.broadcast %cst_55 : f32 to vector<1x16xf32>
    %132 = arith.divf %130, %131 : vector<1x16xf32>
    %133 = tpu.concatenate %132, %132, %132, %132, %132, %132 in 1 : vector<1x16xf32>, vector<1x16xf32>, vector<1x16xf32>, vector<1x16xf32>, vector<1x16xf32>, vector<1x16xf32> -> vector<1x96xf32>
    %134 = vector.broadcast %133 : vector<1x96xf32> to vector<12x96xf32>
    %135 = arith.subf %117, %134 : vector<12x96xf32>
    %136 = arith.mulf %135, %135 : vector<12x96xf32>
    %cst_56 = arith.constant dense<0.000000e+00> : vector<96xf32>
    %137 = vector.multi_reduction <add>, %136, %cst_56 [0] : vector<12x96xf32> to vector<96xf32>
    %138 = vector.shape_cast %137 : vector<96xf32> to vector<1x96xf32>
    %139 = vector.extract_strided_slice %138 {offsets = [0, 0], sizes = [1, 16], strides = [1, 1]} : vector<1x96xf32> to vector<1x16xf32>
    %140 = vector.extract_strided_slice %138 {offsets = [0, 16], sizes = [1, 16], strides = [1, 1]} : vector<1x96xf32> to vector<1x16xf32>
    %141 = arith.addf %139, %140 : vector<1x16xf32>
    %142 = vector.extract_strided_slice %138 {offsets = [0, 32], sizes = [1, 16], strides = [1, 1]} : vector<1x96xf32> to vector<1x16xf32>
    %143 = arith.addf %141, %142 : vector<1x16xf32>
    %144 = vector.extract_strided_slice %138 {offsets = [0, 48], sizes = [1, 16], strides = [1, 1]} : vector<1x96xf32> to vector<1x16xf32>
    %145 = arith.addf %143, %144 : vector<1x16xf32>
    %146 = vector.extract_strided_slice %138 {offsets = [0, 64], sizes = [1, 16], strides = [1, 1]} : vector<1x96xf32> to vector<1x16xf32>
    %147 = arith.addf %145, %146 : vector<1x16xf32>
    %148 = vector.extract_strided_slice %138 {offsets = [0, 80], sizes = [1, 16], strides = [1, 1]} : vector<1x96xf32> to vector<1x16xf32>
    %149 = arith.addf %147, %148 : vector<1x16xf32>
    %cst_57 = arith.constant 7.200000e+01 : f32
    %150 = vector.broadcast %cst_57 : f32 to vector<1x16xf32>
    %151 = arith.divf %149, %150 : vector<1x16xf32>
    %152 = vector.extract_strided_slice %0 {offsets = [2, 0], sizes = [1, 16], strides = [1, 1]} : vector<8x288xf32> to vector<1x16xf32>
    %cst_58 = arith.constant 9.99999974E-6 : f32
    %153 = vector.broadcast %cst_58 : f32 to vector<1x16xf32>
    %154 = arith.addf %151, %153 : vector<1x16xf32>
    %155 = math.rsqrt %154 : vector<1x16xf32>
    %156 = arith.mulf %152, %155 : vector<1x16xf32>
    %157 = vector.extract_strided_slice %0 {offsets = [3, 0], sizes = [1, 16], strides = [1, 1]} : vector<8x288xf32> to vector<1x16xf32>
    %158 = tpu.concatenate %156, %156, %156, %156, %156, %156 in 1 : vector<1x16xf32>, vector<1x16xf32>, vector<1x16xf32>, vector<1x16xf32>, vector<1x16xf32>, vector<1x16xf32> -> vector<1x96xf32>
    %159 = vector.broadcast %158 : vector<1x96xf32> to vector<12x96xf32>
    %160 = arith.mulf %135, %159 : vector<12x96xf32>
    %161 = tpu.concatenate %157, %157, %157, %157, %157, %157 in 1 : vector<1x16xf32>, vector<1x16xf32>, vector<1x16xf32>, vector<1x16xf32>, vector<1x16xf32>, vector<1x16xf32> -> vector<1x96xf32>
    %162 = vector.broadcast %161 : vector<1x96xf32> to vector<12x96xf32>
    %163 = arith.addf %160, %162 : vector<12x96xf32>
    %cst_59 = arith.constant 0.000000e+00 : f32
    %164 = vector.broadcast %cst_59 : f32 to vector<12x96xf32>
    %165 = arith.maximumf %163, %164 : vector<12x96xf32>
    %166 = vector.extract_strided_slice %165 {offsets = [0, 0], sizes = [2, 96], strides = [1, 1]} : vector<12x96xf32> to vector<2x96xf32>
    %c0_60 = arith.constant 0 : index
    %c0_61 = arith.constant 0 : index
    %c0_62 = arith.constant 0 : index
    %167 = vector.load %arg6[%c0_60, %c0_61, %c0_62] : memref<6x96x288xf32, #tpu.memory_space<vmem>>, vector<1x96x288xf32>
    %168 = vector.shape_cast %167 : vector<1x96x288xf32> to vector<96x288xf32>
    %cst_63 = arith.constant dense<0.000000e+00> : vector<2x288xf32>
    %169 = tpu.matmul %166, %168, %cst_63 {dimension_numbers = #tpu.dot_dimension_numbers<[1], [0], [0], [1], [0, 0, 1, 1], [], []>} : vector<2x96xf32>, vector<96x288xf32>, vector<2x288xf32> -> vector<2x288xf32>
    %170 = vector.extract_strided_slice %165 {offsets = [2, 0], sizes = [2, 96], strides = [1, 1]} : vector<12x96xf32> to vector<2x96xf32>
    %c1_64 = arith.constant 1 : index
    %c0_65 = arith.constant 0 : index
    %c0_66 = arith.constant 0 : index
    %171 = vector.load %arg6[%c1_64, %c0_65, %c0_66] : memref<6x96x288xf32, #tpu.memory_space<vmem>>, vector<1x96x288xf32>
    %172 = vector.shape_cast %171 : vector<1x96x288xf32> to vector<96x288xf32>
    %cst_67 = arith.constant dense<0.000000e+00> : vector<2x288xf32>
    %173 = tpu.matmul %170, %172, %cst_67 {dimension_numbers = #tpu.dot_dimension_numbers<[1], [0], [0], [1], [0, 0, 1, 1], [], []>} : vector<2x96xf32>, vector<96x288xf32>, vector<2x288xf32> -> vector<2x288xf32>
    %174 = arith.addf %169, %173 : vector<2x288xf32>
    %175 = vector.extract_strided_slice %165 {offsets = [4, 0], sizes = [2, 96], strides = [1, 1]} : vector<12x96xf32> to vector<2x96xf32>
    %c2_68 = arith.constant 2 : index
    %c0_69 = arith.constant 0 : index
    %c0_70 = arith.constant 0 : index
    %176 = vector.load %arg6[%c2_68, %c0_69, %c0_70] : memref<6x96x288xf32, #tpu.memory_space<vmem>>, vector<1x96x288xf32>
    %177 = vector.shape_cast %176 : vector<1x96x288xf32> to vector<96x288xf32>
    %cst_71 = arith.constant dense<0.000000e+00> : vector<2x288xf32>
    %178 = tpu.matmul %175, %177, %cst_71 {dimension_numbers = #tpu.dot_dimension_numbers<[1], [0], [0], [1], [0, 0, 1, 1], [], []>} : vector<2x96xf32>, vector<96x288xf32>, vector<2x288xf32> -> vector<2x288xf32>
    %179 = arith.addf %174, %178 : vector<2x288xf32>
    %180 = vector.extract_strided_slice %165 {offsets = [6, 0], sizes = [2, 96], strides = [1, 1]} : vector<12x96xf32> to vector<2x96xf32>
    %c3 = arith.constant 3 : index
    %c0_72 = arith.constant 0 : index
    %c0_73 = arith.constant 0 : index
    %181 = vector.load %arg6[%c3, %c0_72, %c0_73] : memref<6x96x288xf32, #tpu.memory_space<vmem>>, vector<1x96x288xf32>
    %182 = vector.shape_cast %181 : vector<1x96x288xf32> to vector<96x288xf32>
    %cst_74 = arith.constant dense<0.000000e+00> : vector<2x288xf32>
    %183 = tpu.matmul %180, %182, %cst_74 {dimension_numbers = #tpu.dot_dimension_numbers<[1], [0], [0], [1], [0, 0, 1, 1], [], []>} : vector<2x96xf32>, vector<96x288xf32>, vector<2x288xf32> -> vector<2x288xf32>
    %184 = arith.addf %179, %183 : vector<2x288xf32>
    %185 = vector.extract_strided_slice %165 {offsets = [8, 0], sizes = [2, 96], strides = [1, 1]} : vector<12x96xf32> to vector<2x96xf32>
    %c4 = arith.constant 4 : index
    %c0_75 = arith.constant 0 : index
    %c0_76 = arith.constant 0 : index
    %186 = vector.load %arg6[%c4, %c0_75, %c0_76] : memref<6x96x288xf32, #tpu.memory_space<vmem>>, vector<1x96x288xf32>
    %187 = vector.shape_cast %186 : vector<1x96x288xf32> to vector<96x288xf32>
    %cst_77 = arith.constant dense<0.000000e+00> : vector<2x288xf32>
    %188 = tpu.matmul %185, %187, %cst_77 {dimension_numbers = #tpu.dot_dimension_numbers<[1], [0], [0], [1], [0, 0, 1, 1], [], []>} : vector<2x96xf32>, vector<96x288xf32>, vector<2x288xf32> -> vector<2x288xf32>
    %189 = arith.addf %184, %188 : vector<2x288xf32>
    %190 = vector.extract_strided_slice %165 {offsets = [10, 0], sizes = [2, 96], strides = [1, 1]} : vector<12x96xf32> to vector<2x96xf32>
    %c5 = arith.constant 5 : index
    %c0_78 = arith.constant 0 : index
    %c0_79 = arith.constant 0 : index
    %191 = vector.load %arg6[%c5, %c0_78, %c0_79] : memref<6x96x288xf32, #tpu.memory_space<vmem>>, vector<1x96x288xf32>
    %192 = vector.shape_cast %191 : vector<1x96x288xf32> to vector<96x288xf32>
    %cst_80 = arith.constant dense<0.000000e+00> : vector<2x288xf32>
    %193 = tpu.matmul %190, %192, %cst_80 {dimension_numbers = #tpu.dot_dimension_numbers<[1], [0], [0], [1], [0, 0, 1, 1], [], []>} : vector<2x96xf32>, vector<96x288xf32>, vector<2x288xf32> -> vector<2x288xf32>
    %194 = arith.addf %189, %193 : vector<2x288xf32>
    %cst_81 = arith.constant dense<0.000000e+00> : vector<288xf32>
    %195 = vector.multi_reduction <add>, %194, %cst_81 [0] : vector<2x288xf32> to vector<288xf32>
    %196 = vector.shape_cast %195 : vector<288xf32> to vector<1x288xf32>
    %cst_82 = arith.constant 2.000000e+00 : f32
    %197 = vector.broadcast %cst_82 : f32 to vector<1x288xf32>
    %198 = arith.divf %196, %197 : vector<1x288xf32>
    %199 = vector.broadcast %198 : vector<1x288xf32> to vector<2x288xf32>
    %200 = arith.subf %194, %199 : vector<2x288xf32>
    %201 = arith.mulf %200, %200 : vector<2x288xf32>
    %cst_83 = arith.constant dense<0.000000e+00> : vector<288xf32>
    %202 = vector.multi_reduction <add>, %201, %cst_83 [0] : vector<2x288xf32> to vector<288xf32>
    %203 = vector.shape_cast %202 : vector<288xf32> to vector<1x288xf32>
    %cst_84 = arith.constant 2.000000e+00 : f32
    %204 = vector.broadcast %cst_84 : f32 to vector<1x288xf32>
    %205 = arith.divf %203, %204 : vector<1x288xf32>
    %206 = vector.broadcast %198 : vector<1x288xf32> to vector<2x288xf32>
    %207 = arith.subf %194, %206 : vector<2x288xf32>
    %cst_85 = arith.constant 9.99999974E-6 : f32
    %208 = vector.broadcast %cst_85 : f32 to vector<1x288xf32>
    %209 = arith.addf %205, %208 : vector<1x288xf32>
    %210 = math.rsqrt %209 : vector<1x288xf32>
    %211 = vector.broadcast %210 : vector<1x288xf32> to vector<2x288xf32>
    %212 = arith.mulf %207, %211 : vector<2x288xf32>
    %213 = vector.extract_strided_slice %0 {offsets = [4, 0], sizes = [1, 288], strides = [1, 1]} : vector<8x288xf32> to vector<1x288xf32>
    %214 = vector.broadcast %213 : vector<1x288xf32> to vector<2x288xf32>
    %215 = arith.mulf %212, %214 : vector<2x288xf32>
    %216 = vector.extract_strided_slice %0 {offsets = [5, 0], sizes = [1, 288], strides = [1, 1]} : vector<8x288xf32> to vector<1x288xf32>
    %217 = vector.broadcast %216 : vector<1x288xf32> to vector<2x288xf32>
    %218 = arith.addf %215, %217 : vector<2x288xf32>
    %cst_86 = arith.constant 0.000000e+00 : f32
    %219 = vector.broadcast %cst_86 : f32 to vector<2x288xf32>
    %220 = arith.maximumf %218, %219 : vector<2x288xf32>
    %c0_87 = arith.constant 0 : index
    %c0_88 = arith.constant 0 : index
    %221 = vector.load %arg7[%c0_87, %c0_88] : memref<288x10xf32, #tpu.memory_space<vmem>>, vector<288x10xf32>
    %cst_89 = arith.constant dense<0.000000e+00> : vector<2x10xf32>
    %222 = tpu.matmul %220, %221, %cst_89 {dimension_numbers = #tpu.dot_dimension_numbers<[1], [0], [0], [1], [0, 0, 1, 1], [], []>} : vector<2x288xf32>, vector<288x10xf32>, vector<2x10xf32> -> vector<2x10xf32>
    %223 = vector.extract_strided_slice %0 {offsets = [6, 0], sizes = [1, 10], strides = [1, 1]} : vector<8x288xf32> to vector<1x10xf32>
    %224 = vector.broadcast %223 : vector<1x10xf32> to vector<2x10xf32>
    %225 = arith.addf %222, %224 : vector<2x10xf32>
    %cst_90 = arith.constant dense<0xFF800000> : vector<2xf32>
    %226 = vector.multi_reduction <maximumf>, %225, %cst_90 [1] : vector<2x10xf32> to vector<2xf32>
    %227 = vector.shape_cast %226 : vector<2xf32> to vector<2x1xf32>
    %228 = vector.broadcast %227 : vector<2x1xf32> to vector<2x10xf32>
    %229 = arith.subf %225, %228 : vector<2x10xf32>
    %230 = math.exp %229 : vector<2x10xf32>
    %cst_91 = arith.constant dense<0.000000e+00> : vector<2xf32>
    %231 = vector.multi_reduction <add>, %230, %cst_91 [1] : vector<2x10xf32> to vector<2xf32>
    %232 = vector.shape_cast %231 : vector<2xf32> to vector<2x1xf32>
    %233 = vector.broadcast %232 : vector<2x1xf32> to vector<2x10xf32>
    %234 = arith.divf %230, %233 : vector<2x10xf32>
    %c0_92 = arith.constant 0 : index
    %c0_93 = arith.constant 0 : index
    %235 = vector.load %arg9[%c0_92, %c0_93] : memref<2x10xf32, #tpu.memory_space<vmem>>, vector<2x10xf32>
    tpu.vector_store %arg9[%c0_92, %c0_93], %234 {strides = array<i32>} : memref<2x10xf32, #tpu.memory_space<vmem>>, vector<2x10xf32>,
    return
  }
  func.func @transform_0(%arg0: i32) -> (i32, i32) {
    %c0_i32 = arith.constant 0 : i32
    %c0_i32_0 = arith.constant 0 : i32
    %c0_i32_1 = arith.constant 0 : i32
    return %c0_i32, %c0_i32_0 : i32, i32
  }
  func.func @transform_1(%arg0: i32) -> (i32, i32, i32) {
    %c0_i32 = arith.constant 0 : i32
    %c0_i32_0 = arith.constant 0 : i32
    %c0_i32_1 = arith.constant 0 : i32
    %c0_i32_2 = arith.constant 0 : i32
    return %c0_i32, %c0_i32_0, %c0_i32_1 : i32, i32, i32
  }
  func.func @transform_2(%arg0: i32) -> (i32, i32, i32) {
    %c0_i32 = arith.constant 0 : i32
    %c0_i32_0 = arith.constant 0 : i32
    %c0_i32_1 = arith.constant 0 : i32
    %c0_i32_2 = arith.constant 0 : i32
    return %c0_i32, %c0_i32_0, %c0_i32_1 : i32, i32, i32
  }
  func.func @transform_3(%arg0: i32) -> (i32, i32, i32) {
    %c0_i32 = arith.constant 0 : i32
    %c0_i32_0 = arith.constant 0 : i32
    %c0_i32_1 = arith.constant 0 : i32
    %c0_i32_2 = arith.constant 0 : i32
    return %c0_i32, %c0_i32_0, %c0_i32_1 : i32, i32, i32
  }
  func.func @transform_4(%arg0: i32) -> (i32, i32, i32) {
    %c0_i32 = arith.constant 0 : i32
    %c0_i32_0 = arith.constant 0 : i32
    %c0_i32_1 = arith.constant 0 : i32
    %c0_i32_2 = arith.constant 0 : i32
    return %c0_i32, %c0_i32_0, %c0_i32_1 : i32, i32, i32
  }
  func.func @transform_5(%arg0: i32) -> (i32, i32, i32) {
    %c0_i32 = arith.constant 0 : i32
    %c0_i32_0 = arith.constant 0 : i32
    %c0_i32_1 = arith.constant 0 : i32
    %c0_i32_2 = arith.constant 0 : i32
    return %c0_i32, %c0_i32_0, %c0_i32_1 : i32, i32, i32
  }
  func.func @transform_6(%arg0: i32) -> (i32, i32) {
    %c0_i32 = arith.constant 0 : i32
    %c0_i32_0 = arith.constant 0 : i32
    %c0_i32_1 = arith.constant 0 : i32
    return %c0_i32, %c0_i32_0 : i32, i32
  }
  func.func @transform_7(%arg0: i32) -> (i32, i32) {
    %c0_i32 = arith.constant 0 : i32
    %c0_i32_0 = arith.constant 0 : i32
    %c0_i32_1 = arith.constant 0 : i32
    return %c0_i32, %c0_i32_0 : i32, i32
  }
  func.func @transform_8(%arg0: i32) -> (i32, i32) {
    %c0_i32 = arith.constant 0 : i32
    %c0_i32_0 = arith.constant 0 : i32
    %c0_i32_1 = arith.constant 0 : i32
    return %c0_i32, %c0_i32_0 : i32, i32
  }
}

</mosaic_0001>

<llo_original>
// kernel: forward.1
$region0: #{forward.1}
  #allocation0 [shape = 'u32[]', space=smem, size = 0x4, offset = 0x4, fixed_abs, tag = 'smem constant byte address 0x4 - core index']
  #allocation1 [shape = 'u32[144,128]{1,0:T(1,128)}', space=vmem, size = 0x12000, scoped, tag = 'internal scratch']
  %s0 = inlined_call_operand.vmem [shape: f32[56,28], index: 0, kind: input, shape index: {}]
  %s1 = inlined_call_operand.vmem [shape: f32[3,26,56], index: 1, kind: input, shape index: {}]
  %s2 = inlined_call_operand.vmem [shape: f32[3,28,104], index: 2, kind: input, shape index: {}]
  %s3 = inlined_call_operand.vmem [shape: f32[3,12,26], index: 3, kind: input, shape index: {}]
  %s4 = inlined_call_operand.vmem [shape: f32[3,104,96], index: 4, kind: input, shape index: {}]
  %s5 = inlined_call_operand.hbm [shape: f32[6,96,288], index: 5, kind: input, shape index: {}]
  %s6 = inlined_call_operand.vmem [shape: f32[288,10], index: 6, kind: input, shape index: {}]
  %s7 = inlined_call_operand.vmem [shape: f32[8,288], index: 7, kind: input, shape index: {}]
  %s8 = inlined_call_operand.hbm [shape: f32[2,10], index: 8, kind: output, shape index: {}]
  %s9 = sld [smem:[#allocation0]]
  $region46: #{forward.1} parent=0
    _
  %s11 = ssub.s32 1, %s9
  %s12 = scalar_select 0, %s11, %s9
  $region1: #{forward.1} parent=0
    #allocation2 [shape = 'u8[884736]{0}', space=vmem, size = 0xd8000, scoped, tag = 'input window, operand 5, single buffered']
    #allocation3 [shape = 's32[1]{0}', space=sflag, size = 0x4, scoped, tag = 'scoped memory for forward.1']
    #allocation4 [shape = 's32[1]{0}', space=sflag, size = 0x4, scoped, tag = 'scoped memory for forward.1']
    #allocation5 [shape = 'u8[1024]{0}', space=vmem, size = 0x400, scoped, tag = 'output window, operand 0, single buffered']
    %13 = vsyncpa [#allocation3], 0
    %14 = vsyncpa [#allocation4], 0
    // Predicated region
    $region2: #{forward.1} parent=1 // pred_check
      _
    $region3: #{forward.1} parent=1 // pred_check_branch
      %16 = sbr.rel (0) target = $region5
    $region4: #{forward.1} parent=1 // pred_region
      _
    $region5: #{forward.1} parent=1 // pred_fallthru
      _
    // Predicated region
    $region6: #{forward.1} parent=1 // pred_check
      _
    $region7: #{forward.1} parent=1 // pred_check_branch
      %18 = sbr.rel (0) target = $region9
    $region8: #{forward.1} parent=1 // pred_region
      _
    $region9: #{forward.1} parent=1 // pred_fallthru
      _
    // Predicated region
    $region10: #{forward.1} parent=1 // pred_check
      _
    $region11: #{forward.1} parent=1 // pred_check_branch
      %20 = sbr.rel (0) target = $region13
    $region12: #{forward.1} parent=1 // pred_region
      _
    $region13: #{forward.1} parent=1 // pred_fallthru
      _
    // Predicated region
    $region14: #{forward.1} parent=1 // pred_check
      _
    $region15: #{forward.1} parent=1 // pred_check_branch
      %22 = sbr.rel (0) target = $region17
    $region16: #{forward.1} parent=1 // pred_region
      _
    $region17: #{forward.1} parent=1 // pred_fallthru
      _
    // Predicated region
    $region18: #{forward.1} parent=1 // pred_check
      _
    $region19: #{forward.1} parent=1 // pred_check_branch
      %24 = sbr.rel (0) target = $region21
    $region20: #{forward.1} parent=1 // pred_region
      _
    $region21: #{forward.1} parent=1 // pred_fallthru
      _
    // Predicated region
    $region22: #{forward.1} parent=1 // pred_check
      _
    $region23: #{forward.1} parent=1 // pred_check_branch
      %26 = sbr.rel (0) target = $region25
    $region24: #{forward.1} parent=1 // pred_region
      %s28 = ssub.s32 27648, 27648
      %29 = vsyncadd [#allocation3], %s28
      %s30 = sshll.u32 [#allocation2], 4
      %s31 = int_to_ptr.vmem [resolvable:$true] %s30
      %36 = dma.hbm_to_vmem [thread:$0]  %s5, 27648, %s31, [#allocation3], 384, 384, 24
    $region25: #{forward.1} parent=1 // pred_fallthru
      _
    // Predicated region
    $region26: #{forward.1} parent=1 // pred_check
      _
    $region27: #{forward.1} parent=1 // pred_check_branch
      %38 = sbr.rel (0) target = $region29
    $region28: #{forward.1} parent=1 // pred_region
      _
    $region29: #{forward.1} parent=1 // pred_fallthru
      _
    // Predicated region
    $region30: #{forward.1} parent=1 // pred_check
      _
    $region31: #{forward.1} parent=1 // pred_check_branch
      %40 = sbr.rel (0) target = $region33
    $region32: #{forward.1} parent=1 // pred_region
      _
    $region33: #{forward.1} parent=1 // pred_fallthru
      _
    // Predicated region
    $region34: #{forward.1} parent=1 // pred_check
      _
    $region35: #{forward.1} parent=1 // pred_check_branch
      %42 = sbr.rel (0) target = $region37
    $region36: #{forward.1} parent=1 // pred_region
      %43 = dma.done [#allocation3], 27648
    $region37: #{forward.1} parent=1 // pred_fallthru
      _
    %v44 = vld [vmem:[%s7] sm:$0xff]
    %v45 = vld [vmem:[%s7 + $0x8] sm:$0xff]
    %v46 = vld [vmem:[%s7 + $0x10] sm:$0xff]
    %v47 = vld [vmem:[%s0] sm:$0xff]
    %v48 = vld [vmem:[%s0 + $0x8] sm:$0xff]
    %v49 = vld [vmem:[%s0 + $0x10] sm:$0xff]
    %v50 = vld [vmem:[%s0 + $0x18] sm:$0xff]
    %v51 = vld [vmem:[%s0 + $0x20] sm:$0xff]
    %v52 = vld [vmem:[%s0 + $0x28] sm:$0xff]
    %v53 = vld [vmem:[%s0 + $0x30] sm:$0xff]
    %v54 = vld [vmem:[%s1] sm:$0xff]
    %v55 = vld [vmem:[%s1 + $0x8] sm:$0xff]
    %v56 = vld [vmem:[%s1 + $0x10] sm:$0xff]
    %v57 = vld [vmem:[%s1 + $0x18] sm:$0x3]
    %vm58 = vcmask 457728
    %v60 = vsel %vm58, %v54, 0
    %v63 = vsel %vm58, %v55, 0
    %v66 = vsel %vm58, %v56, 0
    %v69 = vsel %vm58, %v57, 0
    %71 = vmatprep.subr.mxu0 0.0
    %72 = vmatpush1.msra.mxu0 0.0
    %73 = vmatprep.subr.mxu0 0.0
    %74 = vmatpush1.msra.mxu0 0.0
    %75 = vmatprep.subr.mxu0 0.0
    %76 = vmatpush1.msra.mxu0 0.0
    %77 = vmatprep.subr.mxu0 0.0
    %78 = vmatpush1.msra.mxu0 0.0
    %79 = vmatprep.subr.mxu0 0.0
    %80 = vmatpush1.msra.mxu0 0.0
    %81 = vmatprep.subr.mxu0 0.0
    %82 = vmatpush1.msra.mxu0 0.0
    %83 = vmatprep.subr.mxu0 0.0
    %84 = vmatpush1.msra.mxu0 0.0
    %85 = vmatprep.subr.mxu0 0.0
    %86 = vmatpush1.msra.mxu0 0.0
    %87 = vmatprep.subr.mxu0 0.0
    %88 = vmatpush1.msra.mxu0 0.0
    %89 = vmatprep.subr.mxu0 0.0
    %90 = vmatpush1.msra.mxu0 %v53
    %91 = vmatprep.subr.mxu0 0.0
    %92 = vmatpush1.msra.mxu0 %v52
    %93 = vmatprep.subr.mxu0 0.0
    %94 = vmatpush1.msra.mxu0 %v51
    %95 = vmatprep.subr.mxu0 0.0
    %96 = vmatpush1.msra.mxu0 %v50
    %97 = vmatprep.subr.mxu0 0.0
    %98 = vmatpush1.msra.mxu0 %v49
    %99 = vmatprep.subr.mxu0 0.0
    %100 = vmatpush1.msra.mxu0 %v48
    %101 = vmatprep.subr.mxu0 0.0
    %102 = vmatpush1.msra.mxu0 %v47
    %103 = vmatprep.subr.mxu0 0.0
    %104 = vmatpush2.msra.mxu0 0.0
    %105 = vmatprep.subr.mxu0 0.0
    %106 = vmatpush2.msra.mxu0 0.0
    %107 = vmatprep.subr.mxu0 0.0
    %108 = vmatpush2.msra.mxu0 0.0
    %109 = vmatprep.subr.mxu0 0.0
    %110 = vmatpush2.msra.mxu0 0.0
    %111 = vmatprep.subr.mxu0 0.0
    %112 = vmatpush2.msra.mxu0 0.0
    %113 = vmatprep.subr.mxu0 0.0
    %114 = vmatpush2.msra.mxu0 0.0
    %115 = vmatprep.subr.mxu0 0.0
    %116 = vmatpush2.msra.mxu0 0.0
    %117 = vmatprep.subr.mxu0 0.0
    %118 = vmatpush2.msra.mxu0 0.0
    %119 = vmatprep.subr.mxu0 0.0
    %120 = vmatpush2.msra.mxu0 0.0
    %121 = vmatprep.subr.mxu0 0.0
    %122 = vmatpush2.msra.mxu0 0.0
    %123 = vmatprep.subr.mxu0 0.0
    %124 = vmatpush2.msra.mxu0 0.0
    %125 = vmatprep.subr.mxu0 0.0
    %126 = vmatpush2.msra.mxu0 0.0
    %127 = vmatprep.subr.mxu0 0.0
    %128 = vmatpush2.msra.mxu0 0.0
    %129 = vmatprep.subr.mxu0 0.0
    %130 = vmatpush2.msra.mxu0 0.0
    %131 = vmatprep.subr.mxu0 0.0
    %132 = vmatpush2.msra.mxu0 0.0
    %133 = vmatprep.subr.mxu0 0.0
    %134 = vmatpush2.msra.mxu0 0.0
    %135 = vmatprep.mubr.f32.mxu0 0.0
    %136 = vmatmul.mubr.f32.gmra.mxu0 %v60
    %v137 = vpop.f32.mrf.mxu0
    %v138 = vadd.f32 0.0, %v137
    %v139 = vpop.f32.mrf.mxu0
    %140 = vmatprep.mubr.f32.mxu0 0.0
    %141 = vmatmul.mubr.f32.gmra.mxu0 %v63
    %v142 = vpop.f32.mrf.mxu0
    %v143 = vadd.f32 0.0, %v142
    %v144 = vpop.f32.mrf.mxu0
    %145 = vmatprep.mubr.f32.mxu0 0.0
    %146 = vmatmul.mubr.f32.gmra.mxu0 %v66
    %v147 = vpop.f32.mrf.mxu0
    %v148 = vadd.f32 0.0, %v147
    %v149 = vpop.f32.mrf.mxu0
    %150 = vmatprep.mubr.f32.mxu0 0.0
    %151 = vmatmul.mubr.f32.gmra.mxu0 %v69
    %v152 = vpop.f32.mrf.mxu0
    %v153 = vadd.f32 0.0, %v152
    %v154 = vpop.f32.mrf.mxu0
    %155 = vdwg.mxu0
    %v156 = vld [vmem:[%s2] sm:$0xff]
    %v157 = vld [vmem:[%s2 + $0x8] sm:$0xff]
    %v158 = vld [vmem:[%s2 + $0x10] sm:$0xff]
    %v159 = vld [vmem:[%s2 + $0x18] sm:$0xf]
    %s160 = scalar_lea.vmem %s1, 32
    %v161 = vld [vmem:[%s160] sm:$0xff]
    %v162 = vld [vmem:[%s160 + $0x8] sm:$0xff]
    %v163 = vld [vmem:[%s160 + $0x10] sm:$0xff]
    %v164 = vld [vmem:[%s160 + $0x18] sm:$0x3]
    %v166 = vsel %vm58, %v161, 0
    %v169 = vsel %vm58, %v162, 0
    %v172 = vsel %vm58, %v163, 0
    %v175 = vsel %vm58, %v164, 0
    %177 = vmatprep.subr.mxu0 0.0
    %178 = vmatpush1.msra.mxu0 0.0
    %179 = vmatprep.subr.mxu0 0.0
    %180 = vmatpush1.msra.mxu0 0.0
    %181 = vmatprep.subr.mxu0 0.0
    %182 = vmatpush1.msra.mxu0 0.0
    %183 = vmatprep.subr.mxu0 0.0
    %184 = vmatpush1.msra.mxu0 0.0
    %185 = vmatprep.subr.mxu0 0.0
    %186 = vmatpush1.msra.mxu0 0.0
    %187 = vmatprep.subr.mxu0 0.0
    %188 = vmatpush1.msra.mxu0 0.0
    %189 = vmatprep.subr.mxu0 0.0
    %190 = vmatpush1.msra.mxu0 0.0
    %191 = vmatprep.subr.mxu0 0.0
    %192 = vmatpush1.msra.mxu0 0.0
    %193 = vmatprep.subr.mxu0 0.0
    %194 = vmatpush1.msra.mxu0 0.0
    %195 = vmatprep.subr.mxu0 0.0
    %196 = vmatpush1.msra.mxu0 %v53
    %197 = vmatprep.subr.mxu0 0.0
    %198 = vmatpush1.msra.mxu0 %v52
    %199 = vmatprep.subr.mxu0 0.0
    %200 = vmatpush1.msra.mxu0 %v51
    %201 = vmatprep.subr.mxu0 0.0
    %202 = vmatpush1.msra.mxu0 %v50
    %203 = vmatprep.subr.mxu0 0.0
    %204 = vmatpush1.msra.mxu0 %v49
    %205 = vmatprep.subr.mxu0 0.0
    %206 = vmatpush1.msra.mxu0 %v48
    %207 = vmatprep.subr.mxu0 0.0
    %208 = vmatpush1.msra.mxu0 %v47
    %209 = vmatprep.subr.mxu0 0.0
    %210 = vmatpush2.msra.mxu0 0.0
    %211 = vmatprep.subr.mxu0 0.0
    %212 = vmatpush2.msra.mxu0 0.0
    %213 = vmatprep.subr.mxu0 0.0
    %214 = vmatpush2.msra.mxu0 0.0
    %215 = vmatprep.subr.mxu0 0.0
    %216 = vmatpush2.msra.mxu0 0.0
    %217 = vmatprep.subr.mxu0 0.0
    %218 = vmatpush2.msra.mxu0 0.0
    %219 = vmatprep.subr.mxu0 0.0
    %220 = vmatpush2.msra.mxu0 0.0
    %221 = vmatprep.subr.mxu0 0.0
    %222 = vmatpush2.msra.mxu0 0.0
    %223 = vmatprep.subr.mxu0 0.0
    %224 = vmatpush2.msra.mxu0 0.0
    %225 = vmatprep.subr.mxu0 0.0
    %226 = vmatpush2.msra.mxu0 0.0
    %227 = vmatprep.subr.mxu0 0.0
    %228 = vmatpush2.msra.mxu0 0.0
    %229 = vmatprep.subr.mxu0 0.0
    %230 = vmatpush2.msra.mxu0 0.0
    %231 = vmatprep.subr.mxu0 0.0
    %232 = vmatpush2.msra.mxu0 0.0
    %233 = vmatprep.subr.mxu0 0.0
    %234 = vmatpush2.msra.mxu0 0.0
    %235 = vmatprep.subr.mxu0 0.0
    %236 = vmatpush2.msra.mxu0 0.0
    %237 = vmatprep.subr.mxu0 0.0
    %238 = vmatpush2.msra.mxu0 0.0
    %239 = vmatprep.subr.mxu0 0.0
    %240 = vmatpush2.msra.mxu0 0.0
    %241 = vmatprep.mubr.f32.mxu0 0.0
    %242 = vmatmul.mubr.f32.gmra.mxu0 %v166
    %v243 = vpop.f32.mrf.mxu0
    %v244 = vadd.f32 0.0, %v243
    %v245 = vpop.f32.mrf.mxu0
    %246 = vmatprep.mubr.f32.mxu0 0.0
    %247 = vmatmul.mubr.f32.gmra.mxu0 %v169
    %v248 = vpop.f32.mrf.mxu0
    %v249 = vadd.f32 0.0, %v248
    %v250 = vpop.f32.mrf.mxu0
    %251 = vmatprep.mubr.f32.mxu0 0.0
    %252 = vmatmul.mubr.f32.gmra.mxu0 %v172
    %v253 = vpop.f32.mrf.mxu0
    %v254 = vadd.f32 0.0, %v253
    %v255 = vpop.f32.mrf.mxu0
    %256 = vmatprep.mubr.f32.mxu0 0.0
    %257 = vmatmul.mubr.f32.gmra.mxu0 %v175
    %v258 = vpop.f32.mrf.mxu0
    %v259 = vadd.f32 0.0, %v258
    %v260 = vpop.f32.mrf.mxu0
    %261 = vdwg.mxu0
    %s262 = scalar_lea.vmem %s2, 32
    %v263 = vld [vmem:[%s262] sm:$0xff]
    %v264 = vld [vmem:[%s262 + $0x8] sm:$0xff]
    %v265 = vld [vmem:[%s262 + $0x10] sm:$0xff]
    %v266 = vld [vmem:[%s262 + $0x18] sm:$0xf]
    %vm267 = vcmask 228352
    %v269 = vsel %vm267, %v244, 0
    %v272 = vsel %vm267, %v249, 0
    %v275 = vsel %vm267, %v254, 0
    %v278 = vsel %vm267, %v259, 0
    %vm280 = vcmask 1043456
    %v282 = vsel %vm280, %v266, 0
    %284 = vmatprep.subr.mxu0 0.0
    %285 = vmatpush1.msra.mxu0 0.0
    %286 = vmatprep.subr.mxu0 0.0
    %287 = vmatpush1.msra.mxu0 0.0
    %288 = vmatprep.subr.mxu0 0.0
    %289 = vmatpush1.msra.mxu0 0.0
    %290 = vmatprep.subr.mxu0 0.0
    %291 = vmatpush1.msra.mxu0 0.0
    %292 = vmatprep.subr.mxu0 0.0
    %293 = vmatpush1.msra.mxu0 0.0
    %294 = vmatprep.subr.mxu0 0.0
    %295 = vmatpush1.msra.mxu0 0.0
    %296 = vmatprep.subr.mxu0 0.0
    %297 = vmatpush1.msra.mxu0 0.0
    %298 = vmatprep.subr.mxu0 0.0
    %299 = vmatpush1.msra.mxu0 0.0
    %300 = vmatprep.subr.mxu0 0.0
    %301 = vmatpush1.msra.mxu0 0.0
    %302 = vmatprep.subr.mxu0 0.0
    %303 = vmatpush1.msra.mxu0 0.0
    %304 = vmatprep.subr.mxu0 0.0
    %305 = vmatpush1.msra.mxu0 0.0
    %306 = vmatprep.subr.mxu0 0.0
    %307 = vmatpush1.msra.mxu0 0.0
    %308 = vmatprep.subr.mxu0 0.0
    %309 = vmatpush1.msra.mxu0 %v282
    %310 = vmatprep.subr.mxu0 0.0
    %311 = vmatpush1.msra.mxu0 %v265
    %312 = vmatprep.subr.mxu0 0.0
    %313 = vmatpush1.msra.mxu0 %v264
    %314 = vmatprep.subr.mxu0 0.0
    %315 = vmatpush1.msra.mxu0 %v263
    %316 = vmatprep.subr.mxu0 0.0
    %317 = vmatpush2.msra.mxu0 0.0
    %318 = vmatprep.subr.mxu0 0.0
    %319 = vmatpush2.msra.mxu0 0.0
    %320 = vmatprep.subr.mxu0 0.0
    %321 = vmatpush2.msra.mxu0 0.0
    %322 = vmatprep.subr.mxu0 0.0
    %323 = vmatpush2.msra.mxu0 0.0
    %324 = vmatprep.subr.mxu0 0.0
    %325 = vmatpush2.msra.mxu0 0.0
    %326 = vmatprep.subr.mxu0 0.0
    %327 = vmatpush2.msra.mxu0 0.0
    %328 = vmatprep.subr.mxu0 0.0
    %329 = vmatpush2.msra.mxu0 0.0
    %330 = vmatprep.subr.mxu0 0.0
    %331 = vmatpush2.msra.mxu0 0.0
    %332 = vmatprep.subr.mxu0 0.0
    %333 = vmatpush2.msra.mxu0 0.0
    %334 = vmatprep.subr.mxu0 0.0
    %335 = vmatpush2.msra.mxu0 0.0
    %336 = vmatprep.subr.mxu0 0.0
    %337 = vmatpush2.msra.mxu0 0.0
    %338 = vmatprep.subr.mxu0 0.0
    %339 = vmatpush2.msra.mxu0 0.0
    %340 = vmatprep.subr.mxu0 0.0
    %341 = vmatpush2.msra.mxu0 0.0
    %342 = vmatprep.subr.mxu0 0.0
    %343 = vmatpush2.msra.mxu0 0.0
    %344 = vmatprep.subr.mxu0 0.0
    %345 = vmatpush2.msra.mxu0 0.0
    %346 = vmatprep.subr.mxu0 0.0
    %347 = vmatpush2.msra.mxu0 0.0
    %348 = vmatprep.mubr.f32.mxu0 0.0
    %349 = vmatmul.mubr.f32.gmra.mxu0 %v269
    %v350 = vpop.f32.mrf.mxu0
    %v351 = vadd.f32 0.0, %v350
    %v352 = vpop.f32.mrf.mxu0
    %353 = vmatprep.mubr.f32.mxu0 0.0
    %354 = vmatmul.mubr.f32.gmra.mxu0 %v272
    %v355 = vpop.f32.mrf.mxu0
    %v356 = vadd.f32 0.0, %v355
    %v357 = vpop.f32.mrf.mxu0
    %358 = vmatprep.mubr.f32.mxu0 0.0
    %359 = vmatmul.mubr.f32.gmra.mxu0 %v275
    %v360 = vpop.f32.mrf.mxu0
    %v361 = vadd.f32 0.0, %v360
    %v362 = vpop.f32.mrf.mxu0
    %363 = vmatprep.mubr.f32.mxu0 0.0
    %364 = vmatmul.mubr.f32.gmra.mxu0 %v278
    %v365 = vpop.f32.mrf.mxu0
    %v366 = vadd.f32 0.0, %v365
    %v367 = vpop.f32.mrf.mxu0
    %368 = vdwg.mxu0
    %v370 = vsel %vm267, %v138, 0
    %v373 = vsel %vm267, %v143, 0
    %v376 = vsel %vm267, %v148, 0
    %v379 = vsel %vm267, %v153, 0
    %v382 = vsel %vm280, %v159, 0
    %384 = vmatprep.subr.mxu0 0.0
    %385 = vmatpush1.msra.mxu0 0.0
    %386 = vmatprep.subr.mxu0 0.0
    %387 = vmatpush1.msra.mxu0 0.0
    %388 = vmatprep.subr.mxu0 0.0
    %389 = vmatpush1.msra.mxu0 0.0
    %390 = vmatprep.subr.mxu0 0.0
    %391 = vmatpush1.msra.mxu0 0.0
    %392 = vmatprep.subr.mxu0 0.0
    %393 = vmatpush1.msra.mxu0 0.0
    %394 = vmatprep.subr.mxu0 0.0
    %395 = vmatpush1.msra.mxu0 0.0
    %396 = vmatprep.subr.mxu0 0.0
    %397 = vmatpush1.msra.mxu0 0.0
    %398 = vmatprep.subr.mxu0 0.0
    %399 = vmatpush1.msra.mxu0 0.0
    %400 = vmatprep.subr.mxu0 0.0
    %401 = vmatpush1.msra.mxu0 0.0
    %402 = vmatprep.subr.mxu0 0.0
    %403 = vmatpush1.msra.mxu0 0.0
    %404 = vmatprep.subr.mxu0 0.0
    %405 = vmatpush1.msra.mxu0 0.0
    %406 = vmatprep.subr.mxu0 0.0
    %407 = vmatpush1.msra.mxu0 0.0
    %408 = vmatprep.subr.mxu0 0.0
    %409 = vmatpush1.msra.mxu0 %v382
    %410 = vmatprep.subr.mxu0 0.0
    %411 = vmatpush1.msra.mxu0 %v158
    %412 = vmatprep.subr.mxu0 0.0
    %413 = vmatpush1.msra.mxu0 %v157
    %414 = vmatprep.subr.mxu0 0.0
    %415 = vmatpush1.msra.mxu0 %v156
    %416 = vmatprep.subr.mxu0 0.0
    %417 = vmatpush2.msra.mxu0 0.0
    %418 = vmatprep.subr.mxu0 0.0
    %419 = vmatpush2.msra.mxu0 0.0
    %420 = vmatprep.subr.mxu0 0.0
    %421 = vmatpush2.msra.mxu0 0.0
    %422 = vmatprep.subr.mxu0 0.0
    %423 = vmatpush2.msra.mxu0 0.0
    %424 = vmatprep.subr.mxu0 0.0
    %425 = vmatpush2.msra.mxu0 0.0
    %426 = vmatprep.subr.mxu0 0.0
    %427 = vmatpush2.msra.mxu0 0.0
    %428 = vmatprep.subr.mxu0 0.0
    %429 = vmatpush2.msra.mxu0 0.0
    %430 = vmatprep.subr.mxu0 0.0
    %431 = vmatpush2.msra.mxu0 0.0
    %432 = vmatprep.subr.mxu0 0.0
    %433 = vmatpush2.msra.mxu0 0.0
    %434 = vmatprep.subr.mxu0 0.0
    %435 = vmatpush2.msra.mxu0 0.0
    %436 = vmatprep.subr.mxu0 0.0
    %437 = vmatpush2.msra.mxu0 0.0
    %438 = vmatprep.subr.mxu0 0.0
    %439 = vmatpush2.msra.mxu0 0.0
    %440 = vmatprep.subr.mxu0 0.0
    %441 = vmatpush2.msra.mxu0 0.0
    %442 = vmatprep.subr.mxu0 0.0
    %443 = vmatpush2.msra.mxu0 0.0
    %444 = vmatprep.subr.mxu0 0.0
    %445 = vmatpush2.msra.mxu0 0.0
    %446 = vmatprep.subr.mxu0 0.0
    %447 = vmatpush2.msra.mxu0 0.0
    %448 = vmatprep.mubr.f32.mxu0 0.0
    %449 = vmatmul.mubr.f32.gmra.mxu0 %v370
    %v450 = vpop.f32.mrf.mxu0
    %v451 = vadd.f32 %v351, %v450
    %v452 = vpop.f32.mrf.mxu0
    %453 = vmatprep.mubr.f32.mxu0 0.0
    %454 = vmatmul.mubr.f32.gmra.mxu0 %v373
    %v455 = vpop.f32.mrf.mxu0
    %v456 = vadd.f32 %v356, %v455
    %v457 = vpop.f32.mrf.mxu0
    %458 = vmatprep.mubr.f32.mxu0 0.0
    %459 = vmatmul.mubr.f32.gmra.mxu0 %v376
    %v460 = vpop.f32.mrf.mxu0
    %v461 = vadd.f32 %v361, %v460
    %v462 = vpop.f32.mrf.mxu0
    %463 = vmatprep.mubr.f32.mxu0 0.0
    %464 = vmatmul.mubr.f32.gmra.mxu0 %v379
    %v465 = vpop.f32.mrf.mxu0
    %v466 = vadd.f32 %v366, %v465
    %v467 = vpop.f32.mrf.mxu0
    %468 = vdwg.mxu0
    %s469 = scalar_lea.vmem %s1, 64
    %v470 = vld [vmem:[%s469] sm:$0xff]
    %v471 = vld [vmem:[%s469 + $0x8] sm:$0xff]
    %v472 = vld [vmem:[%s469 + $0x10] sm:$0xff]
    %v473 = vld [vmem:[%s469 + $0x18] sm:$0x3]
    %v475 = vsel %vm58, %v470, 0
    %v478 = vsel %vm58, %v471, 0
    %v481 = vsel %vm58, %v472, 0
    %v484 = vsel %vm58, %v473, 0
    %486 = vmatprep.subr.mxu0 0.0
    %487 = vmatpush1.msra.mxu0 0.0
    %488 = vmatprep.subr.mxu0 0.0
    %489 = vmatpush1.msra.mxu0 0.0
    %490 = vmatprep.subr.mxu0 0.0
    %491 = vmatpush1.msra.mxu0 0.0
    %492 = vmatprep.subr.mxu0 0.0
    %493 = vmatpush1.msra.mxu0 0.0
    %494 = vmatprep.subr.mxu0 0.0
    %495 = vmatpush1.msra.mxu0 0.0
    %496 = vmatprep.subr.mxu0 0.0
    %497 = vmatpush1.msra.mxu0 0.0
    %498 = vmatprep.subr.mxu0 0.0
    %499 = vmatpush1.msra.mxu0 0.0
    %500 = vmatprep.subr.mxu0 0.0
    %501 = vmatpush1.msra.mxu0 0.0
    %502 = vmatprep.subr.mxu0 0.0
    %503 = vmatpush1.msra.mxu0 0.0
    %504 = vmatprep.subr.mxu0 0.0
    %505 = vmatpush1.msra.mxu0 %v53
    %506 = vmatprep.subr.mxu0 0.0
    %507 = vmatpush1.msra.mxu0 %v52
    %508 = vmatprep.subr.mxu0 0.0
    %509 = vmatpush1.msra.mxu0 %v51
    %510 = vmatprep.subr.mxu0 0.0
    %511 = vmatpush1.msra.mxu0 %v50
    %512 = vmatprep.subr.mxu0 0.0
    %513 = vmatpush1.msra.mxu0 %v49
    %514 = vmatprep.subr.mxu0 0.0
    %515 = vmatpush1.msra.mxu0 %v48
    %516 = vmatprep.subr.mxu0 0.0
    %517 = vmatpush1.msra.mxu0 %v47
    %518 = vmatprep.subr.mxu0 0.0
    %519 = vmatpush2.msra.mxu0 0.0
    %520 = vmatprep.subr.mxu0 0.0
    %521 = vmatpush2.msra.mxu0 0.0
    %522 = vmatprep.subr.mxu0 0.0
    %523 = vmatpush2.msra.mxu0 0.0
    %524 = vmatprep.subr.mxu0 0.0
    %525 = vmatpush2.msra.mxu0 0.0
    %526 = vmatprep.subr.mxu0 0.0
    %527 = vmatpush2.msra.mxu0 0.0
    %528 = vmatprep.subr.mxu0 0.0
    %529 = vmatpush2.msra.mxu0 0.0
    %530 = vmatprep.subr.mxu0 0.0
    %531 = vmatpush2.msra.mxu0 0.0
    %532 = vmatprep.subr.mxu0 0.0
    %533 = vmatpush2.msra.mxu0 0.0
    %534 = vmatprep.subr.mxu0 0.0
    %535 = vmatpush2.msra.mxu0 0.0
    %536 = vmatprep.subr.mxu0 0.0
    %537 = vmatpush2.msra.mxu0 0.0
    %538 = vmatprep.subr.mxu0 0.0
    %539 = vmatpush2.msra.mxu0 0.0
    %540 = vmatprep.subr.mxu0 0.0
    %541 = vmatpush2.msra.mxu0 0.0
    %542 = vmatprep.subr.mxu0 0.0
    %543 = vmatpush2.msra.mxu0 0.0
    %544 = vmatprep.subr.mxu0 0.0
    %545 = vmatpush2.msra.mxu0 0.0
    %546 = vmatprep.subr.mxu0 0.0
    %547 = vmatpush2.msra.mxu0 0.0
    %548 = vmatprep.subr.mxu0 0.0
    %549 = vmatpush2.msra.mxu0 0.0
    %550 = vmatprep.mubr.f32.mxu0 0.0
    %551 = vmatmul.mubr.f32.gmra.mxu0 %v475
    %v552 = vpop.f32.mrf.mxu0
    %v553 = vadd.f32 0.0, %v552
    %v554 = vpop.f32.mrf.mxu0
    %555 = vmatprep.mubr.f32.mxu0 0.0
    %556 = vmatmul.mubr.f32.gmra.mxu0 %v478
    %v557 = vpop.f32.mrf.mxu0
    %v558 = vadd.f32 0.0, %v557
    %v559 = vpop.f32.mrf.mxu0
    %560 = vmatprep.mubr.f32.mxu0 0.0
    %561 = vmatmul.mubr.f32.gmra.mxu0 %v481
    %v562 = vpop.f32.mrf.mxu0
    %v563 = vadd.f32 0.0, %v562
    %v564 = vpop.f32.mrf.mxu0
    %565 = vmatprep.mubr.f32.mxu0 0.0
    %566 = vmatmul.mubr.f32.gmra.mxu0 %v484
    %v567 = vpop.f32.mrf.mxu0
    %v568 = vadd.f32 0.0, %v567
    %v569 = vpop.f32.mrf.mxu0
    %570 = vdwg.mxu0
    %s571 = scalar_lea.vmem %s2, 64
    %v572 = vld [vmem:[%s571] sm:$0xff]
    %v573 = vld [vmem:[%s571 + $0x8] sm:$0xff]
    %v574 = vld [vmem:[%s571 + $0x10] sm:$0xff]
    %v575 = vld [vmem:[%s571 + $0x18] sm:$0xf]
    %v577 = vsel %vm267, %v553, 0
    %v580 = vsel %vm267, %v558, 0
    %v583 = vsel %vm267, %v563, 0
    %v586 = vsel %vm267, %v568, 0
    %v589 = vsel %vm280, %v575, 0
    %591 = vmatprep.subr.mxu0 0.0
    %592 = vmatpush1.msra.mxu0 0.0
    %593 = vmatprep.subr.mxu0 0.0
    %594 = vmatpush1.msra.mxu0 0.0
    %595 = vmatprep.subr.mxu0 0.0
    %596 = vmatpush1.msra.mxu0 0.0
    %597 = vmatprep.subr.mxu0 0.0
    %598 = vmatpush1.msra.mxu0 0.0
    %599 = vmatprep.subr.mxu0 0.0
    %600 = vmatpush1.msra.mxu0 0.0
    %601 = vmatprep.subr.mxu0 0.0
    %602 = vmatpush1.msra.mxu0 0.0
    %603 = vmatprep.subr.mxu0 0.0
    %604 = vmatpush1.msra.mxu0 0.0
    %605 = vmatprep.subr.mxu0 0.0
    %606 = vmatpush1.msra.mxu0 0.0
    %607 = vmatprep.subr.mxu0 0.0
    %608 = vmatpush1.msra.mxu0 0.0
    %609 = vmatprep.subr.mxu0 0.0
    %610 = vmatpush1.msra.mxu0 0.0
    %611 = vmatprep.subr.mxu0 0.0
    %612 = vmatpush1.msra.mxu0 0.0
    %613 = vmatprep.subr.mxu0 0.0
    %614 = vmatpush1.msra.mxu0 0.0
    %615 = vmatprep.subr.mxu0 0.0
    %616 = vmatpush1.msra.mxu0 %v589
    %617 = vmatprep.subr.mxu0 0.0
    %618 = vmatpush1.msra.mxu0 %v574
    %619 = vmatprep.subr.mxu0 0.0
    %620 = vmatpush1.msra.mxu0 %v573
    %621 = vmatprep.subr.mxu0 0.0
    %622 = vmatpush1.msra.mxu0 %v572
    %623 = vmatprep.subr.mxu0 0.0
    %624 = vmatpush2.msra.mxu0 0.0
    %625 = vmatprep.subr.mxu0 0.0
    %626 = vmatpush2.msra.mxu0 0.0
    %627 = vmatprep.subr.mxu0 0.0
    %628 = vmatpush2.msra.mxu0 0.0
    %629 = vmatprep.subr.mxu0 0.0
    %630 = vmatpush2.msra.mxu0 0.0
    %631 = vmatprep.subr.mxu0 0.0
    %632 = vmatpush2.msra.mxu0 0.0
    %633 = vmatprep.subr.mxu0 0.0
    %634 = vmatpush2.msra.mxu0 0.0
    %635 = vmatprep.subr.mxu0 0.0
    %636 = vmatpush2.msra.mxu0 0.0
    %637 = vmatprep.subr.mxu0 0.0
    %638 = vmatpush2.msra.mxu0 0.0
    %639 = vmatprep.subr.mxu0 0.0
    %640 = vmatpush2.msra.mxu0 0.0
    %641 = vmatprep.subr.mxu0 0.0
    %642 = vmatpush2.msra.mxu0 0.0
    %643 = vmatprep.subr.mxu0 0.0
    %644 = vmatpush2.msra.mxu0 0.0
    %645 = vmatprep.subr.mxu0 0.0
    %646 = vmatpush2.msra.mxu0 0.0
    %647 = vmatprep.subr.mxu0 0.0
    %648 = vmatpush2.msra.mxu0 0.0
    %649 = vmatprep.subr.mxu0 0.0
    %650 = vmatpush2.msra.mxu0 0.0
    %651 = vmatprep.subr.mxu0 0.0
    %652 = vmatpush2.msra.mxu0 0.0
    %653 = vmatprep.subr.mxu0 0.0
    %654 = vmatpush2.msra.mxu0 0.0
    %655 = vmatprep.mubr.f32.mxu0 0.0
    %656 = vmatmul.mubr.f32.gmra.mxu0 %v577
    %v657 = vpop.f32.mrf.mxu0
    %v658 = vadd.f32 0.0, %v657
    %v659 = vpop.f32.mrf.mxu0
    %660 = vmatprep.mubr.f32.mxu0 0.0
    %661 = vmatmul.mubr.f32.gmra.mxu0 %v580
    %v662 = vpop.f32.mrf.mxu0
    %v663 = vadd.f32 0.0, %v662
    %v664 = vpop.f32.mrf.mxu0
    %665 = vmatprep.mubr.f32.mxu0 0.0
    %666 = vmatmul.mubr.f32.gmra.mxu0 %v583
    %v667 = vpop.f32.mrf.mxu0
    %v668 = vadd.f32 0.0, %v667
    %v669 = vpop.f32.mrf.mxu0
    %670 = vmatprep.mubr.f32.mxu0 0.0
    %671 = vmatmul.mubr.f32.gmra.mxu0 %v586
    %v672 = vpop.f32.mrf.mxu0
    %v673 = vadd.f32 0.0, %v672
    %v674 = vpop.f32.mrf.mxu0
    %675 = vdwg.mxu0
    %v676 = vadd.f32 %v451, %v658
    %v677 = vadd.f32 %v456, %v663
    %v678 = vadd.f32 %v461, %v668
    %v679 = vadd.f32 %v466, %v673
    %vm680 = vcmask 850944
    %v681 = vsel %vm680, %v676, 0.0
    %v682 = vsel %vm680, %v677, 0.0
    %v683 = vadd.f32 %v681, %v682
    %v684 = vsel %vm680, %v678, 0.0
    %v685 = vadd.f32 %v683, %v684
    %vm686 = vcmask 844800
    %v687 = vsel %vm686, %v679, 0.0
    %v688 = vadd.f32 %v685, %v687
    %v689 = vrot.slane %v688, 4
    %v690 = vadd.f32 %v688, %v689
    %v691 = vrot.slane %v690, 2
    %v692 = vadd.f32 %v690, %v691
    %v693 = vrot.slane %v692, 1
    %v694 = vadd.f32 %v692, %v693
    %696 = vrot.lane.b32.xlu0 %v694, 120
    %v697 = vpop.permute.xlu0 %696
    %v699 = vadd.f32 %v694, %v697
    %700 = vrot.lane.b32.xlu0 %v694, 112
    %v701 = vpop.permute.xlu0 %700
    %v703 = vadd.f32 %v699, %v701
    %704 = vrot.lane.b32.xlu0 %v694, 104
    %v705 = vpop.permute.xlu0 %704
    %v707 = vadd.f32 %v703, %v705
    %708 = vrot.lane.b32.xlu0 %v694, 96
    %v709 = vpop.permute.xlu0 %708
    %v711 = vadd.f32 %v707, %v709
    %712 = vrot.lane.b32.xlu0 %v694, 88
    %v713 = vpop.permute.xlu0 %712
    %v715 = vadd.f32 %v711, %v713
    %716 = vrot.lane.b32.xlu0 %v694, 80
    %v717 = vpop.permute.xlu0 %716
    %v719 = vadd.f32 %v715, %v717
    %720 = vrot.lane.b32.xlu0 %v694, 72
    %v721 = vpop.permute.xlu0 %720
    %v723 = vadd.f32 %v719, %v721
    %724 = vrot.lane.b32.xlu0 %v694, 64
    %v725 = vpop.permute.xlu0 %724
    %v727 = vadd.f32 %v723, %v725
    %728 = vrot.lane.b32.xlu0 %v694, 56
    %v729 = vpop.permute.xlu0 %728
    %v731 = vadd.f32 %v727, %v729
    %732 = vrot.lane.b32.xlu0 %v694, 48
    %v733 = vpop.permute.xlu0 %732
    %v735 = vadd.f32 %v731, %v733
    %736 = vrot.lane.b32.xlu0 %v694, 40
    %v737 = vpop.permute.xlu0 %736
    %v739 = vadd.f32 %v735, %v737
    %740 = vrot.lane.b32.xlu0 %v694, 32
    %v741 = vpop.permute.xlu0 %740
    %v743 = vadd.f32 %v739, %v741
    %v744 = vrcp.pop 338.0
    %v745 = vmul.f32 %v743, %v744
    %747 = vrot.lane.b32.xlu0 %v745, 8
    %v748 = vpop.permute.xlu0 %747
    %750 = vrot.lane.b32.xlu0 %v745, 16
    %v751 = vpop.permute.xlu0 %750
    %753 = vrot.lane.b32.xlu0 %v745, 24
    %v754 = vpop.permute.xlu0 %753
    %756 = vrot.lane.b32.xlu0 %v745, 32
    %v757 = vpop.permute.xlu0 %756
    %759 = vrot.lane.b32.xlu0 %v745, 40
    %v760 = vpop.permute.xlu0 %759
    %762 = vrot.lane.b32.xlu0 %v745, 48
    %v763 = vpop.permute.xlu0 %762
    %765 = vrot.lane.b32.xlu0 %v745, 56
    %v766 = vpop.permute.xlu0 %765
    %768 = vrot.lane.b32.xlu0 %v745, 64
    %v769 = vpop.permute.xlu0 %768
    %771 = vrot.lane.b32.xlu0 %v745, 72
    %v772 = vpop.permute.xlu0 %771
    %774 = vrot.lane.b32.xlu0 %v745, 80
    %v775 = vpop.permute.xlu0 %774
    %777 = vrot.lane.b32.xlu0 %v745, 88
    %v778 = vpop.permute.xlu0 %777
    %780 = vrot.lane.b32.xlu0 %v745, 96
    %v781 = vpop.permute.xlu0 %780
    %vm783 = vcmask 64512
    %v784 = vsel %vm783, %v745, %v748
    %vm785 = vcmask 130048
    %v786 = vsel %vm785, %v784, %v751
    %vm787 = vcmask 195584
    %v788 = vsel %vm787, %v786, %v754
    %vm789 = vcmask 261120
    %v790 = vsel %vm789, %v788, %v757
    %vm791 = vcmask 326656
    %v792 = vsel %vm791, %v790, %v760
    %vm793 = vcmask 392192
    %v794 = vsel %vm793, %v792, %v763
    %v795 = vsel %vm58, %v794, %v766
    %vm796 = vcmask 523264
    %v797 = vsel %vm796, %v795, %v769
    %vm798 = vcmask 588800
    %v799 = vsel %vm798, %v797, %v772
    %vm800 = vcmask 654336
    %v801 = vsel %vm800, %v799, %v775
    %vm802 = vcmask 719872
    %v803 = vsel %vm802, %v801, %v778
    %vm804 = vcmask 785408
    %v805 = vsel %vm804, %v803, %v781
    %v806 = vlaneseq
    %v807 = vshrl.u32 %v806, 7
    %v808 = vsub.s32 0, %v807
    %v809 = vrot.slane %v805, %v808
    %v810 = vsub.f32 %v676, %v809
    %v811 = vsub.f32 %v677, %v809
    %v812 = vsub.f32 %v678, %v809
    %v813 = vsub.f32 %v679, %v809
    %v814 = vmul.f32 %v810, %v810
    %v815 = vmul.f32 %v811, %v811
    %v816 = vmul.f32 %v812, %v812
    %v817 = vmul.f32 %v813, %v813
    %v818 = vsel %vm680, %v814, 0.0
    %v819 = vsel %vm680, %v815, 0.0
    %v820 = vadd.f32 %v818, %v819
    %v821 = vsel %vm680, %v816, 0.0
    %v822 = vadd.f32 %v820, %v821
    %v823 = vsel %vm686, %v817, 0.0
    %v824 = vadd.f32 %v822, %v823
    %v825 = vrot.slane %v824, 4
    %v826 = vadd.f32 %v824, %v825
    %v827 = vrot.slane %v826, 2
    %v828 = vadd.f32 %v826, %v827
    %v829 = vrot.slane %v828, 1
    %v830 = vadd.f32 %v828, %v829
    %832 = vrot.lane.b32.xlu0 %v830, 120
    %v833 = vpop.permute.xlu0 %832
    %v835 = vadd.f32 %v830, %v833
    %836 = vrot.lane.b32.xlu0 %v830, 112
    %v837 = vpop.permute.xlu0 %836
    %v839 = vadd.f32 %v835, %v837
    %840 = vrot.lane.b32.xlu0 %v830, 104
    %v841 = vpop.permute.xlu0 %840
    %v843 = vadd.f32 %v839, %v841
    %844 = vrot.lane.b32.xlu0 %v830, 96
    %v845 = vpop.permute.xlu0 %844
    %v847 = vadd.f32 %v843, %v845
    %848 = vrot.lane.b32.xlu0 %v830, 88
    %v849 = vpop.permute.xlu0 %848
    %v851 = vadd.f32 %v847, %v849
    %852 = vrot.lane.b32.xlu0 %v830, 80
    %v853 = vpop.permute.xlu0 %852
    %v855 = vadd.f32 %v851, %v853
    %856 = vrot.lane.b32.xlu0 %v830, 72
    %v857 = vpop.permute.xlu0 %856
    %v859 = vadd.f32 %v855, %v857
    %860 = vrot.lane.b32.xlu0 %v830, 64
    %v861 = vpop.permute.xlu0 %860
    %v863 = vadd.f32 %v859, %v861
    %864 = vrot.lane.b32.xlu0 %v830, 56
    %v865 = vpop.permute.xlu0 %864
    %v867 = vadd.f32 %v863, %v865
    %868 = vrot.lane.b32.xlu0 %v830, 48
    %v869 = vpop.permute.xlu0 %868
    %v871 = vadd.f32 %v867, %v869
    %872 = vrot.lane.b32.xlu0 %v830, 40
    %v873 = vpop.permute.xlu0 %872
    %v875 = vadd.f32 %v871, %v873
    %876 = vrot.lane.b32.xlu0 %v830, 32
    %v877 = vpop.permute.xlu0 %876
    %v879 = vadd.f32 %v875, %v877
    %v880 = vmul.f32 %v879, %v744
    %v881 = vadd.f32 %v880, 1e-05
    %v882 = vrsqrt.pop %v881
    %v883 = vmul.f32 %v44, %v882
    %885 = vrot.lane.b32.xlu0 %v883, 8
    %v886 = vpop.permute.xlu0 %885
    %888 = vrot.lane.b32.xlu0 %v883, 16
    %v889 = vpop.permute.xlu0 %888
    %891 = vrot.lane.b32.xlu0 %v883, 24
    %v892 = vpop.permute.xlu0 %891
    %894 = vrot.lane.b32.xlu0 %v883, 32
    %v895 = vpop.permute.xlu0 %894
    %897 = vrot.lane.b32.xlu0 %v883, 40
    %v898 = vpop.permute.xlu0 %897
    %900 = vrot.lane.b32.xlu0 %v883, 48
    %v901 = vpop.permute.xlu0 %900
    %903 = vrot.lane.b32.xlu0 %v883, 56
    %v904 = vpop.permute.xlu0 %903
    %906 = vrot.lane.b32.xlu0 %v883, 64
    %v907 = vpop.permute.xlu0 %906
    %909 = vrot.lane.b32.xlu0 %v883, 72
    %v910 = vpop.permute.xlu0 %909
    %912 = vrot.lane.b32.xlu0 %v883, 80
    %v913 = vpop.permute.xlu0 %912
    %915 = vrot.lane.b32.xlu0 %v883, 88
    %v916 = vpop.permute.xlu0 %915
    %918 = vrot.lane.b32.xlu0 %v883, 96
    %v919 = vpop.permute.xlu0 %918
    %v921 = vsel %vm783, %v883, %v886
    %v922 = vsel %vm785, %v921, %v889
    %v923 = vsel %vm787, %v922, %v892
    %v924 = vsel %vm789, %v923, %v895
    %v925 = vsel %vm791, %v924, %v898
    %v926 = vsel %vm793, %v925, %v901
    %v927 = vsel %vm58, %v926, %v904
    %v928 = vsel %vm796, %v927, %v907
    %v929 = vsel %vm798, %v928, %v910
    %v930 = vsel %vm800, %v929, %v913
    %v931 = vsel %vm802, %v930, %v916
    %v932 = vsel %vm804, %v931, %v919
    %v933 = vlaneseq
    %v934 = vshrl.u32 %v933, 7
    %v935 = vsub.s32 0, %v934
    %v936 = vrot.slane %v932, %v935
    %v937 = vmul.f32 %v810, %v936
    %v938 = vmul.f32 %v811, %v936
    %v939 = vmul.f32 %v812, %v936
    %v940 = vmul.f32 %v813, %v936
    %942 = vrot.lane.b32.xlu0 %v44, 8
    %v943 = vpop.permute.xlu0 %942
    %945 = vrot.lane.b32.xlu0 %v44, 16
    %v946 = vpop.permute.xlu0 %945
    %948 = vrot.lane.b32.xlu0 %v44, 24
    %v949 = vpop.permute.xlu0 %948
    %951 = vrot.lane.b32.xlu0 %v44, 32
    %v952 = vpop.permute.xlu0 %951
    %954 = vrot.lane.b32.xlu0 %v44, 40
    %v955 = vpop.permute.xlu0 %954
    %957 = vrot.lane.b32.xlu0 %v44, 48
    %v958 = vpop.permute.xlu0 %957
    %960 = vrot.lane.b32.xlu0 %v44, 56
    %v961 = vpop.permute.xlu0 %960
    %963 = vrot.lane.b32.xlu0 %v44, 64
    %v964 = vpop.permute.xlu0 %963
    %966 = vrot.lane.b32.xlu0 %v44, 72
    %v967 = vpop.permute.xlu0 %966
    %969 = vrot.lane.b32.xlu0 %v44, 80
    %v970 = vpop.permute.xlu0 %969
    %972 = vrot.lane.b32.xlu0 %v44, 88
    %v973 = vpop.permute.xlu0 %972
    %975 = vrot.lane.b32.xlu0 %v44, 96
    %v976 = vpop.permute.xlu0 %975
    %v978 = vsel %vm783, %v44, %v943
    %v979 = vsel %vm785, %v978, %v946
    %v980 = vsel %vm787, %v979, %v949
    %v981 = vsel %vm789, %v980, %v952
    %v982 = vsel %vm791, %v981, %v955
    %v983 = vsel %vm793, %v982, %v958
    %v984 = vsel %vm58, %v983, %v961
    %v985 = vsel %vm796, %v984, %v964
    %v986 = vsel %vm798, %v985, %v967
    %v987 = vsel %vm800, %v986, %v970
    %v988 = vsel %vm802, %v987, %v973
    %v989 = vsel %vm804, %v988, %v976
    %v990 = vlaneseq
    %v991 = vshrl.u32 %v990, 7
    %v992 = vsub.s32 1, %v991
    %v993 = vrot.slane %v989, %v992
    %v994 = vadd.f32 %v937, %v993
    %v995 = vadd.f32 %v938, %v993
    %v996 = vadd.f32 %v939, %v993
    %v997 = vadd.f32 %v940, %v993
    %v998 = vmax.f32 %v994, 0.0
    %v999 = vmax.f32 %v995, 0.0
    %v1000 = vmax.f32 %v996, 0.0
    %v1001 = vmax.f32 %v997, 0.0
    %v1002 = vld [vmem:[%s3] sm:$0xff]
    %v1003 = vld [vmem:[%s3 + $0x8] sm:$0xf]
    %vm1004 = vcmask 211968
    %v1006 = vsel %vm1004, %v1002, 0
    %v1009 = vsel %vm1004, %v1003, 0
    %vm1011 = vcmask 1041408
    %v1013 = vsel %vm1011, %v1001, 0
    %1015 = vmatprep.subr.mxu0 0.0
    %1016 = vmatpush1.msra.mxu0 0.0
    %1017 = vmatprep.subr.mxu0 0.0
    %1018 = vmatpush1.msra.mxu0 0.0
    %1019 = vmatprep.subr.mxu0 0.0
    %1020 = vmatpush1.msra.mxu0 0.0
    %1021 = vmatprep.subr.mxu0 0.0
    %1022 = vmatpush1.msra.mxu0 0.0
    %1023 = vmatprep.subr.mxu0 0.0
    %1024 = vmatpush1.msra.mxu0 0.0
    %1025 = vmatprep.subr.mxu0 0.0
    %1026 = vmatpush1.msra.mxu0 0.0
    %1027 = vmatprep.subr.mxu0 0.0
    %1028 = vmatpush1.msra.mxu0 0.0
    %1029 = vmatprep.subr.mxu0 0.0
    %1030 = vmatpush1.msra.mxu0 0.0
    %1031 = vmatprep.subr.mxu0 0.0
    %1032 = vmatpush1.msra.mxu0 0.0
    %1033 = vmatprep.subr.mxu0 0.0
    %1034 = vmatpush1.msra.mxu0 0.0
    %1035 = vmatprep.subr.mxu0 0.0
    %1036 = vmatpush1.msra.mxu0 0.0
    %1037 = vmatprep.subr.mxu0 0.0
    %1038 = vmatpush1.msra.mxu0 0.0
    %1039 = vmatprep.subr.mxu0 0.0
    %1040 = vmatpush1.msra.mxu0 %v1013
    %1041 = vmatprep.subr.mxu0 0.0
    %1042 = vmatpush1.msra.mxu0 %v1000
    %1043 = vmatprep.subr.mxu0 0.0
    %1044 = vmatpush1.msra.mxu0 %v999
    %1045 = vmatprep.subr.mxu0 0.0
    %1046 = vmatpush1.msra.mxu0 %v998
    %1047 = vmatprep.subr.mxu0 0.0
    %1048 = vmatpush2.msra.mxu0 0.0
    %1049 = vmatprep.subr.mxu0 0.0
    %1050 = vmatpush2.msra.mxu0 0.0
    %1051 = vmatprep.subr.mxu0 0.0
    %1052 = vmatpush2.msra.mxu0 0.0
    %1053 = vmatprep.subr.mxu0 0.0
    %1054 = vmatpush2.msra.mxu0 0.0
    %1055 = vmatprep.subr.mxu0 0.0
    %1056 = vmatpush2.msra.mxu0 0.0
    %1057 = vmatprep.subr.mxu0 0.0
    %1058 = vmatpush2.msra.mxu0 0.0
    %1059 = vmatprep.subr.mxu0 0.0
    %1060 = vmatpush2.msra.mxu0 0.0
    %1061 = vmatprep.subr.mxu0 0.0
    %1062 = vmatpush2.msra.mxu0 0.0
    %1063 = vmatprep.subr.mxu0 0.0
    %1064 = vmatpush2.msra.mxu0 0.0
    %1065 = vmatprep.subr.mxu0 0.0
    %1066 = vmatpush2.msra.mxu0 0.0
    %1067 = vmatprep.subr.mxu0 0.0
    %1068 = vmatpush2.msra.mxu0 0.0
    %1069 = vmatprep.subr.mxu0 0.0
    %1070 = vmatpush2.msra.mxu0 0.0
    %1071 = vmatprep.subr.mxu0 0.0
    %1072 = vmatpush2.msra.mxu0 0.0
    %1073 = vmatprep.subr.mxu0 0.0
    %1074 = vmatpush2.msra.mxu0 0.0
    %1075 = vmatprep.subr.mxu0 0.0
    %1076 = vmatpush2.msra.mxu0 0.0
    %1077 = vmatprep.subr.mxu0 0.0
    %1078 = vmatpush2.msra.mxu0 0.0
    %1079 = vmatprep.mubr.f32.mxu0 0.0
    %1080 = vmatmul.mubr.f32.gmra.mxu0 %v1006
    %v1081 = vpop.f32.mrf.mxu0
    %v1082 = vadd.f32 0.0, %v1081
    %v1083 = vpop.f32.mrf.mxu0
    %1084 = vmatprep.mubr.f32.mxu0 0.0
    %1085 = vmatmul.mubr.f32.gmra.mxu0 %v1009
    %v1086 = vpop.f32.mrf.mxu0
    %v1087 = vadd.f32 0.0, %v1086
    %v1088 = vpop.f32.mrf.mxu0
    %1089 = vdwg.mxu0
    %v1090 = vld [vmem:[%s4] sm:$0xff]
    %v1091 = vld [vmem:[%s4 + $0x8] sm:$0xff]
    %v1092 = vld [vmem:[%s4 + $0x10] sm:$0xff]
    %v1093 = vld [vmem:[%s4 + $0x18] sm:$0xff]
    %v1094 = vld [vmem:[%s4 + $0x20] sm:$0xff]
    %v1095 = vld [vmem:[%s4 + $0x28] sm:$0xff]
    %v1096 = vld [vmem:[%s4 + $0x30] sm:$0xff]
    %v1097 = vld [vmem:[%s4 + $0x38] sm:$0xff]
    %v1098 = vld [vmem:[%s4 + $0x40] sm:$0xff]
    %v1099 = vld [vmem:[%s4 + $0x48] sm:$0xff]
    %v1100 = vld [vmem:[%s4 + $0x50] sm:$0xff]
    %v1101 = vld [vmem:[%s4 + $0x58] sm:$0xff]
    %v1102 = vld [vmem:[%s4 + $0x60] sm:$0xff]
    %s1103 = scalar_lea.vmem %s3, 16
    %v1104 = vld [vmem:[%s1103] sm:$0xff]
    %v1105 = vld [vmem:[%s1103 + $0x8] sm:$0xf]
    %v1107 = vsel %vm1004, %v1104, 0
    %v1110 = vsel %vm1004, %v1105, 0
    %1112 = vmatprep.subr.mxu0 0.0
    %1113 = vmatpush1.msra.mxu0 0.0
    %1114 = vmatprep.subr.mxu0 0.0
    %1115 = vmatpush1.msra.mxu0 0.0
    %1116 = vmatprep.subr.mxu0 0.0
    %1117 = vmatpush1.msra.mxu0 0.0
    %1118 = vmatprep.subr.mxu0 0.0
    %1119 = vmatpush1.msra.mxu0 0.0
    %1120 = vmatprep.subr.mxu0 0.0
    %1121 = vmatpush1.msra.mxu0 0.0
    %1122 = vmatprep.subr.mxu0 0.0
    %1123 = vmatpush1.msra.mxu0 0.0
    %1124 = vmatprep.subr.mxu0 0.0
    %1125 = vmatpush1.msra.mxu0 0.0
    %1126 = vmatprep.subr.mxu0 0.0
    %1127 = vmatpush1.msra.mxu0 0.0
    %1128 = vmatprep.subr.mxu0 0.0
    %1129 = vmatpush1.msra.mxu0 0.0
    %1130 = vmatprep.subr.mxu0 0.0
    %1131 = vmatpush1.msra.mxu0 0.0
    %1132 = vmatprep.subr.mxu0 0.0
    %1133 = vmatpush1.msra.mxu0 0.0
    %1134 = vmatprep.subr.mxu0 0.0
    %1135 = vmatpush1.msra.mxu0 0.0
    %1136 = vmatprep.subr.mxu0 0.0
    %1137 = vmatpush1.msra.mxu0 %v1013
    %1138 = vmatprep.subr.mxu0 0.0
    %1139 = vmatpush1.msra.mxu0 %v1000
    %1140 = vmatprep.subr.mxu0 0.0
    %1141 = vmatpush1.msra.mxu0 %v999
    %1142 = vmatprep.subr.mxu0 0.0
    %1143 = vmatpush1.msra.mxu0 %v998
    %1144 = vmatprep.subr.mxu0 0.0
    %1145 = vmatpush2.msra.mxu0 0.0
    %1146 = vmatprep.subr.mxu0 0.0
    %1147 = vmatpush2.msra.mxu0 0.0
    %1148 = vmatprep.subr.mxu0 0.0
    %1149 = vmatpush2.msra.mxu0 0.0
    %1150 = vmatprep.subr.mxu0 0.0
    %1151 = vmatpush2.msra.mxu0 0.0
    %1152 = vmatprep.subr.mxu0 0.0
    %1153 = vmatpush2.msra.mxu0 0.0
    %1154 = vmatprep.subr.mxu0 0.0
    %1155 = vmatpush2.msra.mxu0 0.0
    %1156 = vmatprep.subr.mxu0 0.0
    %1157 = vmatpush2.msra.mxu0 0.0
    %1158 = vmatprep.subr.mxu0 0.0
    %1159 = vmatpush2.msra.mxu0 0.0
    %1160 = vmatprep.subr.mxu0 0.0
    %1161 = vmatpush2.msra.mxu0 0.0
    %1162 = vmatprep.subr.mxu0 0.0
    %1163 = vmatpush2.msra.mxu0 0.0
    %1164 = vmatprep.subr.mxu0 0.0
    %1165 = vmatpush2.msra.mxu0 0.0
    %1166 = vmatprep.subr.mxu0 0.0
    %1167 = vmatpush2.msra.mxu0 0.0
    %1168 = vmatprep.subr.mxu0 0.0
    %1169 = vmatpush2.msra.mxu0 0.0
    %1170 = vmatprep.subr.mxu0 0.0
    %1171 = vmatpush2.msra.mxu0 0.0
    %1172 = vmatprep.subr.mxu0 0.0
    %1173 = vmatpush2.msra.mxu0 0.0
    %1174 = vmatprep.subr.mxu0 0.0
    %1175 = vmatpush2.msra.mxu0 0.0
    %1176 = vmatprep.mubr.f32.mxu0 0.0
    %1177 = vmatmul.mubr.f32.gmra.mxu0 %v1107
    %v1178 = vpop.f32.mrf.mxu0
    %v1179 = vadd.f32 0.0, %v1178
    %v1180 = vpop.f32.mrf.mxu0
    %1181 = vmatprep.mubr.f32.mxu0 0.0
    %1182 = vmatmul.mubr.f32.gmra.mxu0 %v1110
    %v1183 = vpop.f32.mrf.mxu0
    %v1184 = vadd.f32 0.0, %v1183
    %v1185 = vpop.f32.mrf.mxu0
    %1186 = vdwg.mxu0
    %s1187 = scalar_lea.vmem %s4, 104
    %v1188 = vld [vmem:[%s1187] sm:$0xff]
    %v1189 = vld [vmem:[%s1187 + $0x8] sm:$0xff]
    %v1190 = vld [vmem:[%s1187 + $0x10] sm:$0xff]
    %v1191 = vld [vmem:[%s1187 + $0x18] sm:$0xff]
    %v1192 = vld [vmem:[%s1187 + $0x20] sm:$0xff]
    %v1193 = vld [vmem:[%s1187 + $0x28] sm:$0xff]
    %v1194 = vld [vmem:[%s1187 + $0x30] sm:$0xff]
    %v1195 = vld [vmem:[%s1187 + $0x38] sm:$0xff]
    %v1196 = vld [vmem:[%s1187 + $0x40] sm:$0xff]
    %v1197 = vld [vmem:[%s1187 + $0x48] sm:$0xff]
    %v1198 = vld [vmem:[%s1187 + $0x50] sm:$0xff]
    %v1199 = vld [vmem:[%s1187 + $0x58] sm:$0xff]
    %v1200 = vld [vmem:[%s1187 + $0x60] sm:$0xff]
    %v1202 = vsel %vm680, %v1179, 0
    %v1205 = vsel %vm680, %v1184, 0
    %1207 = vmatprep.subr.mxu0 0.0
    %1208 = vmatpush1.msra.mxu0 0.0
    %1209 = vmatprep.subr.mxu0 0.0
    %1210 = vmatpush1.msra.mxu0 0.0
    %1211 = vmatprep.subr.mxu0 0.0
    %1212 = vmatpush1.msra.mxu0 0.0
    %1213 = vmatprep.subr.mxu0 0.0
    %1214 = vmatpush1.msra.mxu0 %v1200
    %1215 = vmatprep.subr.mxu0 0.0
    %1216 = vmatpush1.msra.mxu0 %v1199
    %1217 = vmatprep.subr.mxu0 0.0
    %1218 = vmatpush1.msra.mxu0 %v1198
    %1219 = vmatprep.subr.mxu0 0.0
    %1220 = vmatpush1.msra.mxu0 %v1197
    %1221 = vmatprep.subr.mxu0 0.0
    %1222 = vmatpush1.msra.mxu0 %v1196
    %1223 = vmatprep.subr.mxu0 0.0
    %1224 = vmatpush1.msra.mxu0 %v1195
    %1225 = vmatprep.subr.mxu0 0.0
    %1226 = vmatpush1.msra.mxu0 %v1194
    %1227 = vmatprep.subr.mxu0 0.0
    %1228 = vmatpush1.msra.mxu0 %v1193
    %1229 = vmatprep.subr.mxu0 0.0
    %1230 = vmatpush1.msra.mxu0 %v1192
    %1231 = vmatprep.subr.mxu0 0.0
    %1232 = vmatpush1.msra.mxu0 %v1191
    %1233 = vmatprep.subr.mxu0 0.0
    %1234 = vmatpush1.msra.mxu0 %v1190
    %1235 = vmatprep.subr.mxu0 0.0
    %1236 = vmatpush1.msra.mxu0 %v1189
    %1237 = vmatprep.subr.mxu0 0.0
    %1238 = vmatpush1.msra.mxu0 %v1188
    %1239 = vmatprep.subr.mxu0 0.0
    %1240 = vmatpush2.msra.mxu0 0.0
    %1241 = vmatprep.subr.mxu0 0.0
    %1242 = vmatpush2.msra.mxu0 0.0
    %1243 = vmatprep.subr.mxu0 0.0
    %1244 = vmatpush2.msra.mxu0 0.0
    %1245 = vmatprep.subr.mxu0 0.0
    %1246 = vmatpush2.msra.mxu0 0.0
    %1247 = vmatprep.subr.mxu0 0.0
    %1248 = vmatpush2.msra.mxu0 0.0
    %1249 = vmatprep.subr.mxu0 0.0
    %1250 = vmatpush2.msra.mxu0 0.0
    %1251 = vmatprep.subr.mxu0 0.0
    %1252 = vmatpush2.msra.mxu0 0.0
    %1253 = vmatprep.subr.mxu0 0.0
    %1254 = vmatpush2.msra.mxu0 0.0
    %1255 = vmatprep.subr.mxu0 0.0
    %1256 = vmatpush2.msra.mxu0 0.0
    %1257 = vmatprep.subr.mxu0 0.0
    %1258 = vmatpush2.msra.mxu0 0.0
    %1259 = vmatprep.subr.mxu0 0.0
    %1260 = vmatpush2.msra.mxu0 0.0
    %1261 = vmatprep.subr.mxu0 0.0
    %1262 = vmatpush2.msra.mxu0 0.0
    %1263 = vmatprep.subr.mxu0 0.0
    %1264 = vmatpush2.msra.mxu0 0.0
    %1265 = vmatprep.subr.mxu0 0.0
    %1266 = vmatpush2.msra.mxu0 0.0
    %1267 = vmatprep.subr.mxu0 0.0
    %1268 = vmatpush2.msra.mxu0 0.0
    %1269 = vmatprep.subr.mxu0 0.0
    %1270 = vmatpush2.msra.mxu0 0.0
    %1271 = vmatprep.mubr.f32.mxu0 0.0
    %1272 = vmatmul.mubr.f32.gmra.mxu0 %v1202
    %v1273 = vpop.f32.mrf.mxu0
    %v1274 = vadd.f32 0.0, %v1273
    %v1275 = vpop.f32.mrf.mxu0
    %1276 = vmatprep.mubr.f32.mxu0 0.0
    %1277 = vmatmul.mubr.f32.gmra.mxu0 %v1205
    %v1278 = vpop.f32.mrf.mxu0
    %v1279 = vadd.f32 0.0, %v1278
    %v1280 = vpop.f32.mrf.mxu0
    %1281 = vdwg.mxu0
    %v1283 = vsel %vm680, %v1082, 0
    %v1286 = vsel %vm680, %v1087, 0
    %1288 = vmatprep.subr.mxu0 0.0
    %1289 = vmatpush1.msra.mxu0 0.0
    %1290 = vmatprep.subr.mxu0 0.0
    %1291 = vmatpush1.msra.mxu0 0.0
    %1292 = vmatprep.subr.mxu0 0.0
    %1293 = vmatpush1.msra.mxu0 0.0
    %1294 = vmatprep.subr.mxu0 0.0
    %1295 = vmatpush1.msra.mxu0 %v1102
    %1296 = vmatprep.subr.mxu0 0.0
    %1297 = vmatpush1.msra.mxu0 %v1101
    %1298 = vmatprep.subr.mxu0 0.0
    %1299 = vmatpush1.msra.mxu0 %v1100
    %1300 = vmatprep.subr.mxu0 0.0
    %1301 = vmatpush1.msra.mxu0 %v1099
    %1302 = vmatprep.subr.mxu0 0.0
    %1303 = vmatpush1.msra.mxu0 %v1098
    %1304 = vmatprep.subr.mxu0 0.0
    %1305 = vmatpush1.msra.mxu0 %v1097
    %1306 = vmatprep.subr.mxu0 0.0
    %1307 = vmatpush1.msra.mxu0 %v1096
    %1308 = vmatprep.subr.mxu0 0.0
    %1309 = vmatpush1.msra.mxu0 %v1095
    %1310 = vmatprep.subr.mxu0 0.0
    %1311 = vmatpush1.msra.mxu0 %v1094
    %1312 = vmatprep.subr.mxu0 0.0
    %1313 = vmatpush1.msra.mxu0 %v1093
    %1314 = vmatprep.subr.mxu0 0.0
    %1315 = vmatpush1.msra.mxu0 %v1092
    %1316 = vmatprep.subr.mxu0 0.0
    %1317 = vmatpush1.msra.mxu0 %v1091
    %1318 = vmatprep.subr.mxu0 0.0
    %1319 = vmatpush1.msra.mxu0 %v1090
    %1320 = vmatprep.subr.mxu0 0.0
    %1321 = vmatpush2.msra.mxu0 0.0
    %1322 = vmatprep.subr.mxu0 0.0
    %1323 = vmatpush2.msra.mxu0 0.0
    %1324 = vmatprep.subr.mxu0 0.0
    %1325 = vmatpush2.msra.mxu0 0.0
    %1326 = vmatprep.subr.mxu0 0.0
    %1327 = vmatpush2.msra.mxu0 0.0
    %1328 = vmatprep.subr.mxu0 0.0
    %1329 = vmatpush2.msra.mxu0 0.0
    %1330 = vmatprep.subr.mxu0 0.0
    %1331 = vmatpush2.msra.mxu0 0.0
    %1332 = vmatprep.subr.mxu0 0.0
    %1333 = vmatpush2.msra.mxu0 0.0
    %1334 = vmatprep.subr.mxu0 0.0
    %1335 = vmatpush2.msra.mxu0 0.0
    %1336 = vmatprep.subr.mxu0 0.0
    %1337 = vmatpush2.msra.mxu0 0.0
    %1338 = vmatprep.subr.mxu0 0.0
    %1339 = vmatpush2.msra.mxu0 0.0
    %1340 = vmatprep.subr.mxu0 0.0
    %1341 = vmatpush2.msra.mxu0 0.0
    %1342 = vmatprep.subr.mxu0 0.0
    %1343 = vmatpush2.msra.mxu0 0.0
    %1344 = vmatprep.subr.mxu0 0.0
    %1345 = vmatpush2.msra.mxu0 0.0
    %1346 = vmatprep.subr.mxu0 0.0
    %1347 = vmatpush2.msra.mxu0 0.0
    %1348 = vmatprep.subr.mxu0 0.0
    %1349 = vmatpush2.msra.mxu0 0.0
    %1350 = vmatprep.subr.mxu0 0.0
    %1351 = vmatpush2.msra.mxu0 0.0
    %1352 = vmatprep.mubr.f32.mxu0 0.0
    %1353 = vmatmul.mubr.f32.gmra.mxu0 %v1283
    %v1354 = vpop.f32.mrf.mxu0
    %v1355 = vadd.f32 %v1274, %v1354
    %v1356 = vpop.f32.mrf.mxu0
    %1357 = vmatprep.mubr.f32.mxu0 0.0
    %1358 = vmatmul.mubr.f32.gmra.mxu0 %v1286
    %v1359 = vpop.f32.mrf.mxu0
    %v1360 = vadd.f32 %v1279, %v1359
    %v1361 = vpop.f32.mrf.mxu0
    %1362 = vdwg.mxu0
    %s1363 = scalar_lea.vmem %s3, 32
    %v1364 = vld [vmem:[%s1363] sm:$0xff]
    %v1365 = vld [vmem:[%s1363 + $0x8] sm:$0xf]
    %v1367 = vsel %vm1004, %v1364, 0
    %v1370 = vsel %vm1004, %v1365, 0
    %1372 = vmatprep.subr.mxu0 0.0
    %1373 = vmatpush1.msra.mxu0 0.0
    %1374 = vmatprep.subr.mxu0 0.0
    %1375 = vmatpush1.msra.mxu0 0.0
    %1376 = vmatprep.subr.mxu0 0.0
    %1377 = vmatpush1.msra.mxu0 0.0
    %1378 = vmatprep.subr.mxu0 0.0
    %1379 = vmatpush1.msra.mxu0 0.0
    %1380 = vmatprep.subr.mxu0 0.0
    %1381 = vmatpush1.msra.mxu0 0.0
    %1382 = vmatprep.subr.mxu0 0.0
    %1383 = vmatpush1.msra.mxu0 0.0
    %1384 = vmatprep.subr.mxu0 0.0
    %1385 = vmatpush1.msra.mxu0 0.0
    %1386 = vmatprep.subr.mxu0 0.0
    %1387 = vmatpush1.msra.mxu0 0.0
    %1388 = vmatprep.subr.mxu0 0.0
    %1389 = vmatpush1.msra.mxu0 0.0
    %1390 = vmatprep.subr.mxu0 0.0
    %1391 = vmatpush1.msra.mxu0 0.0
    %1392 = vmatprep.subr.mxu0 0.0
    %1393 = vmatpush1.msra.mxu0 0.0
    %1394 = vmatprep.subr.mxu0 0.0
    %1395 = vmatpush1.msra.mxu0 0.0
    %1396 = vmatprep.subr.mxu0 0.0
    %1397 = vmatpush1.msra.mxu0 %v1013
    %1398 = vmatprep.subr.mxu0 0.0
    %1399 = vmatpush1.msra.mxu0 %v1000
    %1400 = vmatprep.subr.mxu0 0.0
    %1401 = vmatpush1.msra.mxu0 %v999
    %1402 = vmatprep.subr.mxu0 0.0
    %1403 = vmatpush1.msra.mxu0 %v998
    %1404 = vmatprep.subr.mxu0 0.0
    %1405 = vmatpush2.msra.mxu0 0.0
    %1406 = vmatprep.subr.mxu0 0.0
    %1407 = vmatpush2.msra.mxu0 0.0
    %1408 = vmatprep.subr.mxu0 0.0
    %1409 = vmatpush2.msra.mxu0 0.0
    %1410 = vmatprep.subr.mxu0 0.0
    %1411 = vmatpush2.msra.mxu0 0.0
    %1412 = vmatprep.subr.mxu0 0.0
    %1413 = vmatpush2.msra.mxu0 0.0
    %1414 = vmatprep.subr.mxu0 0.0
    %1415 = vmatpush2.msra.mxu0 0.0
    %1416 = vmatprep.subr.mxu0 0.0
    %1417 = vmatpush2.msra.mxu0 0.0
    %1418 = vmatprep.subr.mxu0 0.0
    %1419 = vmatpush2.msra.mxu0 0.0
    %1420 = vmatprep.subr.mxu0 0.0
    %1421 = vmatpush2.msra.mxu0 0.0
    %1422 = vmatprep.subr.mxu0 0.0
    %1423 = vmatpush2.msra.mxu0 0.0
    %1424 = vmatprep.subr.mxu0 0.0
    %1425 = vmatpush2.msra.mxu0 0.0
    %1426 = vmatprep.subr.mxu0 0.0
    %1427 = vmatpush2.msra.mxu0 0.0
    %1428 = vmatprep.subr.mxu0 0.0
    %1429 = vmatpush2.msra.mxu0 0.0
    %1430 = vmatprep.subr.mxu0 0.0
    %1431 = vmatpush2.msra.mxu0 0.0
    %1432 = vmatprep.subr.mxu0 0.0
    %1433 = vmatpush2.msra.mxu0 0.0
    %1434 = vmatprep.subr.mxu0 0.0
    %1435 = vmatpush2.msra.mxu0 0.0
    %1436 = vmatprep.mubr.f32.mxu0 0.0
    %1437 = vmatmul.mubr.f32.gmra.mxu0 %v1367
    %v1438 = vpop.f32.mrf.mxu0
    %v1439 = vadd.f32 0.0, %v1438
    %v1440 = vpop.f32.mrf.mxu0
    %1441 = vmatprep.mubr.f32.mxu0 0.0
    %1442 = vmatmul.mubr.f32.gmra.mxu0 %v1370
    %v1443 = vpop.f32.mrf.mxu0
    %v1444 = vadd.f32 0.0, %v1443
    %v1445 = vpop.f32.mrf.mxu0
    %1446 = vdwg.mxu0
    %s1447 = scalar_lea.vmem %s4, 208
    %v1448 = vld [vmem:[%s1447] sm:$0xff]
    %v1449 = vld [vmem:[%s1447 + $0x8] sm:$0xff]
    %v1450 = vld [vmem:[%s1447 + $0x10] sm:$0xff]
    %v1451 = vld [vmem:[%s1447 + $0x18] sm:$0xff]
    %v1452 = vld [vmem:[%s1447 + $0x20] sm:$0xff]
    %v1453 = vld [vmem:[%s1447 + $0x28] sm:$0xff]
    %v1454 = vld [vmem:[%s1447 + $0x30] sm:$0xff]
    %v1455 = vld [vmem:[%s1447 + $0x38] sm:$0xff]
    %v1456 = vld [vmem:[%s1447 + $0x40] sm:$0xff]
    %v1457 = vld [vmem:[%s1447 + $0x48] sm:$0xff]
    %v1458 = vld [vmem:[%s1447 + $0x50] sm:$0xff]
    %v1459 = vld [vmem:[%s1447 + $0x58] sm:$0xff]
    %v1460 = vld [vmem:[%s1447 + $0x60] sm:$0xff]
    %v1462 = vsel %vm680, %v1439, 0
    %v1465 = vsel %vm680, %v1444, 0
    %1467 = vmatprep.subr.mxu0 0.0
    %1468 = vmatpush1.msra.mxu0 0.0
    %1469 = vmatprep.subr.mxu0 0.0
    %1470 = vmatpush1.msra.mxu0 0.0
    %1471 = vmatprep.subr.mxu0 0.0
    %1472 = vmatpush1.msra.mxu0 0.0
    %1473 = vmatprep.subr.mxu0 0.0
    %1474 = vmatpush1.msra.mxu0 %v1460
    %1475 = vmatprep.subr.mxu0 0.0
    %1476 = vmatpush1.msra.mxu0 %v1459
    %1477 = vmatprep.subr.mxu0 0.0
    %1478 = vmatpush1.msra.mxu0 %v1458
    %1479 = vmatprep.subr.mxu0 0.0
    %1480 = vmatpush1.msra.mxu0 %v1457
    %1481 = vmatprep.subr.mxu0 0.0
    %1482 = vmatpush1.msra.mxu0 %v1456
    %1483 = vmatprep.subr.mxu0 0.0
    %1484 = vmatpush1.msra.mxu0 %v1455
    %1485 = vmatprep.subr.mxu0 0.0
    %1486 = vmatpush1.msra.mxu0 %v1454
    %1487 = vmatprep.subr.mxu0 0.0
    %1488 = vmatpush1.msra.mxu0 %v1453
    %1489 = vmatprep.subr.mxu0 0.0
    %1490 = vmatpush1.msra.mxu0 %v1452
    %1491 = vmatprep.subr.mxu0 0.0
    %1492 = vmatpush1.msra.mxu0 %v1451
    %1493 = vmatprep.subr.mxu0 0.0
    %1494 = vmatpush1.msra.mxu0 %v1450
    %1495 = vmatprep.subr.mxu0 0.0
    %1496 = vmatpush1.msra.mxu0 %v1449
    %1497 = vmatprep.subr.mxu0 0.0
    %1498 = vmatpush1.msra.mxu0 %v1448
    %1499 = vmatprep.subr.mxu0 0.0
    %1500 = vmatpush2.msra.mxu0 0.0
    %1501 = vmatprep.subr.mxu0 0.0
    %1502 = vmatpush2.msra.mxu0 0.0
    %1503 = vmatprep.subr.mxu0 0.0
    %1504 = vmatpush2.msra.mxu0 0.0
    %1505 = vmatprep.subr.mxu0 0.0
    %1506 = vmatpush2.msra.mxu0 0.0
    %1507 = vmatprep.subr.mxu0 0.0
    %1508 = vmatpush2.msra.mxu0 0.0
    %1509 = vmatprep.subr.mxu0 0.0
    %1510 = vmatpush2.msra.mxu0 0.0
    %1511 = vmatprep.subr.mxu0 0.0
    %1512 = vmatpush2.msra.mxu0 0.0
    %1513 = vmatprep.subr.mxu0 0.0
    %1514 = vmatpush2.msra.mxu0 0.0
    %1515 = vmatprep.subr.mxu0 0.0
    %1516 = vmatpush2.msra.mxu0 0.0
    %1517 = vmatprep.subr.mxu0 0.0
    %1518 = vmatpush2.msra.mxu0 0.0
    %1519 = vmatprep.subr.mxu0 0.0
    %1520 = vmatpush2.msra.mxu0 0.0
    %1521 = vmatprep.subr.mxu0 0.0
    %1522 = vmatpush2.msra.mxu0 0.0
    %1523 = vmatprep.subr.mxu0 0.0
    %1524 = vmatpush2.msra.mxu0 0.0
    %1525 = vmatprep.subr.mxu0 0.0
    %1526 = vmatpush2.msra.mxu0 0.0
    %1527 = vmatprep.subr.mxu0 0.0
    %1528 = vmatpush2.msra.mxu0 0.0
    %1529 = vmatprep.subr.mxu0 0.0
    %1530 = vmatpush2.msra.mxu0 0.0
    %1531 = vmatprep.mubr.f32.mxu0 0.0
    %1532 = vmatmul.mubr.f32.gmra.mxu0 %v1462
    %v1533 = vpop.f32.mrf.mxu0
    %v1534 = vadd.f32 0.0, %v1533
    %v1535 = vpop.f32.mrf.mxu0
    %1536 = vmatprep.mubr.f32.mxu0 0.0
    %1537 = vmatmul.mubr.f32.gmra.mxu0 %v1465
    %v1538 = vpop.f32.mrf.mxu0
    %v1539 = vadd.f32 0.0, %v1538
    %v1540 = vpop.f32.mrf.mxu0
    %1541 = vdwg.mxu0
    %v1542 = vadd.f32 %v1355, %v1534
    %v1543 = vadd.f32 %v1360, %v1539
    %v1544 = vsel %vm804, %v1542, 0.0
    %vm1545 = vcmask 781312
    %v1546 = vsel %vm1545, %v1543, 0.0
    %v1547 = vadd.f32 %v1544, %v1546
    %v1548 = vrot.slane %v1547, 4
    %v1549 = vadd.f32 %v1547, %v1548
    %v1550 = vrot.slane %v1549, 2
    %v1551 = vadd.f32 %v1549, %v1550
    %v1552 = vrot.slane %v1551, 1
    %v1553 = vadd.f32 %v1551, %v1552
    %1555 = vrot.lane.b32.xlu0 %v1553, 112
    %v1556 = vpop.permute.xlu0 %1555
    %v1558 = vadd.f32 %v1553, %v1556
    %1559 = vrot.lane.b32.xlu0 %v1553, 96
    %v1560 = vpop.permute.xlu0 %1559
    %v1562 = vadd.f32 %v1558, %v1560
    %1563 = vrot.lane.b32.xlu0 %v1553, 80
    %v1564 = vpop.permute.xlu0 %1563
    %v1566 = vadd.f32 %v1562, %v1564
    %1567 = vrot.lane.b32.xlu0 %v1553, 64
    %v1568 = vpop.permute.xlu0 %1567
    %v1570 = vadd.f32 %v1566, %v1568
    %1571 = vrot.lane.b32.xlu0 %v1553, 48
    %v1572 = vpop.permute.xlu0 %1571
    %v1574 = vadd.f32 %v1570, %v1572
    %v1575 = vrcp.pop 72.0
    %v1576 = vmul.f32 %v1574, %v1575
    %1578 = vrot.lane.b32.xlu0 %v1576, 16
    %v1579 = vpop.permute.xlu0 %1578
    %1581 = vrot.lane.b32.xlu0 %v1576, 32
    %v1582 = vpop.permute.xlu0 %1581
    %1584 = vrot.lane.b32.xlu0 %v1576, 48
    %v1585 = vpop.permute.xlu0 %1584
    %1587 = vrot.lane.b32.xlu0 %v1576, 64
    %v1588 = vpop.permute.xlu0 %1587
    %1590 = vrot.lane.b32.xlu0 %v1576, 80
    %v1591 = vpop.permute.xlu0 %1590
    %v1593 = vsel %vm785, %v1576, %v1579
    %v1594 = vsel %vm789, %v1593, %v1582
    %v1595 = vsel %vm793, %v1594, %v1585
    %v1596 = vsel %vm796, %v1595, %v1588
    %v1597 = vsel %vm800, %v1596, %v1591
    %v1598 = vlaneseq
    %v1599 = vshrl.u32 %v1598, 7
    %v1600 = vsub.s32 0, %v1599
    %v1601 = vrot.slane %v1597, %v1600
    %v1602 = vsub.f32 %v1542, %v1601
    %v1603 = vsub.f32 %v1543, %v1601
    %v1604 = vmul.f32 %v1602, %v1602
    %v1605 = vmul.f32 %v1603, %v1603
    %v1606 = vsel %vm804, %v1604, 0.0
    %v1607 = vsel %vm1545, %v1605, 0.0
    %v1608 = vadd.f32 %v1606, %v1607
    %v1609 = vrot.slane %v1608, 4
    %v1610 = vadd.f32 %v1608, %v1609
    %v1611 = vrot.slane %v1610, 2
    %v1612 = vadd.f32 %v1610, %v1611
    %v1613 = vrot.slane %v1612, 1
    %v1614 = vadd.f32 %v1612, %v1613
    %1616 = vrot.lane.b32.xlu0 %v1614, 112
    %v1617 = vpop.permute.xlu0 %1616
    %v1619 = vadd.f32 %v1614, %v1617
    %1620 = vrot.lane.b32.xlu0 %v1614, 96
    %v1621 = vpop.permute.xlu0 %1620
    %v1623 = vadd.f32 %v1619, %v1621
    %1624 = vrot.lane.b32.xlu0 %v1614, 80
    %v1625 = vpop.permute.xlu0 %1624
    %v1627 = vadd.f32 %v1623, %v1625
    %1628 = vrot.lane.b32.xlu0 %v1614, 64
    %v1629 = vpop.permute.xlu0 %1628
    %v1631 = vadd.f32 %v1627, %v1629
    %1632 = vrot.lane.b32.xlu0 %v1614, 48
    %v1633 = vpop.permute.xlu0 %1632
    %v1635 = vadd.f32 %v1631, %v1633
    %v1636 = vmul.f32 %v1635, %v1575
    %v1637 = vadd.f32 %v1636, 1e-05
    %v1638 = vrsqrt.pop %v1637
    %v1640 = vrot.slane %v1638, 6
    %v1642 = vmul.f32 %v44, %v1640
    %1644 = vrot.lane.b32.xlu0 %v1642, 16
    %v1645 = vpop.permute.xlu0 %1644
    %1647 = vrot.lane.b32.xlu0 %v1642, 32
    %v1648 = vpop.permute.xlu0 %1647
    %1650 = vrot.lane.b32.xlu0 %v1642, 48
    %v1651 = vpop.permute.xlu0 %1650
    %1653 = vrot.lane.b32.xlu0 %v1642, 64
    %v1654 = vpop.permute.xlu0 %1653
    %1656 = vrot.lane.b32.xlu0 %v1642, 80
    %v1657 = vpop.permute.xlu0 %1656
    %v1659 = vsel %vm785, %v1642, %v1645
    %v1660 = vsel %vm789, %v1659, %v1648
    %v1661 = vsel %vm793, %v1660, %v1651
    %v1662 = vsel %vm796, %v1661, %v1654
    %v1663 = vsel %vm800, %v1662, %v1657
    %v1664 = vlaneseq
    %v1665 = vshrl.u32 %v1664, 7
    %v1666 = vsub.s32 2, %v1665
    %v1667 = vrot.slane %v1663, %v1666
    %v1668 = vmul.f32 %v1602, %v1667
    %v1669 = vmul.f32 %v1603, %v1667
    %v1670 = vsel %vm785, %v44, %v946
    %v1671 = vsel %vm789, %v1670, %v952
    %v1672 = vsel %vm793, %v1671, %v958
    %v1673 = vsel %vm796, %v1672, %v964
    %v1674 = vsel %vm800, %v1673, %v970
    %v1675 = vlaneseq
    %v1676 = vshrl.u32 %v1675, 7
    %v1677 = vsub.s32 3, %v1676
    %v1678 = vrot.slane %v1674, %v1677
    %v1679 = vadd.f32 %v1668, %v1678
    %v1680 = vadd.f32 %v1669, %v1678
    %v1681 = vmax.f32 %v1679, 0.0
    %v1682 = vmax.f32 %v1680, 0.0
    %v1683 = vld [vmem:[#allocation2] sm:$0xff]
    %v1684 = vld [vmem:[#allocation2 + $0x8] sm:$0xff]
    %v1685 = vld [vmem:[#allocation2 + $0x10] sm:$0xff]
    %v1686 = vld [vmem:[#allocation2 + $0x18] sm:$0xff]
    %v1687 = vld [vmem:[#allocation2 + $0x20] sm:$0xff]
    %v1688 = vld [vmem:[#allocation2 + $0x28] sm:$0xff]
    %v1689 = vld [vmem:[#allocation2 + $0x30] sm:$0xff]
    %v1690 = vld [vmem:[#allocation2 + $0x38] sm:$0xff]
    %v1691 = vld [vmem:[#allocation2 + $0x40] sm:$0xff]
    %v1692 = vld [vmem:[#allocation2 + $0x48] sm:$0xff]
    %v1693 = vld [vmem:[#allocation2 + $0x50] sm:$0xff]
    %v1694 = vld [vmem:[#allocation2 + $0x58] sm:$0xff]
    %v1695 = vld [vmem:[#allocation2 + $0x60] sm:$0xff]
    %v1696 = vld [vmem:[#allocation2 + $0x68] sm:$0xff]
    %v1697 = vld [vmem:[#allocation2 + $0x70] sm:$0xff]
    %v1698 = vld [vmem:[#allocation2 + $0x78] sm:$0xff]
    %v1699 = vld [vmem:[#allocation2 + $0x80] sm:$0xff]
    %v1700 = vld [vmem:[#allocation2 + $0x88] sm:$0xff]
    %v1701 = vld [vmem:[#allocation2 + $0x90] sm:$0xff]
    %v1702 = vld [vmem:[#allocation2 + $0x98] sm:$0xff]
    %v1703 = vld [vmem:[#allocation2 + $0xa0] sm:$0xff]
    %v1704 = vld [vmem:[#allocation2 + $0xa8] sm:$0xff]
    %v1705 = vld [vmem:[#allocation2 + $0xb0] sm:$0xff]
    %v1706 = vld [vmem:[#allocation2 + $0xb8] sm:$0xff]
    %v1707 = vld [vmem:[#allocation2 + $0xc0] sm:$0xff]
    %v1708 = vld [vmem:[#allocation2 + $0xc8] sm:$0xff]
    %v1709 = vld [vmem:[#allocation2 + $0xd0] sm:$0xff]
    %v1710 = vld [vmem:[#allocation2 + $0xd8] sm:$0xff]
    %v1711 = vld [vmem:[#allocation2 + $0xe0] sm:$0xff]
    %v1712 = vld [vmem:[#allocation2 + $0xe8] sm:$0xff]
    %v1713 = vld [vmem:[#allocation2 + $0xf0] sm:$0xff]
    %v1714 = vld [vmem:[#allocation2 + $0xf8] sm:$0xff]
    %v1715 = vld [vmem:[#allocation2 + $0x100] sm:$0xff]
    %v1716 = vld [vmem:[#allocation2 + $0x108] sm:$0xff]
    %v1717 = vld [vmem:[#allocation2 + $0x110] sm:$0xff]
    %v1718 = vld [vmem:[#allocation2 + $0x118] sm:$0xff]
    %s1719 = scalar_lea.vmem [#allocation2], 288
    %v1720 = vld [vmem:[%s1719] sm:$0xff]
    %v1721 = vld [vmem:[%s1719 + $0x8] sm:$0xff]
    %v1722 = vld [vmem:[%s1719 + $0x10] sm:$0xff]
    %v1723 = vld [vmem:[%s1719 + $0x18] sm:$0xff]
    %v1724 = vld [vmem:[%s1719 + $0x20] sm:$0xff]
    %v1725 = vld [vmem:[%s1719 + $0x28] sm:$0xff]
    %v1726 = vld [vmem:[%s1719 + $0x30] sm:$0xff]
    %v1727 = vld [vmem:[%s1719 + $0x38] sm:$0xff]
    %v1728 = vld [vmem:[%s1719 + $0x40] sm:$0xff]
    %v1729 = vld [vmem:[%s1719 + $0x48] sm:$0xff]
    %v1730 = vld [vmem:[%s1719 + $0x50] sm:$0xff]
    %v1731 = vld [vmem:[%s1719 + $0x58] sm:$0xff]
    %v1732 = vld [vmem:[%s1719 + $0x60] sm:$0xff]
    %v1733 = vld [vmem:[%s1719 + $0x68] sm:$0xff]
    %v1734 = vld [vmem:[%s1719 + $0x70] sm:$0xff]
    %v1735 = vld [vmem:[%s1719 + $0x78] sm:$0xff]
    %v1736 = vld [vmem:[%s1719 + $0x80] sm:$0xff]
    %v1737 = vld [vmem:[%s1719 + $0x88] sm:$0xff]
    %v1738 = vld [vmem:[%s1719 + $0x90] sm:$0xff]
    %v1739 = vld [vmem:[%s1719 + $0x98] sm:$0xff]
    %v1740 = vld [vmem:[%s1719 + $0xa0] sm:$0xff]
    %v1741 = vld [vmem:[%s1719 + $0xa8] sm:$0xff]
    %v1742 = vld [vmem:[%s1719 + $0xb0] sm:$0xff]
    %v1743 = vld [vmem:[%s1719 + $0xb8] sm:$0xff]
    %v1744 = vld [vmem:[%s1719 + $0xc0] sm:$0xff]
    %v1745 = vld [vmem:[%s1719 + $0xc8] sm:$0xff]
    %v1746 = vld [vmem:[%s1719 + $0xd0] sm:$0xff]
    %v1747 = vld [vmem:[%s1719 + $0xd8] sm:$0xff]
    %v1748 = vld [vmem:[%s1719 + $0xe0] sm:$0xff]
    %v1749 = vld [vmem:[%s1719 + $0xe8] sm:$0xff]
    %v1750 = vld [vmem:[%s1719 + $0xf0] sm:$0xff]
    %v1751 = vld [vmem:[%s1719 + $0xf8] sm:$0xff]
    %v1752 = vld [vmem:[%s1719 + $0x100] sm:$0xff]
    %v1753 = vld [vmem:[%s1719 + $0x108] sm:$0xff]
    %v1754 = vld [vmem:[%s1719 + $0x110] sm:$0xff]
    %v1755 = vld [vmem:[%s1719 + $0x118] sm:$0xff]
    %v1757 = vrot.slane %v1681, 2
    %v1758 = vsel %vm804, %v1757, 0
    %1760 = vmatprep.subr.mxu0 0.0
    %1761 = vmatpush1.msra.mxu0 0.0
    %1762 = vmatprep.subr.mxu0 0.0
    %1763 = vmatpush1.msra.mxu0 0.0
    %1764 = vmatprep.subr.mxu0 0.0
    %1765 = vmatpush1.msra.mxu0 0.0
    %1766 = vmatprep.subr.mxu0 0.0
    %1767 = vmatpush1.msra.mxu0 0.0
    %1768 = vmatprep.subr.mxu0 %v1754
    %1769 = vmatpush1.msra.mxu0 %v1753
    %1770 = vmatprep.subr.mxu0 %v1751
    %1771 = vmatpush1.msra.mxu0 %v1750
    %1772 = vmatprep.subr.mxu0 %v1748
    %1773 = vmatpush1.msra.mxu0 %v1747
    %1774 = vmatprep.subr.mxu0 %v1745
    %1775 = vmatpush1.msra.mxu0 %v1744
    %1776 = vmatprep.subr.mxu0 %v1742
    %1777 = vmatpush1.msra.mxu0 %v1741
    %1778 = vmatprep.subr.mxu0 %v1739
    %1779 = vmatpush1.msra.mxu0 %v1738
    %1780 = vmatprep.subr.mxu0 %v1736
    %1781 = vmatpush1.msra.mxu0 %v1735
    %1782 = vmatprep.subr.mxu0 %v1733
    %1783 = vmatpush1.msra.mxu0 %v1732
    %1784 = vmatprep.subr.mxu0 %v1730
    %1785 = vmatpush1.msra.mxu0 %v1729
    %1786 = vmatprep.subr.mxu0 %v1727
    %1787 = vmatpush1.msra.mxu0 %v1726
    %1788 = vmatprep.subr.mxu0 %v1724
    %1789 = vmatpush1.msra.mxu0 %v1723
    %1790 = vmatprep.subr.mxu0 %v1721
    %1791 = vmatpush1.msra.mxu0 %v1720
    %1792 = vmatprep.subr.mxu0 0.0
    %1793 = vmatpush2.msra.mxu0 0.0
    %1794 = vmatprep.subr.mxu0 0.0
    %1795 = vmatpush2.msra.mxu0 0.0
    %1796 = vmatprep.subr.mxu0 0.0
    %1797 = vmatpush2.msra.mxu0 0.0
    %1798 = vmatprep.subr.mxu0 0.0
    %1799 = vmatpush2.msra.mxu0 0.0
    %1800 = vmatprep.subr.mxu0 0.0
    %1801 = vmatpush2.msra.mxu0 0.0
    %1802 = vmatprep.subr.mxu0 0.0
    %1803 = vmatpush2.msra.mxu0 0.0
    %1804 = vmatprep.subr.mxu0 0.0
    %1805 = vmatpush2.msra.mxu0 0.0
    %1806 = vmatprep.subr.mxu0 0.0
    %1807 = vmatpush2.msra.mxu0 0.0
    %1808 = vmatprep.subr.mxu0 0.0
    %1809 = vmatpush2.msra.mxu0 0.0
    %1810 = vmatprep.subr.mxu0 0.0
    %1811 = vmatpush2.msra.mxu0 0.0
    %1812 = vmatprep.subr.mxu0 0.0
    %1813 = vmatpush2.msra.mxu0 0.0
    %1814 = vmatprep.subr.mxu0 0.0
    %1815 = vmatpush2.msra.mxu0 0.0
    %1816 = vmatprep.subr.mxu0 0.0
    %1817 = vmatpush2.msra.mxu0 0.0
    %1818 = vmatprep.subr.mxu0 0.0
    %1819 = vmatpush2.msra.mxu0 0.0
    %1820 = vmatprep.subr.mxu0 0.0
    %1821 = vmatpush2.msra.mxu0 0.0
    %1822 = vmatprep.subr.mxu0 0.0
    %1823 = vmatpush2.msra.mxu0 0.0
    %1824 = vmatprep.mubr.f32.mxu0 0.0
    %1825 = vmatmul.mubr.f32.gmra.mxu0 %v1758
    %v1826 = vpop.f32.mrf.mxu0
    %v1827 = vadd.f32 0.0, %v1826
    %v1828 = vpop.f32.mrf.mxu0
    %v1829 = vadd.f32 0.0, %v1828
    %1830 = vdwg.mxu0
    %1831 = vmatprep.subr.mxu0 0.0
    %1832 = vmatpush1.msra.mxu0 0.0
    %1833 = vmatprep.subr.mxu0 0.0
    %1834 = vmatpush1.msra.mxu0 0.0
    %1835 = vmatprep.subr.mxu0 0.0
    %1836 = vmatpush1.msra.mxu0 0.0
    %1837 = vmatprep.subr.mxu0 0.0
    %1838 = vmatpush1.msra.mxu0 0.0
    %1839 = vmatprep.subr.mxu0 0.0
    %1840 = vmatpush1.msra.mxu0 %v1755
    %1841 = vmatprep.subr.mxu0 0.0
    %1842 = vmatpush1.msra.mxu0 %v1752
    %1843 = vmatprep.subr.mxu0 0.0
    %1844 = vmatpush1.msra.mxu0 %v1749
    %1845 = vmatprep.subr.mxu0 0.0
    %1846 = vmatpush1.msra.mxu0 %v1746
    %1847 = vmatprep.subr.mxu0 0.0
    %1848 = vmatpush1.msra.mxu0 %v1743
    %1849 = vmatprep.subr.mxu0 0.0
    %1850 = vmatpush1.msra.mxu0 %v1740
    %1851 = vmatprep.subr.mxu0 0.0
    %1852 = vmatpush1.msra.mxu0 %v1737
    %1853 = vmatprep.subr.mxu0 0.0
    %1854 = vmatpush1.msra.mxu0 %v1734
    %1855 = vmatprep.subr.mxu0 0.0
    %1856 = vmatpush1.msra.mxu0 %v1731
    %1857 = vmatprep.subr.mxu0 0.0
    %1858 = vmatpush1.msra.mxu0 %v1728
    %1859 = vmatprep.subr.mxu0 0.0
    %1860 = vmatpush1.msra.mxu0 %v1725
    %1861 = vmatprep.subr.mxu0 0.0
    %1862 = vmatpush1.msra.mxu0 %v1722
    %1863 = vmatprep.subr.mxu0 0.0
    %1864 = vmatpush2.msra.mxu0 0.0
    %1865 = vmatprep.subr.mxu0 0.0
    %1866 = vmatpush2.msra.mxu0 0.0
    %1867 = vmatprep.subr.mxu0 0.0
    %1868 = vmatpush2.msra.mxu0 0.0
    %1869 = vmatprep.subr.mxu0 0.0
    %1870 = vmatpush2.msra.mxu0 0.0
    %1871 = vmatprep.subr.mxu0 0.0
    %1872 = vmatpush2.msra.mxu0 0.0
    %1873 = vmatprep.subr.mxu0 0.0
    %1874 = vmatpush2.msra.mxu0 0.0
    %1875 = vmatprep.subr.mxu0 0.0
    %1876 = vmatpush2.msra.mxu0 0.0
    %1877 = vmatprep.subr.mxu0 0.0
    %1878 = vmatpush2.msra.mxu0 0.0
    %1879 = vmatprep.subr.mxu0 0.0
    %1880 = vmatpush2.msra.mxu0 0.0
    %1881 = vmatprep.subr.mxu0 0.0
    %1882 = vmatpush2.msra.mxu0 0.0
    %1883 = vmatprep.subr.mxu0 0.0
    %1884 = vmatpush2.msra.mxu0 0.0
    %1885 = vmatprep.subr.mxu0 0.0
    %1886 = vmatpush2.msra.mxu0 0.0
    %1887 = vmatprep.subr.mxu0 0.0
    %1888 = vmatpush2.msra.mxu0 0.0
    %1889 = vmatprep.subr.mxu0 0.0
    %1890 = vmatpush2.msra.mxu0 0.0
    %1891 = vmatprep.subr.mxu0 0.0
    %1892 = vmatpush2.msra.mxu0 0.0
    %1893 = vmatprep.subr.mxu0 0.0
    %1894 = vmatpush2.msra.mxu0 0.0
    %1895 = vmatprep.mubr.f32.mxu0 0.0
    %1896 = vmatmul.mubr.f32.gmra.mxu0 %v1758
    %v1897 = vpop.f32.mrf.mxu0
    %v1898 = vadd.f32 0.0, %v1897
    %v1899 = vpop.f32.mrf.mxu0
    %1900 = vdwg.mxu0
    %v1901 = vsel %vm804, %v1681, 0
    %1903 = vmatprep.subr.mxu0 0.0
    %1904 = vmatpush1.msra.mxu0 0.0
    %1905 = vmatprep.subr.mxu0 0.0
    %1906 = vmatpush1.msra.mxu0 0.0
    %1907 = vmatprep.subr.mxu0 0.0
    %1908 = vmatpush1.msra.mxu0 0.0
    %1909 = vmatprep.subr.mxu0 0.0
    %1910 = vmatpush1.msra.mxu0 0.0
    %1911 = vmatprep.subr.mxu0 %v1717
    %1912 = vmatpush1.msra.mxu0 %v1716
    %1913 = vmatprep.subr.mxu0 %v1714
    %1914 = vmatpush1.msra.mxu0 %v1713
    %1915 = vmatprep.subr.mxu0 %v1711
    %1916 = vmatpush1.msra.mxu0 %v1710
    %1917 = vmatprep.subr.mxu0 %v1708
    %1918 = vmatpush1.msra.mxu0 %v1707
    %1919 = vmatprep.subr.mxu0 %v1705
    %1920 = vmatpush1.msra.mxu0 %v1704
    %1921 = vmatprep.subr.mxu0 %v1702
    %1922 = vmatpush1.msra.mxu0 %v1701
    %1923 = vmatprep.subr.mxu0 %v1699
    %1924 = vmatpush1.msra.mxu0 %v1698
    %1925 = vmatprep.subr.mxu0 %v1696
    %1926 = vmatpush1.msra.mxu0 %v1695
    %1927 = vmatprep.subr.mxu0 %v1693
    %1928 = vmatpush1.msra.mxu0 %v1692
    %1929 = vmatprep.subr.mxu0 %v1690
    %1930 = vmatpush1.msra.mxu0 %v1689
    %1931 = vmatprep.subr.mxu0 %v1687
    %1932 = vmatpush1.msra.mxu0 %v1686
    %1933 = vmatprep.subr.mxu0 %v1684
    %1934 = vmatpush1.msra.mxu0 %v1683
    %1935 = vmatprep.subr.mxu0 0.0
    %1936 = vmatpush2.msra.mxu0 0.0
    %1937 = vmatprep.subr.mxu0 0.0
    %1938 = vmatpush2.msra.mxu0 0.0
    %1939 = vmatprep.subr.mxu0 0.0
    %1940 = vmatpush2.msra.mxu0 0.0
    %1941 = vmatprep.subr.mxu0 0.0
    %1942 = vmatpush2.msra.mxu0 0.0
    %1943 = vmatprep.subr.mxu0 0.0
    %1944 = vmatpush2.msra.mxu0 0.0
    %1945 = vmatprep.subr.mxu0 0.0
    %1946 = vmatpush2.msra.mxu0 0.0
    %1947 = vmatprep.subr.mxu0 0.0
    %1948 = vmatpush2.msra.mxu0 0.0
    %1949 = vmatprep.subr.mxu0 0.0
    %1950 = vmatpush2.msra.mxu0 0.0
    %1951 = vmatprep.subr.mxu0 0.0
    %1952 = vmatpush2.msra.mxu0 0.0
    %1953 = vmatprep.subr.mxu0 0.0
    %1954 = vmatpush2.msra.mxu0 0.0
    %1955 = vmatprep.subr.mxu0 0.0
    %1956 = vmatpush2.msra.mxu0 0.0
    %1957 = vmatprep.subr.mxu0 0.0
    %1958 = vmatpush2.msra.mxu0 0.0
    %1959 = vmatprep.subr.mxu0 0.0
    %1960 = vmatpush2.msra.mxu0 0.0
    %1961 = vmatprep.subr.mxu0 0.0
    %1962 = vmatpush2.msra.mxu0 0.0
    %1963 = vmatprep.subr.mxu0 0.0
    %1964 = vmatpush2.msra.mxu0 0.0
    %1965 = vmatprep.subr.mxu0 0.0
    %1966 = vmatpush2.msra.mxu0 0.0
    %1967 = vmatprep.mubr.f32.mxu0 0.0
    %1968 = vmatmul.mubr.f32.gmra.mxu0 %v1901
    %v1969 = vpop.f32.mrf.mxu0
    %v1970 = vadd.f32 %v1827, %v1969
    %v1971 = vpop.f32.mrf.mxu0
    %v1972 = vadd.f32 %v1829, %v1971
    %1973 = vdwg.mxu0
    %1974 = vmatprep.subr.mxu0 0.0
    %1975 = vmatpush1.msra.mxu0 0.0
    %1976 = vmatprep.subr.mxu0 0.0
    %1977 = vmatpush1.msra.mxu0 0.0
    %1978 = vmatprep.subr.mxu0 0.0
    %1979 = vmatpush1.msra.mxu0 0.0
    %1980 = vmatprep.subr.mxu0 0.0
    %1981 = vmatpush1.msra.mxu0 0.0
    %1982 = vmatprep.subr.mxu0 0.0
    %1983 = vmatpush1.msra.mxu0 %v1718
    %1984 = vmatprep.subr.mxu0 0.0
    %1985 = vmatpush1.msra.mxu0 %v1715
    %1986 = vmatprep.subr.mxu0 0.0
    %1987 = vmatpush1.msra.mxu0 %v1712
    %1988 = vmatprep.subr.mxu0 0.0
    %1989 = vmatpush1.msra.mxu0 %v1709
    %1990 = vmatprep.subr.mxu0 0.0
    %1991 = vmatpush1.msra.mxu0 %v1706
    %1992 = vmatprep.subr.mxu0 0.0
    %1993 = vmatpush1.msra.mxu0 %v1703
    %1994 = vmatprep.subr.mxu0 0.0
    %1995 = vmatpush1.msra.mxu0 %v1700
    %1996 = vmatprep.subr.mxu0 0.0
    %1997 = vmatpush1.msra.mxu0 %v1697
    %1998 = vmatprep.subr.mxu0 0.0
    %1999 = vmatpush1.msra.mxu0 %v1694
    %2000 = vmatprep.subr.mxu0 0.0
    %2001 = vmatpush1.msra.mxu0 %v1691
    %2002 = vmatprep.subr.mxu0 0.0
    %2003 = vmatpush1.msra.mxu0 %v1688
    %2004 = vmatprep.subr.mxu0 0.0
    %2005 = vmatpush1.msra.mxu0 %v1685
    %2006 = vmatprep.subr.mxu0 0.0
    %2007 = vmatpush2.msra.mxu0 0.0
    %2008 = vmatprep.subr.mxu0 0.0
    %2009 = vmatpush2.msra.mxu0 0.0
    %2010 = vmatprep.subr.mxu0 0.0
    %2011 = vmatpush2.msra.mxu0 0.0
    %2012 = vmatprep.subr.mxu0 0.0
    %2013 = vmatpush2.msra.mxu0 0.0
    %2014 = vmatprep.subr.mxu0 0.0
    %2015 = vmatpush2.msra.mxu0 0.0
    %2016 = vmatprep.subr.mxu0 0.0
    %2017 = vmatpush2.msra.mxu0 0.0
    %2018 = vmatprep.subr.mxu0 0.0
    %2019 = vmatpush2.msra.mxu0 0.0
    %2020 = vmatprep.subr.mxu0 0.0
    %2021 = vmatpush2.msra.mxu0 0.0
    %2022 = vmatprep.subr.mxu0 0.0
    %2023 = vmatpush2.msra.mxu0 0.0
    %2024 = vmatprep.subr.mxu0 0.0
    %2025 = vmatpush2.msra.mxu0 0.0
    %2026 = vmatprep.subr.mxu0 0.0
    %2027 = vmatpush2.msra.mxu0 0.0
    %2028 = vmatprep.subr.mxu0 0.0
    %2029 = vmatpush2.msra.mxu0 0.0
    %2030 = vmatprep.subr.mxu0 0.0
    %2031 = vmatpush2.msra.mxu0 0.0
    %2032 = vmatprep.subr.mxu0 0.0
    %2033 = vmatpush2.msra.mxu0 0.0
    %2034 = vmatprep.subr.mxu0 0.0
    %2035 = vmatpush2.msra.mxu0 0.0
    %2036 = vmatprep.subr.mxu0 0.0
    %2037 = vmatpush2.msra.mxu0 0.0
    %2038 = vmatprep.mubr.f32.mxu0 0.0
    %2039 = vmatmul.mubr.f32.gmra.mxu0 %v1901
    %v2040 = vpop.f32.mrf.mxu0
    %v2041 = vadd.f32 %v1898, %v2040
    %v2042 = vpop.f32.mrf.mxu0
    %2043 = vdwg.mxu0
    %s2044 = scalar_lea.vmem [#allocation2], 576
    %v2045 = vld [vmem:[%s2044] sm:$0xff]
    %v2046 = vld [vmem:[%s2044 + $0x8] sm:$0xff]
    %v2047 = vld [vmem:[%s2044 + $0x10] sm:$0xff]
    %v2048 = vld [vmem:[%s2044 + $0x18] sm:$0xff]
    %v2049 = vld [vmem:[%s2044 + $0x20] sm:$0xff]
    %v2050 = vld [vmem:[%s2044 + $0x28] sm:$0xff]
    %v2051 = vld [vmem:[%s2044 + $0x30] sm:$0xff]
    %v2052 = vld [vmem:[%s2044 + $0x38] sm:$0xff]
    %v2053 = vld [vmem:[%s2044 + $0x40] sm:$0xff]
    %v2054 = vld [vmem:[%s2044 + $0x48] sm:$0xff]
    %v2055 = vld [vmem:[%s2044 + $0x50] sm:$0xff]
    %v2056 = vld [vmem:[%s2044 + $0x58] sm:$0xff]
    %v2057 = vld [vmem:[%s2044 + $0x60] sm:$0xff]
    %v2058 = vld [vmem:[%s2044 + $0x68] sm:$0xff]
    %v2059 = vld [vmem:[%s2044 + $0x70] sm:$0xff]
    %v2060 = vld [vmem:[%s2044 + $0x78] sm:$0xff]
    %v2061 = vld [vmem:[%s2044 + $0x80] sm:$0xff]
    %v2062 = vld [vmem:[%s2044 + $0x88] sm:$0xff]
    %v2063 = vld [vmem:[%s2044 + $0x90] sm:$0xff]
    %v2064 = vld [vmem:[%s2044 + $0x98] sm:$0xff]
    %v2065 = vld [vmem:[%s2044 + $0xa0] sm:$0xff]
    %v2066 = vld [vmem:[%s2044 + $0xa8] sm:$0xff]
    %v2067 = vld [vmem:[%s2044 + $0xb0] sm:$0xff]
    %v2068 = vld [vmem:[%s2044 + $0xb8] sm:$0xff]
    %v2069 = vld [vmem:[%s2044 + $0xc0] sm:$0xff]
    %v2070 = vld [vmem:[%s2044 + $0xc8] sm:$0xff]
    %v2071 = vld [vmem:[%s2044 + $0xd0] sm:$0xff]
    %v2072 = vld [vmem:[%s2044 + $0xd8] sm:$0xff]
    %v2073 = vld [vmem:[%s2044 + $0xe0] sm:$0xff]
    %v2074 = vld [vmem:[%s2044 + $0xe8] sm:$0xff]
    %v2075 = vld [vmem:[%s2044 + $0xf0] sm:$0xff]
    %v2076 = vld [vmem:[%s2044 + $0xf8] sm:$0xff]
    %v2077 = vld [vmem:[%s2044 + $0x100] sm:$0xff]
    %v2078 = vld [vmem:[%s2044 + $0x108] sm:$0xff]
    %v2079 = vld [vmem:[%s2044 + $0x110] sm:$0xff]
    %v2080 = vld [vmem:[%s2044 + $0x118] sm:$0xff]
    %v2081 = vrot.slane %v1681, 4
    %v2082 = vsel %vm804, %v2081, 0
    %2084 = vmatprep.subr.mxu0 0.0
    %2085 = vmatpush1.msra.mxu0 0.0
    %2086 = vmatprep.subr.mxu0 0.0
    %2087 = vmatpush1.msra.mxu0 0.0
    %2088 = vmatprep.subr.mxu0 0.0
    %2089 = vmatpush1.msra.mxu0 0.0
    %2090 = vmatprep.subr.mxu0 0.0
    %2091 = vmatpush1.msra.mxu0 0.0
    %2092 = vmatprep.subr.mxu0 %v2079
    %2093 = vmatpush1.msra.mxu0 %v2078
    %2094 = vmatprep.subr.mxu0 %v2076
    %2095 = vmatpush1.msra.mxu0 %v2075
    %2096 = vmatprep.subr.mxu0 %v2073
    %2097 = vmatpush1.msra.mxu0 %v2072
    %2098 = vmatprep.subr.mxu0 %v2070
    %2099 = vmatpush1.msra.mxu0 %v2069
    %2100 = vmatprep.subr.mxu0 %v2067
    %2101 = vmatpush1.msra.mxu0 %v2066
    %2102 = vmatprep.subr.mxu0 %v2064
    %2103 = vmatpush1.msra.mxu0 %v2063
    %2104 = vmatprep.subr.mxu0 %v2061
    %2105 = vmatpush1.msra.mxu0 %v2060
    %2106 = vmatprep.subr.mxu0 %v2058
    %2107 = vmatpush1.msra.mxu0 %v2057
    %2108 = vmatprep.subr.mxu0 %v2055
    %2109 = vmatpush1.msra.mxu0 %v2054
    %2110 = vmatprep.subr.mxu0 %v2052
    %2111 = vmatpush1.msra.mxu0 %v2051
    %2112 = vmatprep.subr.mxu0 %v2049
    %2113 = vmatpush1.msra.mxu0 %v2048
    %2114 = vmatprep.subr.mxu0 %v2046
    %2115 = vmatpush1.msra.mxu0 %v2045
    %2116 = vmatprep.subr.mxu0 0.0
    %2117 = vmatpush2.msra.mxu0 0.0
    %2118 = vmatprep.subr.mxu0 0.0
    %2119 = vmatpush2.msra.mxu0 0.0
    %2120 = vmatprep.subr.mxu0 0.0
    %2121 = vmatpush2.msra.mxu0 0.0
    %2122 = vmatprep.subr.mxu0 0.0
    %2123 = vmatpush2.msra.mxu0 0.0
    %2124 = vmatprep.subr.mxu0 0.0
    %2125 = vmatpush2.msra.mxu0 0.0
    %2126 = vmatprep.subr.mxu0 0.0
    %2127 = vmatpush2.msra.mxu0 0.0
    %2128 = vmatprep.subr.mxu0 0.0
    %2129 = vmatpush2.msra.mxu0 0.0
    %2130 = vmatprep.subr.mxu0 0.0
    %2131 = vmatpush2.msra.mxu0 0.0
    %2132 = vmatprep.subr.mxu0 0.0
    %2133 = vmatpush2.msra.mxu0 0.0
    %2134 = vmatprep.subr.mxu0 0.0
    %2135 = vmatpush2.msra.mxu0 0.0
    %2136 = vmatprep.subr.mxu0 0.0
    %2137 = vmatpush2.msra.mxu0 0.0
    %2138 = vmatprep.subr.mxu0 0.0
    %2139 = vmatpush2.msra.mxu0 0.0
    %2140 = vmatprep.subr.mxu0 0.0
    %2141 = vmatpush2.msra.mxu0 0.0
    %2142 = vmatprep.subr.mxu0 0.0
    %2143 = vmatpush2.msra.mxu0 0.0
    %2144 = vmatprep.subr.mxu0 0.0
    %2145 = vmatpush2.msra.mxu0 0.0
    %2146 = vmatprep.subr.mxu0 0.0
    %2147 = vmatpush2.msra.mxu0 0.0
    %2148 = vmatprep.mubr.f32.mxu0 0.0
    %2149 = vmatmul.mubr.f32.gmra.mxu0 %v2082
    %v2150 = vpop.f32.mrf.mxu0
    %v2151 = vadd.f32 0.0, %v2150
    %v2152 = vpop.f32.mrf.mxu0
    %v2153 = vadd.f32 0.0, %v2152
    %2154 = vdwg.mxu0
    %2155 = vmatprep.subr.mxu0 0.0
    %2156 = vmatpush1.msra.mxu0 0.0
    %2157 = vmatprep.subr.mxu0 0.0
    %2158 = vmatpush1.msra.mxu0 0.0
    %2159 = vmatprep.subr.mxu0 0.0
    %2160 = vmatpush1.msra.mxu0 0.0
    %2161 = vmatprep.subr.mxu0 0.0
    %2162 = vmatpush1.msra.mxu0 0.0
    %2163 = vmatprep.subr.mxu0 0.0
    %2164 = vmatpush1.msra.mxu0 %v2080
    %2165 = vmatprep.subr.mxu0 0.0
    %2166 = vmatpush1.msra.mxu0 %v2077
    %2167 = vmatprep.subr.mxu0 0.0
    %2168 = vmatpush1.msra.mxu0 %v2074
    %2169 = vmatprep.subr.mxu0 0.0
    %2170 = vmatpush1.msra.mxu0 %v2071
    %2171 = vmatprep.subr.mxu0 0.0
    %2172 = vmatpush1.msra.mxu0 %v2068
    %2173 = vmatprep.subr.mxu0 0.0
    %2174 = vmatpush1.msra.mxu0 %v2065
    %2175 = vmatprep.subr.mxu0 0.0
    %2176 = vmatpush1.msra.mxu0 %v2062
    %2177 = vmatprep.subr.mxu0 0.0
    %2178 = vmatpush1.msra.mxu0 %v2059
    %2179 = vmatprep.subr.mxu0 0.0
    %2180 = vmatpush1.msra.mxu0 %v2056
    %2181 = vmatprep.subr.mxu0 0.0
    %2182 = vmatpush1.msra.mxu0 %v2053
    %2183 = vmatprep.subr.mxu0 0.0
    %2184 = vmatpush1.msra.mxu0 %v2050
    %2185 = vmatprep.subr.mxu0 0.0
    %2186 = vmatpush1.msra.mxu0 %v2047
    %2187 = vmatprep.subr.mxu0 0.0
    %2188 = vmatpush2.msra.mxu0 0.0
    %2189 = vmatprep.subr.mxu0 0.0
    %2190 = vmatpush2.msra.mxu0 0.0
    %2191 = vmatprep.subr.mxu0 0.0
    %2192 = vmatpush2.msra.mxu0 0.0
    %2193 = vmatprep.subr.mxu0 0.0
    %2194 = vmatpush2.msra.mxu0 0.0
    %2195 = vmatprep.subr.mxu0 0.0
    %2196 = vmatpush2.msra.mxu0 0.0
    %2197 = vmatprep.subr.mxu0 0.0
    %2198 = vmatpush2.msra.mxu0 0.0
    %2199 = vmatprep.subr.mxu0 0.0
    %2200 = vmatpush2.msra.mxu0 0.0
    %2201 = vmatprep.subr.mxu0 0.0
    %2202 = vmatpush2.msra.mxu0 0.0
    %2203 = vmatprep.subr.mxu0 0.0
    %2204 = vmatpush2.msra.mxu0 0.0
    %2205 = vmatprep.subr.mxu0 0.0
    %2206 = vmatpush2.msra.mxu0 0.0
    %2207 = vmatprep.subr.mxu0 0.0
    %2208 = vmatpush2.msra.mxu0 0.0
    %2209 = vmatprep.subr.mxu0 0.0
    %2210 = vmatpush2.msra.mxu0 0.0
    %2211 = vmatprep.subr.mxu0 0.0
    %2212 = vmatpush2.msra.mxu0 0.0
    %2213 = vmatprep.subr.mxu0 0.0
    %2214 = vmatpush2.msra.mxu0 0.0
    %2215 = vmatprep.subr.mxu0 0.0
    %2216 = vmatpush2.msra.mxu0 0.0
    %2217 = vmatprep.subr.mxu0 0.0
    %2218 = vmatpush2.msra.mxu0 0.0
    %2219 = vmatprep.mubr.f32.mxu0 0.0
    %2220 = vmatmul.mubr.f32.gmra.mxu0 %v2082
    %v2221 = vpop.f32.mrf.mxu0
    %v2222 = vadd.f32 0.0, %v2221
    %v2223 = vpop.f32.mrf.mxu0
    %2224 = vdwg.mxu0
    %v2225 = vadd.f32 %v1970, %v2151
    %v2226 = vadd.f32 %v1972, %v2153
    %v2227 = vadd.f32 %v2041, %v2222
    %s2228 = scalar_lea.vmem [#allocation2], 864
    %v2229 = vld [vmem:[%s2228] sm:$0xff]
    %v2230 = vld [vmem:[%s2228 + $0x8] sm:$0xff]
    %v2231 = vld [vmem:[%s2228 + $0x10] sm:$0xff]
    %v2232 = vld [vmem:[%s2228 + $0x18] sm:$0xff]
    %v2233 = vld [vmem:[%s2228 + $0x20] sm:$0xff]
    %v2234 = vld [vmem:[%s2228 + $0x28] sm:$0xff]
    %v2235 = vld [vmem:[%s2228 + $0x30] sm:$0xff]
    %v2236 = vld [vmem:[%s2228 + $0x38] sm:$0xff]
    %v2237 = vld [vmem:[%s2228 + $0x40] sm:$0xff]
    %v2238 = vld [vmem:[%s2228 + $0x48] sm:$0xff]
    %v2239 = vld [vmem:[%s2228 + $0x50] sm:$0xff]
    %v2240 = vld [vmem:[%s2228 + $0x58] sm:$0xff]
    %v2241 = vld [vmem:[%s2228 + $0x60] sm:$0xff]
    %v2242 = vld [vmem:[%s2228 + $0x68] sm:$0xff]
    %v2243 = vld [vmem:[%s2228 + $0x70] sm:$0xff]
    %v2244 = vld [vmem:[%s2228 + $0x78] sm:$0xff]
    %v2245 = vld [vmem:[%s2228 + $0x80] sm:$0xff]
    %v2246 = vld [vmem:[%s2228 + $0x88] sm:$0xff]
    %v2247 = vld [vmem:[%s2228 + $0x90] sm:$0xff]
    %v2248 = vld [vmem:[%s2228 + $0x98] sm:$0xff]
    %v2249 = vld [vmem:[%s2228 + $0xa0] sm:$0xff]
    %v2250 = vld [vmem:[%s2228 + $0xa8] sm:$0xff]
    %v2251 = vld [vmem:[%s2228 + $0xb0] sm:$0xff]
    %v2252 = vld [vmem:[%s2228 + $0xb8] sm:$0xff]
    %v2253 = vld [vmem:[%s2228 + $0xc0] sm:$0xff]
    %v2254 = vld [vmem:[%s2228 + $0xc8] sm:$0xff]
    %v2255 = vld [vmem:[%s2228 + $0xd0] sm:$0xff]
    %v2256 = vld [vmem:[%s2228 + $0xd8] sm:$0xff]
    %v2257 = vld [vmem:[%s2228 + $0xe0] sm:$0xff]
    %v2258 = vld [vmem:[%s2228 + $0xe8] sm:$0xff]
    %v2259 = vld [vmem:[%s2228 + $0xf0] sm:$0xff]
    %v2260 = vld [vmem:[%s2228 + $0xf8] sm:$0xff]
    %v2261 = vld [vmem:[%s2228 + $0x100] sm:$0xff]
    %v2262 = vld [vmem:[%s2228 + $0x108] sm:$0xff]
    %v2263 = vld [vmem:[%s2228 + $0x110] sm:$0xff]
    %v2264 = vld [vmem:[%s2228 + $0x118] sm:$0xff]
    %v2265 = vrot.slane %v1681, 6
    %v2266 = vsel %vm804, %v2265, 0
    %2268 = vmatprep.subr.mxu0 0.0
    %2269 = vmatpush1.msra.mxu0 0.0
    %2270 = vmatprep.subr.mxu0 0.0
    %2271 = vmatpush1.msra.mxu0 0.0
    %2272 = vmatprep.subr.mxu0 0.0
    %2273 = vmatpush1.msra.mxu0 0.0
    %2274 = vmatprep.subr.mxu0 0.0
    %2275 = vmatpush1.msra.mxu0 0.0
    %2276 = vmatprep.subr.mxu0 %v2263
    %2277 = vmatpush1.msra.mxu0 %v2262
    %2278 = vmatprep.subr.mxu0 %v2260
    %2279 = vmatpush1.msra.mxu0 %v2259
    %2280 = vmatprep.subr.mxu0 %v2257
    %2281 = vmatpush1.msra.mxu0 %v2256
    %2282 = vmatprep.subr.mxu0 %v2254
    %2283 = vmatpush1.msra.mxu0 %v2253
    %2284 = vmatprep.subr.mxu0 %v2251
    %2285 = vmatpush1.msra.mxu0 %v2250
    %2286 = vmatprep.subr.mxu0 %v2248
    %2287 = vmatpush1.msra.mxu0 %v2247
    %2288 = vmatprep.subr.mxu0 %v2245
    %2289 = vmatpush1.msra.mxu0 %v2244
    %2290 = vmatprep.subr.mxu0 %v2242
    %2291 = vmatpush1.msra.mxu0 %v2241
    %2292 = vmatprep.subr.mxu0 %v2239
    %2293 = vmatpush1.msra.mxu0 %v2238
    %2294 = vmatprep.subr.mxu0 %v2236
    %2295 = vmatpush1.msra.mxu0 %v2235
    %2296 = vmatprep.subr.mxu0 %v2233
    %2297 = vmatpush1.msra.mxu0 %v2232
    %2298 = vmatprep.subr.mxu0 %v2230
    %2299 = vmatpush1.msra.mxu0 %v2229
    %2300 = vmatprep.subr.mxu0 0.0
    %2301 = vmatpush2.msra.mxu0 0.0
    %2302 = vmatprep.subr.mxu0 0.0
    %2303 = vmatpush2.msra.mxu0 0.0
    %2304 = vmatprep.subr.mxu0 0.0
    %2305 = vmatpush2.msra.mxu0 0.0
    %2306 = vmatprep.subr.mxu0 0.0
    %2307 = vmatpush2.msra.mxu0 0.0
    %2308 = vmatprep.subr.mxu0 0.0
    %2309 = vmatpush2.msra.mxu0 0.0
    %2310 = vmatprep.subr.mxu0 0.0
    %2311 = vmatpush2.msra.mxu0 0.0
    %2312 = vmatprep.subr.mxu0 0.0
    %2313 = vmatpush2.msra.mxu0 0.0
    %2314 = vmatprep.subr.mxu0 0.0
    %2315 = vmatpush2.msra.mxu0 0.0
    %2316 = vmatprep.subr.mxu0 0.0
    %2317 = vmatpush2.msra.mxu0 0.0
    %2318 = vmatprep.subr.mxu0 0.0
    %2319 = vmatpush2.msra.mxu0 0.0
    %2320 = vmatprep.subr.mxu0 0.0
    %2321 = vmatpush2.msra.mxu0 0.0
    %2322 = vmatprep.subr.mxu0 0.0
    %2323 = vmatpush2.msra.mxu0 0.0
    %2324 = vmatprep.subr.mxu0 0.0
    %2325 = vmatpush2.msra.mxu0 0.0
    %2326 = vmatprep.subr.mxu0 0.0
    %2327 = vmatpush2.msra.mxu0 0.0
    %2328 = vmatprep.subr.mxu0 0.0
    %2329 = vmatpush2.msra.mxu0 0.0
    %2330 = vmatprep.subr.mxu0 0.0
    %2331 = vmatpush2.msra.mxu0 0.0
    %2332 = vmatprep.mubr.f32.mxu0 0.0
    %2333 = vmatmul.mubr.f32.gmra.mxu0 %v2266
    %v2334 = vpop.f32.mrf.mxu0
    %v2335 = vadd.f32 0.0, %v2334
    %v2336 = vpop.f32.mrf.mxu0
    %v2337 = vadd.f32 0.0, %v2336
    %2338 = vdwg.mxu0
    %2339 = vmatprep.subr.mxu0 0.0
    %2340 = vmatpush1.msra.mxu0 0.0
    %2341 = vmatprep.subr.mxu0 0.0
    %2342 = vmatpush1.msra.mxu0 0.0
    %2343 = vmatprep.subr.mxu0 0.0
    %2344 = vmatpush1.msra.mxu0 0.0
    %2345 = vmatprep.subr.mxu0 0.0
    %2346 = vmatpush1.msra.mxu0 0.0
    %2347 = vmatprep.subr.mxu0 0.0
    %2348 = vmatpush1.msra.mxu0 %v2264
    %2349 = vmatprep.subr.mxu0 0.0
    %2350 = vmatpush1.msra.mxu0 %v2261
    %2351 = vmatprep.subr.mxu0 0.0
    %2352 = vmatpush1.msra.mxu0 %v2258
    %2353 = vmatprep.subr.mxu0 0.0
    %2354 = vmatpush1.msra.mxu0 %v2255
    %2355 = vmatprep.subr.mxu0 0.0
    %2356 = vmatpush1.msra.mxu0 %v2252
    %2357 = vmatprep.subr.mxu0 0.0
    %2358 = vmatpush1.msra.mxu0 %v2249
    %2359 = vmatprep.subr.mxu0 0.0
    %2360 = vmatpush1.msra.mxu0 %v2246
    %2361 = vmatprep.subr.mxu0 0.0
    %2362 = vmatpush1.msra.mxu0 %v2243
    %2363 = vmatprep.subr.mxu0 0.0
    %2364 = vmatpush1.msra.mxu0 %v2240
    %2365 = vmatprep.subr.mxu0 0.0
    %2366 = vmatpush1.msra.mxu0 %v2237
    %2367 = vmatprep.subr.mxu0 0.0
    %2368 = vmatpush1.msra.mxu0 %v2234
    %2369 = vmatprep.subr.mxu0 0.0
    %2370 = vmatpush1.msra.mxu0 %v2231
    %2371 = vmatprep.subr.mxu0 0.0
    %2372 = vmatpush2.msra.mxu0 0.0
    %2373 = vmatprep.subr.mxu0 0.0
    %2374 = vmatpush2.msra.mxu0 0.0
    %2375 = vmatprep.subr.mxu0 0.0
    %2376 = vmatpush2.msra.mxu0 0.0
    %2377 = vmatprep.subr.mxu0 0.0
    %2378 = vmatpush2.msra.mxu0 0.0
    %2379 = vmatprep.subr.mxu0 0.0
    %2380 = vmatpush2.msra.mxu0 0.0
    %2381 = vmatprep.subr.mxu0 0.0
    %2382 = vmatpush2.msra.mxu0 0.0
    %2383 = vmatprep.subr.mxu0 0.0
    %2384 = vmatpush2.msra.mxu0 0.0
    %2385 = vmatprep.subr.mxu0 0.0
    %2386 = vmatpush2.msra.mxu0 0.0
    %2387 = vmatprep.subr.mxu0 0.0
    %2388 = vmatpush2.msra.mxu0 0.0
    %2389 = vmatprep.subr.mxu0 0.0
    %2390 = vmatpush2.msra.mxu0 0.0
    %2391 = vmatprep.subr.mxu0 0.0
    %2392 = vmatpush2.msra.mxu0 0.0
    %2393 = vmatprep.subr.mxu0 0.0
    %2394 = vmatpush2.msra.mxu0 0.0
    %2395 = vmatprep.subr.mxu0 0.0
    %2396 = vmatpush2.msra.mxu0 0.0
    %2397 = vmatprep.subr.mxu0 0.0
    %2398 = vmatpush2.msra.mxu0 0.0
    %2399 = vmatprep.subr.mxu0 0.0
    %2400 = vmatpush2.msra.mxu0 0.0
    %2401 = vmatprep.subr.mxu0 0.0
    %2402 = vmatpush2.msra.mxu0 0.0
    %2403 = vmatprep.mubr.f32.mxu0 0.0
    %2404 = vmatmul.mubr.f32.gmra.mxu0 %v2266
    %v2405 = vpop.f32.mrf.mxu0
    %v2406 = vadd.f32 0.0, %v2405
    %v2407 = vpop.f32.mrf.mxu0
    %2408 = vdwg.mxu0
    %v2409 = vadd.f32 %v2225, %v2335
    %v2410 = vadd.f32 %v2226, %v2337
    %v2411 = vadd.f32 %v2227, %v2406
    %s2412 = scalar_lea.vmem [#allocation2], 1152
    %v2413 = vld [vmem:[%s2412] sm:$0xff]
    %v2414 = vld [vmem:[%s2412 + $0x8] sm:$0xff]
    %v2415 = vld [vmem:[%s2412 + $0x10] sm:$0xff]
    %v2416 = vld [vmem:[%s2412 + $0x18] sm:$0xff]
    %v2417 = vld [vmem:[%s2412 + $0x20] sm:$0xff]
    %v2418 = vld [vmem:[%s2412 + $0x28] sm:$0xff]
    %v2419 = vld [vmem:[%s2412 + $0x30] sm:$0xff]
    %v2420 = vld [vmem:[%s2412 + $0x38] sm:$0xff]
    %v2421 = vld [vmem:[%s2412 + $0x40] sm:$0xff]
    %v2422 = vld [vmem:[%s2412 + $0x48] sm:$0xff]
    %v2423 = vld [vmem:[%s2412 + $0x50] sm:$0xff]
    %v2424 = vld [vmem:[%s2412 + $0x58] sm:$0xff]
    %v2425 = vld [vmem:[%s2412 + $0x60] sm:$0xff]
    %v2426 = vld [vmem:[%s2412 + $0x68] sm:$0xff]
    %v2427 = vld [vmem:[%s2412 + $0x70] sm:$0xff]
    %v2428 = vld [vmem:[%s2412 + $0x78] sm:$0xff]
    %v2429 = vld [vmem:[%s2412 + $0x80] sm:$0xff]
    %v2430 = vld [vmem:[%s2412 + $0x88] sm:$0xff]
    %v2431 = vld [vmem:[%s2412 + $0x90] sm:$0xff]
    %v2432 = vld [vmem:[%s2412 + $0x98] sm:$0xff]
    %v2433 = vld [vmem:[%s2412 + $0xa0] sm:$0xff]
    %v2434 = vld [vmem:[%s2412 + $0xa8] sm:$0xff]
    %v2435 = vld [vmem:[%s2412 + $0xb0] sm:$0xff]
    %v2436 = vld [vmem:[%s2412 + $0xb8] sm:$0xff]
    %v2437 = vld [vmem:[%s2412 + $0xc0] sm:$0xff]
    %v2438 = vld [vmem:[%s2412 + $0xc8] sm:$0xff]
    %v2439 = vld [vmem:[%s2412 + $0xd0] sm:$0xff]
    %v2440 = vld [vmem:[%s2412 + $0xd8] sm:$0xff]
    %v2441 = vld [vmem:[%s2412 + $0xe0] sm:$0xff]
    %v2442 = vld [vmem:[%s2412 + $0xe8] sm:$0xff]
    %v2443 = vld [vmem:[%s2412 + $0xf0] sm:$0xff]
    %v2444 = vld [vmem:[%s2412 + $0xf8] sm:$0xff]
    %v2445 = vld [vmem:[%s2412 + $0x100] sm:$0xff]
    %v2446 = vld [vmem:[%s2412 + $0x108] sm:$0xff]
    %v2447 = vld [vmem:[%s2412 + $0x110] sm:$0xff]
    %v2448 = vld [vmem:[%s2412 + $0x118] sm:$0xff]
    %v2450 = vsel %vm804, %v1682, 0
    %2452 = vmatprep.subr.mxu0 0.0
    %2453 = vmatpush1.msra.mxu0 0.0
    %2454 = vmatprep.subr.mxu0 0.0
    %2455 = vmatpush1.msra.mxu0 0.0
    %2456 = vmatprep.subr.mxu0 0.0
    %2457 = vmatpush1.msra.mxu0 0.0
    %2458 = vmatprep.subr.mxu0 0.0
    %2459 = vmatpush1.msra.mxu0 0.0
    %2460 = vmatprep.subr.mxu0 %v2447
    %2461 = vmatpush1.msra.mxu0 %v2446
    %2462 = vmatprep.subr.mxu0 %v2444
    %2463 = vmatpush1.msra.mxu0 %v2443
    %2464 = vmatprep.subr.mxu0 %v2441
    %2465 = vmatpush1.msra.mxu0 %v2440
    %2466 = vmatprep.subr.mxu0 %v2438
    %2467 = vmatpush1.msra.mxu0 %v2437
    %2468 = vmatprep.subr.mxu0 %v2435
    %2469 = vmatpush1.msra.mxu0 %v2434
    %2470 = vmatprep.subr.mxu0 %v2432
    %2471 = vmatpush1.msra.mxu0 %v2431
    %2472 = vmatprep.subr.mxu0 %v2429
    %2473 = vmatpush1.msra.mxu0 %v2428
    %2474 = vmatprep.subr.mxu0 %v2426
    %2475 = vmatpush1.msra.mxu0 %v2425
    %2476 = vmatprep.subr.mxu0 %v2423
    %2477 = vmatpush1.msra.mxu0 %v2422
    %2478 = vmatprep.subr.mxu0 %v2420
    %2479 = vmatpush1.msra.mxu0 %v2419
    %2480 = vmatprep.subr.mxu0 %v2417
    %2481 = vmatpush1.msra.mxu0 %v2416
    %2482 = vmatprep.subr.mxu0 %v2414
    %2483 = vmatpush1.msra.mxu0 %v2413
    %2484 = vmatprep.subr.mxu0 0.0
    %2485 = vmatpush2.msra.mxu0 0.0
    %2486 = vmatprep.subr.mxu0 0.0
    %2487 = vmatpush2.msra.mxu0 0.0
    %2488 = vmatprep.subr.mxu0 0.0
    %2489 = vmatpush2.msra.mxu0 0.0
    %2490 = vmatprep.subr.mxu0 0.0
    %2491 = vmatpush2.msra.mxu0 0.0
    %2492 = vmatprep.subr.mxu0 0.0
    %2493 = vmatpush2.msra.mxu0 0.0
    %2494 = vmatprep.subr.mxu0 0.0
    %2495 = vmatpush2.msra.mxu0 0.0
    %2496 = vmatprep.subr.mxu0 0.0
    %2497 = vmatpush2.msra.mxu0 0.0
    %2498 = vmatprep.subr.mxu0 0.0
    %2499 = vmatpush2.msra.mxu0 0.0
    %2500 = vmatprep.subr.mxu0 0.0
    %2501 = vmatpush2.msra.mxu0 0.0
    %2502 = vmatprep.subr.mxu0 0.0
    %2503 = vmatpush2.msra.mxu0 0.0
    %2504 = vmatprep.subr.mxu0 0.0
    %2505 = vmatpush2.msra.mxu0 0.0
    %2506 = vmatprep.subr.mxu0 0.0
    %2507 = vmatpush2.msra.mxu0 0.0
    %2508 = vmatprep.subr.mxu0 0.0
    %2509 = vmatpush2.msra.mxu0 0.0
    %2510 = vmatprep.subr.mxu0 0.0
    %2511 = vmatpush2.msra.mxu0 0.0
    %2512 = vmatprep.subr.mxu0 0.0
    %2513 = vmatpush2.msra.mxu0 0.0
    %2514 = vmatprep.subr.mxu0 0.0
    %2515 = vmatpush2.msra.mxu0 0.0
    %2516 = vmatprep.mubr.f32.mxu0 0.0
    %2517 = vmatmul.mubr.f32.gmra.mxu0 %v2450
    %v2518 = vpop.f32.mrf.mxu0
    %v2519 = vadd.f32 0.0, %v2518
    %v2520 = vpop.f32.mrf.mxu0
    %v2521 = vadd.f32 0.0, %v2520
    %2522 = vdwg.mxu0
    %2523 = vmatprep.subr.mxu0 0.0
    %2524 = vmatpush1.msra.mxu0 0.0
    %2525 = vmatprep.subr.mxu0 0.0
    %2526 = vmatpush1.msra.mxu0 0.0
    %2527 = vmatprep.subr.mxu0 0.0
    %2528 = vmatpush1.msra.mxu0 0.0
    %2529 = vmatprep.subr.mxu0 0.0
    %2530 = vmatpush1.msra.mxu0 0.0
    %2531 = vmatprep.subr.mxu0 0.0
    %2532 = vmatpush1.msra.mxu0 %v2448
    %2533 = vmatprep.subr.mxu0 0.0
    %2534 = vmatpush1.msra.mxu0 %v2445
    %2535 = vmatprep.subr.mxu0 0.0
    %2536 = vmatpush1.msra.mxu0 %v2442
    %2537 = vmatprep.subr.mxu0 0.0
    %2538 = vmatpush1.msra.mxu0 %v2439
    %2539 = vmatprep.subr.mxu0 0.0
    %2540 = vmatpush1.msra.mxu0 %v2436
    %2541 = vmatprep.subr.mxu0 0.0
    %2542 = vmatpush1.msra.mxu0 %v2433
    %2543 = vmatprep.subr.mxu0 0.0
    %2544 = vmatpush1.msra.mxu0 %v2430
    %2545 = vmatprep.subr.mxu0 0.0
    %2546 = vmatpush1.msra.mxu0 %v2427
    %2547 = vmatprep.subr.mxu0 0.0
    %2548 = vmatpush1.msra.mxu0 %v2424
    %2549 = vmatprep.subr.mxu0 0.0
    %2550 = vmatpush1.msra.mxu0 %v2421
    %2551 = vmatprep.subr.mxu0 0.0
    %2552 = vmatpush1.msra.mxu0 %v2418
    %2553 = vmatprep.subr.mxu0 0.0
    %2554 = vmatpush1.msra.mxu0 %v2415
    %2555 = vmatprep.subr.mxu0 0.0
    %2556 = vmatpush2.msra.mxu0 0.0
    %2557 = vmatprep.subr.mxu0 0.0
    %2558 = vmatpush2.msra.mxu0 0.0
    %2559 = vmatprep.subr.mxu0 0.0
    %2560 = vmatpush2.msra.mxu0 0.0
    %2561 = vmatprep.subr.mxu0 0.0
    %2562 = vmatpush2.msra.mxu0 0.0
    %2563 = vmatprep.subr.mxu0 0.0
    %2564 = vmatpush2.msra.mxu0 0.0
    %2565 = vmatprep.subr.mxu0 0.0
    %2566 = vmatpush2.msra.mxu0 0.0
    %2567 = vmatprep.subr.mxu0 0.0
    %2568 = vmatpush2.msra.mxu0 0.0
    %2569 = vmatprep.subr.mxu0 0.0
    %2570 = vmatpush2.msra.mxu0 0.0
    %2571 = vmatprep.subr.mxu0 0.0
    %2572 = vmatpush2.msra.mxu0 0.0
    %2573 = vmatprep.subr.mxu0 0.0
    %2574 = vmatpush2.msra.mxu0 0.0
    %2575 = vmatprep.subr.mxu0 0.0
    %2576 = vmatpush2.msra.mxu0 0.0
    %2577 = vmatprep.subr.mxu0 0.0
    %2578 = vmatpush2.msra.mxu0 0.0
    %2579 = vmatprep.subr.mxu0 0.0
    %2580 = vmatpush2.msra.mxu0 0.0
    %2581 = vmatprep.subr.mxu0 0.0
    %2582 = vmatpush2.msra.mxu0 0.0
    %2583 = vmatprep.subr.mxu0 0.0
    %2584 = vmatpush2.msra.mxu0 0.0
    %2585 = vmatprep.subr.mxu0 0.0
    %2586 = vmatpush2.msra.mxu0 0.0
    %2587 = vmatprep.mubr.f32.mxu0 0.0
    %2588 = vmatmul.mubr.f32.gmra.mxu0 %v2450
    %v2589 = vpop.f32.mrf.mxu0
    %v2590 = vadd.f32 0.0, %v2589
    %v2591 = vpop.f32.mrf.mxu0
    %2592 = vdwg.mxu0
    %v2593 = vadd.f32 %v2409, %v2519
    %v2594 = vadd.f32 %v2410, %v2521
    %v2595 = vadd.f32 %v2411, %v2590
    %s2596 = scalar_lea.vmem [#allocation2], 1440
    %v2597 = vld [vmem:[%s2596] sm:$0xff]
    %v2598 = vld [vmem:[%s2596 + $0x8] sm:$0xff]
    %v2599 = vld [vmem:[%s2596 + $0x10] sm:$0xff]
    %v2600 = vld [vmem:[%s2596 + $0x18] sm:$0xff]
    %v2601 = vld [vmem:[%s2596 + $0x20] sm:$0xff]
    %v2602 = vld [vmem:[%s2596 + $0x28] sm:$0xff]
    %v2603 = vld [vmem:[%s2596 + $0x30] sm:$0xff]
    %v2604 = vld [vmem:[%s2596 + $0x38] sm:$0xff]
    %v2605 = vld [vmem:[%s2596 + $0x40] sm:$0xff]
    %v2606 = vld [vmem:[%s2596 + $0x48] sm:$0xff]
    %v2607 = vld [vmem:[%s2596 + $0x50] sm:$0xff]
    %v2608 = vld [vmem:[%s2596 + $0x58] sm:$0xff]
    %v2609 = vld [vmem:[%s2596 + $0x60] sm:$0xff]
    %v2610 = vld [vmem:[%s2596 + $0x68] sm:$0xff]
    %v2611 = vld [vmem:[%s2596 + $0x70] sm:$0xff]
    %v2612 = vld [vmem:[%s2596 + $0x78] sm:$0xff]
    %v2613 = vld [vmem:[%s2596 + $0x80] sm:$0xff]
    %v2614 = vld [vmem:[%s2596 + $0x88] sm:$0xff]
    %v2615 = vld [vmem:[%s2596 + $0x90] sm:$0xff]
    %v2616 = vld [vmem:[%s2596 + $0x98] sm:$0xff]
    %v2617 = vld [vmem:[%s2596 + $0xa0] sm:$0xff]
    %v2618 = vld [vmem:[%s2596 + $0xa8] sm:$0xff]
    %v2619 = vld [vmem:[%s2596 + $0xb0] sm:$0xff]
    %v2620 = vld [vmem:[%s2596 + $0xb8] sm:$0xff]
    %v2621 = vld [vmem:[%s2596 + $0xc0] sm:$0xff]
    %v2622 = vld [vmem:[%s2596 + $0xc8] sm:$0xff]
    %v2623 = vld [vmem:[%s2596 + $0xd0] sm:$0xff]
    %v2624 = vld [vmem:[%s2596 + $0xd8] sm:$0xff]
    %v2625 = vld [vmem:[%s2596 + $0xe0] sm:$0xff]
    %v2626 = vld [vmem:[%s2596 + $0xe8] sm:$0xff]
    %v2627 = vld [vmem:[%s2596 + $0xf0] sm:$0xff]
    %v2628 = vld [vmem:[%s2596 + $0xf8] sm:$0xff]
    %v2629 = vld [vmem:[%s2596 + $0x100] sm:$0xff]
    %v2630 = vld [vmem:[%s2596 + $0x108] sm:$0xff]
    %v2631 = vld [vmem:[%s2596 + $0x110] sm:$0xff]
    %v2632 = vld [vmem:[%s2596 + $0x118] sm:$0xff]
    %v2633 = vrot.slane %v1682, 2
    %v2634 = vsel %vm804, %v2633, 0
    %2636 = vmatprep.subr.mxu0 0.0
    %2637 = vmatpush1.msra.mxu0 0.0
    %2638 = vmatprep.subr.mxu0 0.0
    %2639 = vmatpush1.msra.mxu0 0.0
    %2640 = vmatprep.subr.mxu0 0.0
    %2641 = vmatpush1.msra.mxu0 0.0
    %2642 = vmatprep.subr.mxu0 0.0
    %2643 = vmatpush1.msra.mxu0 0.0
    %2644 = vmatprep.subr.mxu0 %v2631
    %2645 = vmatpush1.msra.mxu0 %v2630
    %2646 = vmatprep.subr.mxu0 %v2628
    %2647 = vmatpush1.msra.mxu0 %v2627
    %2648 = vmatprep.subr.mxu0 %v2625
    %2649 = vmatpush1.msra.mxu0 %v2624
    %2650 = vmatprep.subr.mxu0 %v2622
    %2651 = vmatpush1.msra.mxu0 %v2621
    %2652 = vmatprep.subr.mxu0 %v2619
    %2653 = vmatpush1.msra.mxu0 %v2618
    %2654 = vmatprep.subr.mxu0 %v2616
    %2655 = vmatpush1.msra.mxu0 %v2615
    %2656 = vmatprep.subr.mxu0 %v2613
    %2657 = vmatpush1.msra.mxu0 %v2612
    %2658 = vmatprep.subr.mxu0 %v2610
    %2659 = vmatpush1.msra.mxu0 %v2609
    %2660 = vmatprep.subr.mxu0 %v2607
    %2661 = vmatpush1.msra.mxu0 %v2606
    %2662 = vmatprep.subr.mxu0 %v2604
    %2663 = vmatpush1.msra.mxu0 %v2603
    %2664 = vmatprep.subr.mxu0 %v2601
    %2665 = vmatpush1.msra.mxu0 %v2600
    %2666 = vmatprep.subr.mxu0 %v2598
    %2667 = vmatpush1.msra.mxu0 %v2597
    %2668 = vmatprep.subr.mxu0 0.0
    %2669 = vmatpush2.msra.mxu0 0.0
    %2670 = vmatprep.subr.mxu0 0.0
    %2671 = vmatpush2.msra.mxu0 0.0
    %2672 = vmatprep.subr.mxu0 0.0
    %2673 = vmatpush2.msra.mxu0 0.0
    %2674 = vmatprep.subr.mxu0 0.0
    %2675 = vmatpush2.msra.mxu0 0.0
    %2676 = vmatprep.subr.mxu0 0.0
    %2677 = vmatpush2.msra.mxu0 0.0
    %2678 = vmatprep.subr.mxu0 0.0
    %2679 = vmatpush2.msra.mxu0 0.0
    %2680 = vmatprep.subr.mxu0 0.0
    %2681 = vmatpush2.msra.mxu0 0.0
    %2682 = vmatprep.subr.mxu0 0.0
    %2683 = vmatpush2.msra.mxu0 0.0
    %2684 = vmatprep.subr.mxu0 0.0
    %2685 = vmatpush2.msra.mxu0 0.0
    %2686 = vmatprep.subr.mxu0 0.0
    %2687 = vmatpush2.msra.mxu0 0.0
    %2688 = vmatprep.subr.mxu0 0.0
    %2689 = vmatpush2.msra.mxu0 0.0
    %2690 = vmatprep.subr.mxu0 0.0
    %2691 = vmatpush2.msra.mxu0 0.0
    %2692 = vmatprep.subr.mxu0 0.0
    %2693 = vmatpush2.msra.mxu0 0.0
    %2694 = vmatprep.subr.mxu0 0.0
    %2695 = vmatpush2.msra.mxu0 0.0
    %2696 = vmatprep.subr.mxu0 0.0
    %2697 = vmatpush2.msra.mxu0 0.0
    %2698 = vmatprep.subr.mxu0 0.0
    %2699 = vmatpush2.msra.mxu0 0.0
    %2700 = vmatprep.mubr.f32.mxu0 0.0
    %2701 = vmatmul.mubr.f32.gmra.mxu0 %v2634
    %v2702 = vpop.f32.mrf.mxu0
    %v2703 = vadd.f32 0.0, %v2702
    %v2704 = vpop.f32.mrf.mxu0
    %v2705 = vadd.f32 0.0, %v2704
    %2706 = vdwg.mxu0
    %2707 = vmatprep.subr.mxu0 0.0
    %2708 = vmatpush1.msra.mxu0 0.0
    %2709 = vmatprep.subr.mxu0 0.0
    %2710 = vmatpush1.msra.mxu0 0.0
    %2711 = vmatprep.subr.mxu0 0.0
    %2712 = vmatpush1.msra.mxu0 0.0
    %2713 = vmatprep.subr.mxu0 0.0
    %2714 = vmatpush1.msra.mxu0 0.0
    %2715 = vmatprep.subr.mxu0 0.0
    %2716 = vmatpush1.msra.mxu0 %v2632
    %2717 = vmatprep.subr.mxu0 0.0
    %2718 = vmatpush1.msra.mxu0 %v2629
    %2719 = vmatprep.subr.mxu0 0.0
    %2720 = vmatpush1.msra.mxu0 %v2626
    %2721 = vmatprep.subr.mxu0 0.0
    %2722 = vmatpush1.msra.mxu0 %v2623
    %2723 = vmatprep.subr.mxu0 0.0
    %2724 = vmatpush1.msra.mxu0 %v2620
    %2725 = vmatprep.subr.mxu0 0.0
    %2726 = vmatpush1.msra.mxu0 %v2617
    %2727 = vmatprep.subr.mxu0 0.0
    %2728 = vmatpush1.msra.mxu0 %v2614
    %2729 = vmatprep.subr.mxu0 0.0
    %2730 = vmatpush1.msra.mxu0 %v2611
    %2731 = vmatprep.subr.mxu0 0.0
    %2732 = vmatpush1.msra.mxu0 %v2608
    %2733 = vmatprep.subr.mxu0 0.0
    %2734 = vmatpush1.msra.mxu0 %v2605
    %2735 = vmatprep.subr.mxu0 0.0
    %2736 = vmatpush1.msra.mxu0 %v2602
    %2737 = vmatprep.subr.mxu0 0.0
    %2738 = vmatpush1.msra.mxu0 %v2599
    %2739 = vmatprep.subr.mxu0 0.0
    %2740 = vmatpush2.msra.mxu0 0.0
    %2741 = vmatprep.subr.mxu0 0.0
    %2742 = vmatpush2.msra.mxu0 0.0
    %2743 = vmatprep.subr.mxu0 0.0
    %2744 = vmatpush2.msra.mxu0 0.0
    %2745 = vmatprep.subr.mxu0 0.0
    %2746 = vmatpush2.msra.mxu0 0.0
    %2747 = vmatprep.subr.mxu0 0.0
    %2748 = vmatpush2.msra.mxu0 0.0
    %2749 = vmatprep.subr.mxu0 0.0
    %2750 = vmatpush2.msra.mxu0 0.0
    %2751 = vmatprep.subr.mxu0 0.0
    %2752 = vmatpush2.msra.mxu0 0.0
    %2753 = vmatprep.subr.mxu0 0.0
    %2754 = vmatpush2.msra.mxu0 0.0
    %2755 = vmatprep.subr.mxu0 0.0
    %2756 = vmatpush2.msra.mxu0 0.0
    %2757 = vmatprep.subr.mxu0 0.0
    %2758 = vmatpush2.msra.mxu0 0.0
    %2759 = vmatprep.subr.mxu0 0.0
    %2760 = vmatpush2.msra.mxu0 0.0
    %2761 = vmatprep.subr.mxu0 0.0
    %2762 = vmatpush2.msra.mxu0 0.0
    %2763 = vmatprep.subr.mxu0 0.0
    %2764 = vmatpush2.msra.mxu0 0.0
    %2765 = vmatprep.subr.mxu0 0.0
    %2766 = vmatpush2.msra.mxu0 0.0
    %2767 = vmatprep.subr.mxu0 0.0
    %2768 = vmatpush2.msra.mxu0 0.0
    %2769 = vmatprep.subr.mxu0 0.0
    %2770 = vmatpush2.msra.mxu0 0.0
    %2771 = vmatprep.mubr.f32.mxu0 0.0
    %2772 = vmatmul.mubr.f32.gmra.mxu0 %v2634
    %v2773 = vpop.f32.mrf.mxu0
    %v2774 = vadd.f32 0.0, %v2773
    %v2775 = vpop.f32.mrf.mxu0
    %2776 = vdwg.mxu0
    %v2777 = vadd.f32 %v2593, %v2703
    %v2778 = vadd.f32 %v2594, %v2705
    %v2779 = vadd.f32 %v2595, %v2774
    %v2780 = vsel %vm1011, %v2777, 0.0
    %v2781 = vrot.slane %v2780, 4
    %v2782 = vadd.f32 %v2780, %v2781
    %v2783 = vrot.slane %v2782, 2
    %v2784 = vadd.f32 %v2782, %v2783
    %v2785 = vrot.slane %v2784, 1
    %v2786 = vadd.f32 %v2784, %v2785
    %v2787 = vsel %vm1011, %v2778, 0.0
    %v2788 = vrot.slane %v2787, 4
    %v2789 = vadd.f32 %v2787, %v2788
    %v2790 = vrot.slane %v2789, 2
    %v2791 = vadd.f32 %v2789, %v2790
    %v2792 = vrot.slane %v2791, 1
    %v2793 = vadd.f32 %v2791, %v2792
    %vm2794 = vcmask 254976
    %v2795 = vsel %vm2794, %v2779, 0.0
    %v2796 = vrot.slane %v2795, 4
    %v2797 = vadd.f32 %v2795, %v2796
    %v2798 = vrot.slane %v2797, 2
    %v2799 = vadd.f32 %v2797, %v2798
    %v2800 = vrot.slane %v2799, 1
    %v2801 = vadd.f32 %v2799, %v2800
    %v2802 = vrcp.pop 2.0
    %v2803 = vmul.f32 %v2786, %v2802
    %v2804 = vmul.f32 %v2793, %v2802
    %v2805 = vmul.f32 %v2801, %v2802
    %v2806 = vsub.f32 %v2777, %v2803
    %v2807 = vsub.f32 %v2778, %v2804
    %v2808 = vsub.f32 %v2779, %v2805
    %v2809 = vmul.f32 %v2806, %v2806
    %v2810 = vmul.f32 %v2807, %v2807
    %v2811 = vmul.f32 %v2808, %v2808
    %v2812 = vsel %vm1011, %v2809, 0.0
    %v2813 = vrot.slane %v2812, 4
    %v2814 = vadd.f32 %v2812, %v2813
    %v2815 = vrot.slane %v2814, 2
    %v2816 = vadd.f32 %v2814, %v2815
    %v2817 = vrot.slane %v2816, 1
    %v2818 = vadd.f32 %v2816, %v2817
    %v2819 = vsel %vm1011, %v2810, 0.0
    %v2820 = vrot.slane %v2819, 4
    %v2821 = vadd.f32 %v2819, %v2820
    %v2822 = vrot.slane %v2821, 2
    %v2823 = vadd.f32 %v2821, %v2822
    %v2824 = vrot.slane %v2823, 1
    %v2825 = vadd.f32 %v2823, %v2824
    %v2826 = vsel %vm2794, %v2811, 0.0
    %v2827 = vrot.slane %v2826, 4
    %v2828 = vadd.f32 %v2826, %v2827
    %v2829 = vrot.slane %v2828, 2
    %v2830 = vadd.f32 %v2828, %v2829
    %v2831 = vrot.slane %v2830, 1
    %v2832 = vadd.f32 %v2830, %v2831
    %v2833 = vmul.f32 %v2818, %v2802
    %v2834 = vmul.f32 %v2825, %v2802
    %v2835 = vmul.f32 %v2832, %v2802
    %v2836 = vadd.f32 %v2833, 1e-05
    %v2837 = vadd.f32 %v2834, 1e-05
    %v2838 = vadd.f32 %v2835, 1e-05
    %v2839 = vrsqrt.pop %v2836
    %v2840 = vrsqrt.pop %v2837
    %v2841 = vrsqrt.pop %v2838
    %v2842 = vmul.f32 %v2806, %v2839
    %v2843 = vmul.f32 %v2807, %v2840
    %v2844 = vmul.f32 %v2808, %v2841
    %v2845 = vlaneseq
    %v2846 = vshrl.u32 %v2845, 7
    %v2847 = vsub.s32 4, %v2846
    %v2848 = vrot.slane %v44, %v2847
    %v2849 = vlaneseq
    %v2850 = vshrl.u32 %v2849, 7
    %v2851 = vsub.s32 4, %v2850
    %v2852 = vrot.slane %v45, %v2851
    %v2853 = vlaneseq
    %v2854 = vshrl.u32 %v2853, 7
    %v2855 = vsub.s32 4, %v2854
    %v2856 = vrot.slane %v46, %v2855
    %v2857 = vmul.f32 %v2842, %v2848
    %v2858 = vmul.f32 %v2843, %v2852
    %v2859 = vmul.f32 %v2844, %v2856
    %v2860 = vlaneseq
    %v2861 = vshrl.u32 %v2860, 7
    %v2862 = vsub.s32 5, %v2861
    %v2863 = vrot.slane %v44, %v2862
    %v2864 = vlaneseq
    %v2865 = vshrl.u32 %v2864, 7
    %v2866 = vsub.s32 5, %v2865
    %v2867 = vrot.slane %v45, %v2866
    %v2868 = vlaneseq
    %v2869 = vshrl.u32 %v2868, 7
    %v2870 = vsub.s32 5, %v2869
    %v2871 = vrot.slane %v46, %v2870
    %v2872 = vadd.f32 %v2857, %v2863
    %v2873 = vadd.f32 %v2858, %v2867
    %v2874 = vadd.f32 %v2859, %v2871
    %v2875 = vmax.f32 %v2872, 0.0
    %v2876 = vmax.f32 %v2873, 0.0
    %v2877 = vmax.f32 %v2874, 0.0
    %v2878 = vld [vmem:[%s6] sm:$0xff]
    %v2879 = vld [vmem:[%s6 + $0x8] sm:$0xff]
    %v2880 = vld [vmem:[%s6 + $0x10] sm:$0xff]
    %v2881 = vld [vmem:[%s6 + $0x18] sm:$0xff]
    %v2882 = vld [vmem:[%s6 + $0x20] sm:$0xff]
    %v2883 = vld [vmem:[%s6 + $0x28] sm:$0xff]
    %v2884 = vld [vmem:[%s6 + $0x30] sm:$0xff]
    %v2885 = vld [vmem:[%s6 + $0x38] sm:$0xff]
    %v2886 = vld [vmem:[%s6 + $0x40] sm:$0xff]
    %v2887 = vld [vmem:[%s6 + $0x48] sm:$0xff]
    %v2888 = vld [vmem:[%s6 + $0x50] sm:$0xff]
    %v2889 = vld [vmem:[%s6 + $0x58] sm:$0xff]
    %v2890 = vld [vmem:[%s6 + $0x60] sm:$0xff]
    %v2891 = vld [vmem:[%s6 + $0x68] sm:$0xff]
    %v2892 = vld [vmem:[%s6 + $0x70] sm:$0xff]
    %v2893 = vld [vmem:[%s6 + $0x78] sm:$0xff]
    %v2894 = vld [vmem:[%s6 + $0x80] sm:$0xff]
    %v2895 = vld [vmem:[%s6 + $0x88] sm:$0xff]
    %v2896 = vld [vmem:[%s6 + $0x90] sm:$0xff]
    %v2897 = vld [vmem:[%s6 + $0x98] sm:$0xff]
    %v2898 = vld [vmem:[%s6 + $0xa0] sm:$0xff]
    %v2899 = vld [vmem:[%s6 + $0xa8] sm:$0xff]
    %v2900 = vld [vmem:[%s6 + $0xb0] sm:$0xff]
    %v2901 = vld [vmem:[%s6 + $0xb8] sm:$0xff]
    %v2902 = vld [vmem:[%s6 + $0xc0] sm:$0xff]
    %v2903 = vld [vmem:[%s6 + $0xc8] sm:$0xff]
    %v2904 = vld [vmem:[%s6 + $0xd0] sm:$0xff]
    %v2905 = vld [vmem:[%s6 + $0xd8] sm:$0xff]
    %v2906 = vld [vmem:[%s6 + $0xe0] sm:$0xff]
    %v2907 = vld [vmem:[%s6 + $0xe8] sm:$0xff]
    %v2908 = vld [vmem:[%s6 + $0xf0] sm:$0xff]
    %v2909 = vld [vmem:[%s6 + $0xf8] sm:$0xff]
    %v2910 = vld [vmem:[%s6 + $0x100] sm:$0xff]
    %v2911 = vld [vmem:[%s6 + $0x108] sm:$0xff]
    %v2912 = vld [vmem:[%s6 + $0x110] sm:$0xff]
    %v2913 = vld [vmem:[%s6 + $0x118] sm:$0xff]
    %v2914 = vlaneseq
    %v2915 = vshrl.u32 %v2914, 7
    %v2916 = vsub.s32 6, %v2915
    %v2917 = vrot.slane %v44, %v2916
    %v2919 = vsel %vm789, %v2877, 0
    %2921 = vmatprep.subr.mxu0 0.0
    %2922 = vmatpush1.msra.mxu0 %v2893
    %2923 = vmatprep.subr.mxu0 0.0
    %2924 = vmatpush1.msra.mxu0 %v2892
    %2925 = vmatprep.subr.mxu0 0.0
    %2926 = vmatpush1.msra.mxu0 %v2891
    %2927 = vmatprep.subr.mxu0 0.0
    %2928 = vmatpush1.msra.mxu0 %v2890
    %2929 = vmatprep.subr.mxu0 0.0
    %2930 = vmatpush1.msra.mxu0 %v2889
    %2931 = vmatprep.subr.mxu0 0.0
    %2932 = vmatpush1.msra.mxu0 %v2888
    %2933 = vmatprep.subr.mxu0 0.0
    %2934 = vmatpush1.msra.mxu0 %v2887
    %2935 = vmatprep.subr.mxu0 0.0
    %2936 = vmatpush1.msra.mxu0 %v2886
    %2937 = vmatprep.subr.mxu0 0.0
    %2938 = vmatpush1.msra.mxu0 %v2885
    %2939 = vmatprep.subr.mxu0 0.0
    %2940 = vmatpush1.msra.mxu0 %v2884
    %2941 = vmatprep.subr.mxu0 0.0
    %2942 = vmatpush1.msra.mxu0 %v2883
    %2943 = vmatprep.subr.mxu0 0.0
    %2944 = vmatpush1.msra.mxu0 %v2882
    %2945 = vmatprep.subr.mxu0 0.0
    %2946 = vmatpush1.msra.mxu0 %v2881
    %2947 = vmatprep.subr.mxu0 0.0
    %2948 = vmatpush1.msra.mxu0 %v2880
    %2949 = vmatprep.subr.mxu0 0.0
    %2950 = vmatpush1.msra.mxu0 %v2879
    %2951 = vmatprep.subr.mxu0 0.0
    %2952 = vmatpush1.msra.mxu0 %v2878
    %2953 = vmatprep.subr.mxu0 0.0
    %2954 = vmatpush2.msra.mxu0 %v2909
    %2955 = vmatprep.subr.mxu0 0.0
    %2956 = vmatpush2.msra.mxu0 %v2908
    %2957 = vmatprep.subr.mxu0 0.0
    %2958 = vmatpush2.msra.mxu0 %v2907
    %2959 = vmatprep.subr.mxu0 0.0
    %2960 = vmatpush2.msra.mxu0 %v2906
    %2961 = vmatprep.subr.mxu0 0.0
    %2962 = vmatpush2.msra.mxu0 %v2905
    %2963 = vmatprep.subr.mxu0 0.0
    %2964 = vmatpush2.msra.mxu0 %v2904
    %2965 = vmatprep.subr.mxu0 0.0
    %2966 = vmatpush2.msra.mxu0 %v2903
    %2967 = vmatprep.subr.mxu0 0.0
    %2968 = vmatpush2.msra.mxu0 %v2902
    %2969 = vmatprep.subr.mxu0 0.0
    %2970 = vmatpush2.msra.mxu0 %v2901
    %2971 = vmatprep.subr.mxu0 0.0
    %2972 = vmatpush2.msra.mxu0 %v2900
    %2973 = vmatprep.subr.mxu0 0.0
    %2974 = vmatpush2.msra.mxu0 %v2899
    %2975 = vmatprep.subr.mxu0 0.0
    %2976 = vmatpush2.msra.mxu0 %v2898
    %2977 = vmatprep.subr.mxu0 0.0
    %2978 = vmatpush2.msra.mxu0 %v2897
    %2979 = vmatprep.subr.mxu0 0.0
    %2980 = vmatpush2.msra.mxu0 %v2896
    %2981 = vmatprep.subr.mxu0 0.0
    %2982 = vmatpush2.msra.mxu0 %v2895
    %2983 = vmatprep.subr.mxu0 0.0
    %2984 = vmatpush2.msra.mxu0 %v2894
    %2985 = vmatprep.mubr.f32.mxu0 %v2876
    %2986 = vmatmul.mubr.f32.gmra.mxu0 %v2875
    %v2987 = vpop.f32.mrf.mxu0
    %v2988 = vadd.f32 %v2917, %v2987
    %v2989 = vpop.f32.mrf.mxu0
    %2990 = vdwg.mxu0
    %2991 = vmatprep.subr.mxu0 0.0
    %2992 = vmatpush1.msra.mxu0 0.0
    %2993 = vmatprep.subr.mxu0 0.0
    %2994 = vmatpush1.msra.mxu0 0.0
    %2995 = vmatprep.subr.mxu0 0.0
    %2996 = vmatpush1.msra.mxu0 0.0
    %2997 = vmatprep.subr.mxu0 0.0
    %2998 = vmatpush1.msra.mxu0 0.0
    %2999 = vmatprep.subr.mxu0 0.0
    %3000 = vmatpush1.msra.mxu0 0.0
    %3001 = vmatprep.subr.mxu0 0.0
    %3002 = vmatpush1.msra.mxu0 0.0
    %3003 = vmatprep.subr.mxu0 0.0
    %3004 = vmatpush1.msra.mxu0 0.0
    %3005 = vmatprep.subr.mxu0 0.0
    %3006 = vmatpush1.msra.mxu0 0.0
    %3007 = vmatprep.subr.mxu0 0.0
    %3008 = vmatpush1.msra.mxu0 0.0
    %3009 = vmatprep.subr.mxu0 0.0
    %3010 = vmatpush1.msra.mxu0 0.0
    %3011 = vmatprep.subr.mxu0 0.0
    %3012 = vmatpush1.msra.mxu0 0.0
    %3013 = vmatprep.subr.mxu0 0.0
    %3014 = vmatpush1.msra.mxu0 0.0
    %3015 = vmatprep.subr.mxu0 0.0
    %3016 = vmatpush1.msra.mxu0 %v2913
    %3017 = vmatprep.subr.mxu0 0.0
    %3018 = vmatpush1.msra.mxu0 %v2912
    %3019 = vmatprep.subr.mxu0 0.0
    %3020 = vmatpush1.msra.mxu0 %v2911
    %3021 = vmatprep.subr.mxu0 0.0
    %3022 = vmatpush1.msra.mxu0 %v2910
    %3023 = vmatprep.subr.mxu0 0.0
    %3024 = vmatpush2.msra.mxu0 0.0
    %3025 = vmatprep.subr.mxu0 0.0
    %3026 = vmatpush2.msra.mxu0 0.0
    %3027 = vmatprep.subr.mxu0 0.0
    %3028 = vmatpush2.msra.mxu0 0.0
    %3029 = vmatprep.subr.mxu0 0.0
    %3030 = vmatpush2.msra.mxu0 0.0
    %3031 = vmatprep.subr.mxu0 0.0
    %3032 = vmatpush2.msra.mxu0 0.0
    %3033 = vmatprep.subr.mxu0 0.0
    %3034 = vmatpush2.msra.mxu0 0.0
    %3035 = vmatprep.subr.mxu0 0.0
    %3036 = vmatpush2.msra.mxu0 0.0
    %3037 = vmatprep.subr.mxu0 0.0
    %3038 = vmatpush2.msra.mxu0 0.0
    %3039 = vmatprep.subr.mxu0 0.0
    %3040 = vmatpush2.msra.mxu0 0.0
    %3041 = vmatprep.subr.mxu0 0.0
    %3042 = vmatpush2.msra.mxu0 0.0
    %3043 = vmatprep.subr.mxu0 0.0
    %3044 = vmatpush2.msra.mxu0 0.0
    %3045 = vmatprep.subr.mxu0 0.0
    %3046 = vmatpush2.msra.mxu0 0.0
    %3047 = vmatprep.subr.mxu0 0.0
    %3048 = vmatpush2.msra.mxu0 0.0
    %3049 = vmatprep.subr.mxu0 0.0
    %3050 = vmatpush2.msra.mxu0 0.0
    %3051 = vmatprep.subr.mxu0 0.0
    %3052 = vmatpush2.msra.mxu0 0.0
    %3053 = vmatprep.subr.mxu0 0.0
    %3054 = vmatpush2.msra.mxu0 0.0
    %3055 = vmatprep.mubr.f32.mxu0 0.0
    %3056 = vmatmul.mubr.f32.gmra.mxu0 %v2919
    %v3057 = vpop.f32.mrf.mxu0
    %v3058 = vadd.f32 %v2988, %v3057
    %v3059 = vpop.f32.mrf.mxu0
    %3060 = vdwg.mxu0
    %vm3061 = vcmask 74752
    %v3062 = vsel %vm3061, %v3058, -inf
    %3063 = vmax.xlane.f32.xlu0 %v3062
    %v3064 = vpop.xlane.xlu0 %3063
    %v3065 = vsub.f32 %v3058, %v3064
    %v3066 = vmul.f32 %v3065, 1.442695
    %v3067 = vpow.pop %v3066
    %v3068 = vsel %vm3061, %v3067, 0.0
    %3069 = vadd.xlane.f32.xlu0 %v3068
    %v3070 = vpop.xlane.xlu0 %3069
    %v3071 = vrcp.pop %v3070
    %v3072 = vmul.f32 %v3067, %v3071
    %3073 = vst.msk [vmem:[#allocation5] sm:$0x3] %vm3061, %v3072
    // Predicated region
    $region38: #{forward.1} parent=1 // pred_check
      _
    $region39: #{forward.1} parent=1 // pred_check_branch
      %3075 = sbr.rel (0) target = $region41
    $region40: #{forward.1} parent=1 // pred_region
      %s3077 = ssub.s32 32, 32
      %3078 = vsyncadd [#allocation4], %s3077
      %s3080 = sshll.u32 [#allocation5], 4
      %s3081 = int_to_ptr.vmem [resolvable:$true] %s3080
      %3083 = dma.vmem_to_hbm [thread:$0]  %s3081, 32, %s8, [#allocation4]
    $region41: #{forward.1} parent=1 // pred_fallthru
      _
    // Predicated region
    $region42: #{forward.1} parent=1 // pred_check
      _
    $region43: #{forward.1} parent=1 // pred_check_branch
      %3085 = sbr.rel (0) target = $region45
    $region44: #{forward.1} parent=1 // pred_region
      %3086 = dma.done [#allocation4], 32
    $region45: #{forward.1} parent=1 // pred_fallthru
      _
    %3087 = vsyncpa [#allocation3], 1
    %3088 = vsyncpa [#allocation4], 1

</llo_original>
